<compile_context>
chip_gen: v5e
topology: v5e:2x2
jax: 0.10.0
libtpu: 0.0.40
codegen_flags: <defaults>
</compile_context>

<pallas_src>
import numpy as np

import jax
import jax.numpy as jnp
from jax import lax
from jax.experimental import pallas as pl
from jax.experimental.pallas import tpu as pltpu


# ----------------------------------------------------------------------------
# Geometry (28x28 single-channel input is implied by fc-in = 20*5*5 = 500).
# ----------------------------------------------------------------------------
H0 = W0 = 28            # input image
C1, C2 = 10, 20         # conv output channels
K = 3                   # conv kernel size
H1 = W1 = H0 - K + 1    # 26 : conv1 output grid
P1 = H1 // 2            # 13 : pool1 output grid
H2 = W2 = P1 - K + 1    # 11 : conv2 output grid
P2 = H2 // 2            # 5  : pool2 output grid
FC_IN = C2 * P2 * P2    # 500

# Shift-slab lengths / lane offsets (spatial axis flattened row-major on the
# *input* grid width of each stage).
CONV1_LEN = (H1 - 1) * W0 + (W1 - 1) + 1           # 726
CONV1_OFFS = tuple(di * W0 + dj for di in range(K) for dj in range(K))
POOL1_LEN = 2 * (P1 - 1) * W0 + 2 * (P1 - 1) + 1   # 697 (pool anchors on 28-grid)
POOL1_OFFS = (0, 1, W0, W0 + 1)

CONV2_LEN = (H2 - 1) * P1 + (W2 - 1) + 1           # 141
CONV2_OFFS = tuple(di * P1 + dj for di in range(K) for dj in range(K))
POOL2_LEN = 2 * (P2 - 1) * P1 + 2 * (P2 - 1) + 1   # 113 (pool anchors on 13-grid)
POOL2_OFFS = (0, 1, P1, P1 + 1)


def _pool_select(grid_w, out_hw, n_rows):
    """0/1 matrix: column i*out_hw+j has a 1 at flattened anchor 2i*grid_w+2j."""
    m = np.zeros((n_rows, out_hw * out_hw), np.float32)
    for i in range(out_hw):
        for j in range(out_hw):
            m[2 * i * grid_w + 2 * j, i * out_hw + j] = 1.0
    return jnp.asarray(m)


# ----------------------------------------------------------------------------
# Fused forward kernel (one grid step == one image)
# ----------------------------------------------------------------------------
def _net_kernel(x_ref, w1_ref, b1_ref, s1_ref, w2_ref, b2_ref, s2_ref,
                wfc1_ref, bfc1_ref, wfc2_ref, bfc2_ref,
                o_ref, y1_ref, p1_ref, y2_ref):
    f32 = jnp.float32

    # ---- conv1 (Cin=1): 9 shifted VPU multiply-accumulates ------------------
    acc = None
    for t, off in enumerate(CONV1_OFFS):
        tap = x_ref[0, :, off:off + CONV1_LEN]          # (1, 726) lane slab
        term = w1_ref[t] * tap                          # (10,1)*(1,726)->(10,726)
        acc = term if acc is None else acc + term
    y1_ref[...] = jnp.maximum(acc + b1_ref[...], 0.0)   # bias + ReLU

    # ---- maxpool1 (2x2) = 4-tap max + selection matmul -----------------------
    p1full = jnp.maximum(
        jnp.maximum(y1_ref[:, POOL1_OFFS[0]:POOL1_OFFS[0] + POOL1_LEN],
                    y1_ref[:, POOL1_OFFS[1]:POOL1_OFFS[1] + POOL1_LEN]),
        jnp.maximum(y1_ref[:, POOL1_OFFS[2]:POOL1_OFFS[2] + POOL1_LEN],
                    y1_ref[:, POOL1_OFFS[3]:POOL1_OFFS[3] + POOL1_LEN]))
    p1_ref[...] = jnp.dot(p1full, s1_ref[...],
                          preferred_element_type=f32)    # (10, 169)

    # ---- conv2: 9 accumulating MXU matmuls contracting over 10 channels -----
    acc2 = None
    for t, off in enumerate(CONV2_OFFS):
        term = jnp.dot(w2_ref[t], p1_ref[:, off:off + CONV2_LEN],
                       preferred_element_type=f32)       # (20,10)@(10,141)
        acc2 = term if acc2 is None else acc2 + term
    y2_ref[...] = jnp.maximum(acc2 + b2_ref[...], 0.0)

    # ---- maxpool2 (2x2) = 4-tap max + selection matmul -----------------------
    p2full = jnp.maximum(
        jnp.maximum(y2_ref[:, POOL2_OFFS[0]:POOL2_OFFS[0] + POOL2_LEN],
                    y2_ref[:, POOL2_OFFS[1]:POOL2_OFFS[1] + POOL2_LEN]),
        jnp.maximum(y2_ref[:, POOL2_OFFS[2]:POOL2_OFFS[2] + POOL2_LEN],
                    y2_ref[:, POOL2_OFFS[3]:POOL2_OFFS[3] + POOL2_LEN]))
    p2 = jnp.dot(p2full, s2_ref[...], preferred_element_type=f32)   # (20, 25)

    # ---- fc1: NCHW flatten folded into per-channel (25,50) weight slabs ------
    h = bfc1_ref[...]                                    # (1, 50)
    for c in range(C2):
        h = h + jnp.dot(p2[c:c + 1, :], wfc1_ref[c],
                        preferred_element_type=f32)      # (1,25)@(25,50)
    h = jnp.maximum(h, 0.0)

    # ---- fc2 ------------------------------------------------------------------
    o_ref[0] = (jnp.dot(h, wfc2_ref[...], preferred_element_type=f32)
                + bfc2_ref[...])                         # (1, 10)


def _full_spec(shape):
    """Whole-array block, constant index map -> weight is DMA'd to VMEM once."""
    nd = len(shape)
    return pl.BlockSpec(shape, lambda i, _nd=nd: (0,) * _nd)


@jax.jit
def net_forward(x_nchw, kp):
    n = x_nchw.shape[0]
    x_flat = x_nchw.reshape(n, 1, H0 * W0).astype(jnp.float32)

    weight_args = (kp["w1"], kp["b1"], kp["s1"], kp["w2"], kp["b2"], kp["s2"],
                   kp["wfc1"], kp["bfc1"], kp["wfc2"], kp["bfc2"])
    weight_specs = [_full_spec(a.shape) for a in weight_args]

    out = pl.pallas_call(
        _net_kernel,
        out_shape=jax.ShapeDtypeStruct((n, 1, 10), jnp.float32),
        grid=(n,),
        in_specs=[pl.BlockSpec((1, 1, H0 * W0), lambda i: (i, 0, 0))]
                 + weight_specs,
        out_specs=pl.BlockSpec((1, 1, 10), lambda i: (i, 0, 0)),
        scratch_shapes=[
            pltpu.VMEM((C1, CONV1_LEN), jnp.float32),    # conv1 full output
            pltpu.VMEM((C1, P1 * P1), jnp.float32),      # pooled1 (conv2 input)
            pltpu.VMEM((C2, CONV2_LEN), jnp.float32),    # conv2 full output
        ],
        compiler_params=pltpu.CompilerParams(
            dimension_semantics=("parallel",)),          # megacore over batch
    )(x_flat, *weight_args)
    return out.reshape(n, 10)


# ----------------------------------------------------------------------------
# Parameters (synthetic, PyTorch layout) + packing into kernel layouts
# ----------------------------------------------------------------------------
def init_params(key):
    ks = jax.random.split(key, 8)
    f32 = jnp.float32
    return dict(
        w1=jax.random.normal(ks[0], (C1, 1, K, K), f32) * 0.1,
        b1=jax.random.normal(ks[1], (C1,), f32) * 0.1,
        w2=jax.random.normal(ks[2], (C2, C1, K, K), f32) * 0.1,
        b2=jax.random.normal(ks[3], (C2,), f32) * 0.1,
        fc1_w=jax.random.normal(ks[4], (50, FC_IN), f32) * 0.05,
        fc1_b=jax.random.normal(ks[5], (50,), f32) * 0.05,
        fc2_w=jax.random.normal(ks[6], (10, 50), f32) * 0.05,
        fc2_b=jax.random.normal(ks[7], (10,), f32) * 0.05,
    )


def pack_params(p):
    # conv1 weight -> (9, 10, 1): [tap, cout, 1]
    w1 = p["w1"].reshape(C1, K * K).T.reshape(K * K, C1, 1)
    # conv2 weight -> (9, 20, 10): [tap, cout, cin]
    w2 = jnp.transpose(p["w2"], (2, 3, 0, 1)).reshape(K * K, C2, C1)
    # fc1 weight -> (20, 25, 50): [cin_channel, spatial, out]  (NCHW flatten)
    wfc1 = p["fc1_w"].reshape(50, C2, P2 * P2).transpose(1, 2, 0)
    return dict(
        w1=w1, b1=p["b1"].reshape(C1, 1),
        s1=_pool_select(W0, P1, POOL1_LEN),
        w2=w2, b2=p["b2"].reshape(C2, 1),
        s2=_pool_select(P1, P2, POOL2_LEN),
        wfc1=wfc1, bfc1=p["fc1_b"].reshape(1, 50),
        wfc2=p["fc2_w"].T, bfc2=p["fc2_b"].reshape(1, 10),
    )


# ----------------------------------------------------------------------------
# Pure-JAX reference (matches the PyTorch module exactly) for validation
# ----------------------------------------------------------------------------
def reference_forward(x, p):
    hp = lax.Precision.HIGHEST
    dn = ("NCHW", "OIHW", "NCHW")
    y = lax.conv_general_dilated(x, p["w1"], (1, 1), "VALID",
                                 dimension_numbers=dn, precision=hp)
    y = jnp.maximum(y + p["b1"][None, :, None, None], 0.0)
    y = lax.reduce_window(y, -jnp.inf, lax.max, (1, 1, 2, 2), (1, 1, 2, 2), "VALID")
    y = lax.conv_general_dilated(y, p["w2"], (1, 1), "VALID",
                                 dimension_numbers=dn, precision=hp)
    y = jnp.maximum(y + p["b2"][None, :, None, None], 0.0)
    y = lax.reduce_window(y, -jnp.inf, lax.max, (1, 1, 2, 2), (1, 1, 2, 2), "VALID")
    flat = y.reshape(y.shape[0], -1)
    h = jnp.maximum(jnp.matmul(flat, p["fc1_w"].T, precision=hp) + p["fc1_b"], 0.0)
    return jnp.matmul(h, p["fc2_w"].T, precision=hp) + p["fc2_b"]


if __name__ == "__main__":
    key = jax.random.PRNGKey(0)
    k_x, k_p = jax.random.split(key)

    # Input shape implied by the module: 28x28 single-channel images.
    x = jax.random.normal(k_x, (2, 1, 28, 28), jnp.float32)
    params = init_params(k_p)
    kp = pack_params(params)

    out = net_forward(x, kp)
    out = jax.block_until_ready(out)
    assert out.shape == (2, 10), out.shape
    assert out.dtype == jnp.float32

    ref = jax.block_until_ready(reference_forward(x, params))
    max_err = float(jnp.max(jnp.abs(out - ref)))
    assert max_err < 1e-3, f"mismatch vs reference: {max_err}"
    print("KERNEL_OK")
</pallas_src>

<mosaic_0001>
module attributes {stable_mosaic.version = 11 : i64} {
  func.func @_net_kernel(%arg0: i32, %arg1: memref<1x1x784xf32, #tpu.memory_space<vmem>>, %arg2: memref<9x10x1xf32, #tpu.memory_space<vmem>>, %arg3: memref<10x1xf32, #tpu.memory_space<vmem>>, %arg4: memref<697x169xf32, #tpu.memory_space<vmem>>, %arg5: memref<9x20x10xf32, #tpu.memory_space<vmem>>, %arg6: memref<20x1xf32, #tpu.memory_space<vmem>>, %arg7: memref<113x25xf32, #tpu.memory_space<vmem>>, %arg8: memref<20x25x50xf32, #tpu.memory_space<vmem>>, %arg9: memref<1x50xf32, #tpu.memory_space<vmem>>, %arg10: memref<50x10xf32, #tpu.memory_space<vmem>>, %arg11: memref<1x10xf32, #tpu.memory_space<vmem>>, %arg12: memref<1x1x10xf32, #tpu.memory_space<vmem>>, %arg13: memref<10x726xf32, #tpu.memory_space<vmem>>, %arg14: memref<10x169xf32, #tpu.memory_space<vmem>>, %arg15: memref<20x141xf32, #tpu.memory_space<vmem>>) attributes {dimension_semantics = [#tpu.dimension_semantics<parallel>], iteration_bounds = array<i64: 2>, scalar_prefetch = 0 : i64, scratch_operands = 3 : i64, tpu.core_type = #tpu.core_type<tc>, window_params = [{transform_indices = @transform_0, window_bounds = array<i64: 1, 1, 784>}, {pipeline_mode = #tpu.pipeline_mode<synchronous>, transform_indices = @transform_1, window_bounds = array<i64: 9, 10, 1>}, {pipeline_mode = #tpu.pipeline_mode<synchronous>, transform_indices = @transform_2, window_bounds = array<i64: 10, 1>}, {pipeline_mode = #tpu.pipeline_mode<synchronous>, transform_indices = @transform_3, window_bounds = array<i64: 697, 169>}, {pipeline_mode = #tpu.pipeline_mode<synchronous>, transform_indices = @transform_4, window_bounds = array<i64: 9, 20, 10>}, {pipeline_mode = #tpu.pipeline_mode<synchronous>, transform_indices = @transform_5, window_bounds = array<i64: 20, 1>}, {pipeline_mode = #tpu.pipeline_mode<synchronous>, transform_indices = @transform_6, window_bounds = array<i64: 113, 25>}, {pipeline_mode = #tpu.pipeline_mode<synchronous>, transform_indices = @transform_7, window_bounds = array<i64: 20, 25, 50>}, {pipeline_mode = #tpu.pipeline_mode<synchronous>, transform_indices = @transform_8, window_bounds = array<i64: 1, 50>}, {pipeline_mode = #tpu.pipeline_mode<synchronous>, transform_indices = @transform_9, window_bounds = array<i64: 50, 10>}, {pipeline_mode = #tpu.pipeline_mode<synchronous>, transform_indices = @transform_10, window_bounds = array<i64: 1, 10>}, {transform_indices = @transform_11, window_bounds = array<i64: 1, 1, 10>}]} {
    %c0 = arith.constant 0 : index
    %c0_0 = arith.constant 0 : index
    %c0_1 = arith.constant 0 : index
    %0 = vector.load %arg1[%c0, %c0_0, %c0_1] : memref<1x1x784xf32, #tpu.memory_space<vmem>>, vector<1x1x726xf32>
    %1 = vector.shape_cast %0 : vector<1x1x726xf32> to vector<1x726xf32>
    %c0_2 = arith.constant 0 : index
    %c0_3 = arith.constant 0 : index
    %c0_4 = arith.constant 0 : index
    %2 = vector.load %arg2[%c0_2, %c0_3, %c0_4] : memref<9x10x1xf32, #tpu.memory_space<vmem>>, vector<1x10x1xf32>
    %3 = vector.shape_cast %2 : vector<1x10x1xf32> to vector<10x1xf32>
    %4 = vector.broadcast %3 : vector<10x1xf32> to vector<10x726xf32>
    %5 = vector.broadcast %1 : vector<1x726xf32> to vector<10x726xf32>
    %6 = arith.mulf %4, %5 : vector<10x726xf32>
    %c0_5 = arith.constant 0 : index
    %c0_6 = arith.constant 0 : index
    %c1 = arith.constant 1 : index
    %7 = vector.load %arg1[%c0_5, %c0_6, %c1] : memref<1x1x784xf32, #tpu.memory_space<vmem>>, vector<1x1x726xf32>
    %8 = vector.shape_cast %7 : vector<1x1x726xf32> to vector<1x726xf32>
    %c1_7 = arith.constant 1 : index
    %c0_8 = arith.constant 0 : index
    %c0_9 = arith.constant 0 : index
    %9 = vector.load %arg2[%c1_7, %c0_8, %c0_9] : memref<9x10x1xf32, #tpu.memory_space<vmem>>, vector<1x10x1xf32>
    %10 = vector.shape_cast %9 : vector<1x10x1xf32> to vector<10x1xf32>
    %11 = vector.broadcast %10 : vector<10x1xf32> to vector<10x726xf32>
    %12 = vector.broadcast %8 : vector<1x726xf32> to vector<10x726xf32>
    %13 = arith.mulf %11, %12 : vector<10x726xf32>
    %14 = arith.addf %6, %13 : vector<10x726xf32>
    %c0_10 = arith.constant 0 : index
    %c0_11 = arith.constant 0 : index
    %c2 = arith.constant 2 : index
    %15 = vector.load %arg1[%c0_10, %c0_11, %c2] : memref<1x1x784xf32, #tpu.memory_space<vmem>>, vector<1x1x726xf32>
    %16 = vector.shape_cast %15 : vector<1x1x726xf32> to vector<1x726xf32>
    %c2_12 = arith.constant 2 : index
    %c0_13 = arith.constant 0 : index
    %c0_14 = arith.constant 0 : index
    %17 = vector.load %arg2[%c2_12, %c0_13, %c0_14] : memref<9x10x1xf32, #tpu.memory_space<vmem>>, vector<1x10x1xf32>
    %18 = vector.shape_cast %17 : vector<1x10x1xf32> to vector<10x1xf32>
    %19 = vector.broadcast %18 : vector<10x1xf32> to vector<10x726xf32>
    %20 = vector.broadcast %16 : vector<1x726xf32> to vector<10x726xf32>
    %21 = arith.mulf %19, %20 : vector<10x726xf32>
    %22 = arith.addf %14, %21 : vector<10x726xf32>
    %c0_15 = arith.constant 0 : index
    %c0_16 = arith.constant 0 : index
    %c28 = arith.constant 28 : index
    %23 = vector.load %arg1[%c0_15, %c0_16, %c28] : memref<1x1x784xf32, #tpu.memory_space<vmem>>, vector<1x1x726xf32>
    %24 = vector.shape_cast %23 : vector<1x1x726xf32> to vector<1x726xf32>
    %c3 = arith.constant 3 : index
    %c0_17 = arith.constant 0 : index
    %c0_18 = arith.constant 0 : index
    %25 = vector.load %arg2[%c3, %c0_17, %c0_18] : memref<9x10x1xf32, #tpu.memory_space<vmem>>, vector<1x10x1xf32>
    %26 = vector.shape_cast %25 : vector<1x10x1xf32> to vector<10x1xf32>
    %27 = vector.broadcast %26 : vector<10x1xf32> to vector<10x726xf32>
    %28 = vector.broadcast %24 : vector<1x726xf32> to vector<10x726xf32>
    %29 = arith.mulf %27, %28 : vector<10x726xf32>
    %30 = arith.addf %22, %29 : vector<10x726xf32>
    %c0_19 = arith.constant 0 : index
    %c0_20 = arith.constant 0 : index
    %c29 = arith.constant 29 : index
    %31 = vector.load %arg1[%c0_19, %c0_20, %c29] : memref<1x1x784xf32, #tpu.memory_space<vmem>>, vector<1x1x726xf32>
    %32 = vector.shape_cast %31 : vector<1x1x726xf32> to vector<1x726xf32>
    %c4 = arith.constant 4 : index
    %c0_21 = arith.constant 0 : index
    %c0_22 = arith.constant 0 : index
    %33 = vector.load %arg2[%c4, %c0_21, %c0_22] : memref<9x10x1xf32, #tpu.memory_space<vmem>>, vector<1x10x1xf32>
    %34 = vector.shape_cast %33 : vector<1x10x1xf32> to vector<10x1xf32>
    %35 = vector.broadcast %34 : vector<10x1xf32> to vector<10x726xf32>
    %36 = vector.broadcast %32 : vector<1x726xf32> to vector<10x726xf32>
    %37 = arith.mulf %35, %36 : vector<10x726xf32>
    %38 = arith.addf %30, %37 : vector<10x726xf32>
    %c0_23 = arith.constant 0 : index
    %c0_24 = arith.constant 0 : index
    %c30 = arith.constant 30 : index
    %39 = vector.load %arg1[%c0_23, %c0_24, %c30] : memref<1x1x784xf32, #tpu.memory_space<vmem>>, vector<1x1x726xf32>
    %40 = vector.shape_cast %39 : vector<1x1x726xf32> to vector<1x726xf32>
    %c5 = arith.constant 5 : index
    %c0_25 = arith.constant 0 : index
    %c0_26 = arith.constant 0 : index
    %41 = vector.load %arg2[%c5, %c0_25, %c0_26] : memref<9x10x1xf32, #tpu.memory_space<vmem>>, vector<1x10x1xf32>
    %42 = vector.shape_cast %41 : vector<1x10x1xf32> to vector<10x1xf32>
    %43 = vector.broadcast %42 : vector<10x1xf32> to vector<10x726xf32>
    %44 = vector.broadcast %40 : vector<1x726xf32> to vector<10x726xf32>
    %45 = arith.mulf %43, %44 : vector<10x726xf32>
    %46 = arith.addf %38, %45 : vector<10x726xf32>
    %c0_27 = arith.constant 0 : index
    %c0_28 = arith.constant 0 : index
    %c56 = arith.constant 56 : index
    %47 = vector.load %arg1[%c0_27, %c0_28, %c56] : memref<1x1x784xf32, #tpu.memory_space<vmem>>, vector<1x1x726xf32>
    %48 = vector.shape_cast %47 : vector<1x1x726xf32> to vector<1x726xf32>
    %c6 = arith.constant 6 : index
    %c0_29 = arith.constant 0 : index
    %c0_30 = arith.constant 0 : index
    %49 = vector.load %arg2[%c6, %c0_29, %c0_30] : memref<9x10x1xf32, #tpu.memory_space<vmem>>, vector<1x10x1xf32>
    %50 = vector.shape_cast %49 : vector<1x10x1xf32> to vector<10x1xf32>
    %51 = vector.broadcast %50 : vector<10x1xf32> to vector<10x726xf32>
    %52 = vector.broadcast %48 : vector<1x726xf32> to vector<10x726xf32>
    %53 = arith.mulf %51, %52 : vector<10x726xf32>
    %54 = arith.addf %46, %53 : vector<10x726xf32>
    %c0_31 = arith.constant 0 : index
    %c0_32 = arith.constant 0 : index
    %c57 = arith.constant 57 : index
    %55 = vector.load %arg1[%c0_31, %c0_32, %c57] : memref<1x1x784xf32, #tpu.memory_space<vmem>>, vector<1x1x726xf32>
    %56 = vector.shape_cast %55 : vector<1x1x726xf32> to vector<1x726xf32>
    %c7 = arith.constant 7 : index
    %c0_33 = arith.constant 0 : index
    %c0_34 = arith.constant 0 : index
    %57 = vector.load %arg2[%c7, %c0_33, %c0_34] : memref<9x10x1xf32, #tpu.memory_space<vmem>>, vector<1x10x1xf32>
    %58 = vector.shape_cast %57 : vector<1x10x1xf32> to vector<10x1xf32>
    %59 = vector.broadcast %58 : vector<10x1xf32> to vector<10x726xf32>
    %60 = vector.broadcast %56 : vector<1x726xf32> to vector<10x726xf32>
    %61 = arith.mulf %59, %60 : vector<10x726xf32>
    %62 = arith.addf %54, %61 : vector<10x726xf32>
    %c0_35 = arith.constant 0 : index
    %c0_36 = arith.constant 0 : index
    %c58 = arith.constant 58 : index
    %63 = vector.load %arg1[%c0_35, %c0_36, %c58] : memref<1x1x784xf32, #tpu.memory_space<vmem>>, vector<1x1x726xf32>
    %64 = vector.shape_cast %63 : vector<1x1x726xf32> to vector<1x726xf32>
    %c8 = arith.constant 8 : index
    %c0_37 = arith.constant 0 : index
    %c0_38 = arith.constant 0 : index
    %65 = vector.load %arg2[%c8, %c0_37, %c0_38] : memref<9x10x1xf32, #tpu.memory_space<vmem>>, vector<1x10x1xf32>
    %66 = vector.shape_cast %65 : vector<1x10x1xf32> to vector<10x1xf32>
    %67 = vector.broadcast %66 : vector<10x1xf32> to vector<10x726xf32>
    %68 = vector.broadcast %64 : vector<1x726xf32> to vector<10x726xf32>
    %69 = arith.mulf %67, %68 : vector<10x726xf32>
    %70 = arith.addf %62, %69 : vector<10x726xf32>
    %c0_39 = arith.constant 0 : index
    %c0_40 = arith.constant 0 : index
    %71 = vector.load %arg3[%c0_39, %c0_40] : memref<10x1xf32, #tpu.memory_space<vmem>>, vector<10x1xf32>
    %72 = vector.broadcast %71 : vector<10x1xf32> to vector<10x726xf32>
    %73 = arith.addf %70, %72 : vector<10x726xf32>
    %cst = arith.constant 0.000000e+00 : f32
    %74 = vector.broadcast %cst : f32 to vector<10x726xf32>
    %75 = arith.maximumf %73, %74 : vector<10x726xf32>
    %c0_41 = arith.constant 0 : index
    %c0_42 = arith.constant 0 : index
    %76 = vector.load %arg13[%c0_41, %c0_42] : memref<10x726xf32, #tpu.memory_space<vmem>>, vector<10x726xf32>
    tpu.vector_store %arg13[%c0_41, %c0_42], %75 {strides = array<i32>} : memref<10x726xf32, #tpu.memory_space<vmem>>, vector<10x726xf32>,
    %c0_43 = arith.constant 0 : index
    %c0_44 = arith.constant 0 : index
    %77 = vector.load %arg13[%c0_43, %c0_44] : memref<10x726xf32, #tpu.memory_space<vmem>>, vector<10x697xf32>
    %c0_45 = arith.constant 0 : index
    %c1_46 = arith.constant 1 : index
    %78 = vector.load %arg13[%c0_45, %c1_46] : memref<10x726xf32, #tpu.memory_space<vmem>>, vector<10x697xf32>
    %79 = arith.maximumf %77, %78 : vector<10x697xf32>
    %c0_47 = arith.constant 0 : index
    %c28_48 = arith.constant 28 : index
    %80 = vector.load %arg13[%c0_47, %c28_48] : memref<10x726xf32, #tpu.memory_space<vmem>>, vector<10x697xf32>
    %c0_49 = arith.constant 0 : index
    %c29_50 = arith.constant 29 : index
    %81 = vector.load %arg13[%c0_49, %c29_50] : memref<10x726xf32, #tpu.memory_space<vmem>>, vector<10x697xf32>
    %82 = arith.maximumf %80, %81 : vector<10x697xf32>
    %83 = arith.maximumf %79, %82 : vector<10x697xf32>
    %c0_51 = arith.constant 0 : index
    %c0_52 = arith.constant 0 : index
    %84 = vector.load %arg4[%c0_51, %c0_52] : memref<697x169xf32, #tpu.memory_space<vmem>>, vector<697x169xf32>
    %cst_53 = arith.constant dense<0.000000e+00> : vector<10x169xf32>
    %85 = tpu.matmul %83, %84, %cst_53 {dimension_numbers = #tpu.dot_dimension_numbers<[1], [0], [0], [1], [0, 0, 1, 1], [], []>} : vector<10x697xf32>, vector<697x169xf32>, vector<10x169xf32> -> vector<10x169xf32>
    %c0_54 = arith.constant 0 : index
    %c0_55 = arith.constant 0 : index
    %86 = vector.load %arg14[%c0_54, %c0_55] : memref<10x169xf32, #tpu.memory_space<vmem>>, vector<10x169xf32>
    tpu.vector_store %arg14[%c0_54, %c0_55], %85 {strides = array<i32>} : memref<10x169xf32, #tpu.memory_space<vmem>>, vector<10x169xf32>,
    %c0_56 = arith.constant 0 : index
    %c0_57 = arith.constant 0 : index
    %c0_58 = arith.constant 0 : index
    %87 = vector.load %arg5[%c0_56, %c0_57, %c0_58] : memref<9x20x10xf32, #tpu.memory_space<vmem>>, vector<1x20x10xf32>
    %88 = vector.shape_cast %87 : vector<1x20x10xf32> to vector<20x10xf32>
    %c0_59 = arith.constant 0 : index
    %c0_60 = arith.constant 0 : index
    %89 = vector.load %arg14[%c0_59, %c0_60] : memref<10x169xf32, #tpu.memory_space<vmem>>, vector<10x141xf32>
    %cst_61 = arith.constant dense<0.000000e+00> : vector<20x141xf32>
    %90 = tpu.matmul %88, %89, %cst_61 {dimension_numbers = #tpu.dot_dimension_numbers<[1], [0], [0], [1], [0, 0, 1, 1], [], []>} : vector<20x10xf32>, vector<10x141xf32>, vector<20x141xf32> -> vector<20x141xf32>
    %c1_62 = arith.constant 1 : index
    %c0_63 = arith.constant 0 : index
    %c0_64 = arith.constant 0 : index
    %91 = vector.load %arg5[%c1_62, %c0_63, %c0_64] : memref<9x20x10xf32, #tpu.memory_space<vmem>>, vector<1x20x10xf32>
    %92 = vector.shape_cast %91 : vector<1x20x10xf32> to vector<20x10xf32>
    %c0_65 = arith.constant 0 : index
    %c1_66 = arith.constant 1 : index
    %93 = vector.load %arg14[%c0_65, %c1_66] : memref<10x169xf32, #tpu.memory_space<vmem>>, vector<10x141xf32>
    %cst_67 = arith.constant dense<0.000000e+00> : vector<20x141xf32>
    %94 = tpu.matmul %92, %93, %cst_67 {dimension_numbers = #tpu.dot_dimension_numbers<[1], [0], [0], [1], [0, 0, 1, 1], [], []>} : vector<20x10xf32>, vector<10x141xf32>, vector<20x141xf32> -> vector<20x141xf32>
    %95 = arith.addf %90, %94 : vector<20x141xf32>
    %c2_68 = arith.constant 2 : index
    %c0_69 = arith.constant 0 : index
    %c0_70 = arith.constant 0 : index
    %96 = vector.load %arg5[%c2_68, %c0_69, %c0_70] : memref<9x20x10xf32, #tpu.memory_space<vmem>>, vector<1x20x10xf32>
    %97 = vector.shape_cast %96 : vector<1x20x10xf32> to vector<20x10xf32>
    %c0_71 = arith.constant 0 : index
    %c2_72 = arith.constant 2 : index
    %98 = vector.load %arg14[%c0_71, %c2_72] : memref<10x169xf32, #tpu.memory_space<vmem>>, vector<10x141xf32>
    %cst_73 = arith.constant dense<0.000000e+00> : vector<20x141xf32>
    %99 = tpu.matmul %97, %98, %cst_73 {dimension_numbers = #tpu.dot_dimension_numbers<[1], [0], [0], [1], [0, 0, 1, 1], [], []>} : vector<20x10xf32>, vector<10x141xf32>, vector<20x141xf32> -> vector<20x141xf32>
    %100 = arith.addf %95, %99 : vector<20x141xf32>
    %c3_74 = arith.constant 3 : index
    %c0_75 = arith.constant 0 : index
    %c0_76 = arith.constant 0 : index
    %101 = vector.load %arg5[%c3_74, %c0_75, %c0_76] : memref<9x20x10xf32, #tpu.memory_space<vmem>>, vector<1x20x10xf32>
    %102 = vector.shape_cast %101 : vector<1x20x10xf32> to vector<20x10xf32>
    %c0_77 = arith.constant 0 : index
    %c13 = arith.constant 13 : index
    %103 = vector.load %arg14[%c0_77, %c13] : memref<10x169xf32, #tpu.memory_space<vmem>>, vector<10x141xf32>
    %cst_78 = arith.constant dense<0.000000e+00> : vector<20x141xf32>
    %104 = tpu.matmul %102, %103, %cst_78 {dimension_numbers = #tpu.dot_dimension_numbers<[1], [0], [0], [1], [0, 0, 1, 1], [], []>} : vector<20x10xf32>, vector<10x141xf32>, vector<20x141xf32> -> vector<20x141xf32>
    %105 = arith.addf %100, %104 : vector<20x141xf32>
    %c4_79 = arith.constant 4 : index
    %c0_80 = arith.constant 0 : index
    %c0_81 = arith.constant 0 : index
    %106 = vector.load %arg5[%c4_79, %c0_80, %c0_81] : memref<9x20x10xf32, #tpu.memory_space<vmem>>, vector<1x20x10xf32>
    %107 = vector.shape_cast %106 : vector<1x20x10xf32> to vector<20x10xf32>
    %c0_82 = arith.constant 0 : index
    %c14 = arith.constant 14 : index
    %108 = vector.load %arg14[%c0_82, %c14] : memref<10x169xf32, #tpu.memory_space<vmem>>, vector<10x141xf32>
    %cst_83 = arith.constant dense<0.000000e+00> : vector<20x141xf32>
    %109 = tpu.matmul %107, %108, %cst_83 {dimension_numbers = #tpu.dot_dimension_numbers<[1], [0], [0], [1], [0, 0, 1, 1], [], []>} : vector<20x10xf32>, vector<10x141xf32>, vector<20x141xf32> -> vector<20x141xf32>
    %110 = arith.addf %105, %109 : vector<20x141xf32>
    %c5_84 = arith.constant 5 : index
    %c0_85 = arith.constant 0 : index
    %c0_86 = arith.constant 0 : index
    %111 = vector.load %arg5[%c5_84, %c0_85, %c0_86] : memref<9x20x10xf32, #tpu.memory_space<vmem>>, vector<1x20x10xf32>
    %112 = vector.shape_cast %111 : vector<1x20x10xf32> to vector<20x10xf32>
    %c0_87 = arith.constant 0 : index
    %c15 = arith.constant 15 : index
    %113 = vector.load %arg14[%c0_87, %c15] : memref<10x169xf32, #tpu.memory_space<vmem>>, vector<10x141xf32>
    %cst_88 = arith.constant dense<0.000000e+00> : vector<20x141xf32>
    %114 = tpu.matmul %112, %113, %cst_88 {dimension_numbers = #tpu.dot_dimension_numbers<[1], [0], [0], [1], [0, 0, 1, 1], [], []>} : vector<20x10xf32>, vector<10x141xf32>, vector<20x141xf32> -> vector<20x141xf32>
    %115 = arith.addf %110, %114 : vector<20x141xf32>
    %c6_89 = arith.constant 6 : index
    %c0_90 = arith.constant 0 : index
    %c0_91 = arith.constant 0 : index
    %116 = vector.load %arg5[%c6_89, %c0_90, %c0_91] : memref<9x20x10xf32, #tpu.memory_space<vmem>>, vector<1x20x10xf32>
    %117 = vector.shape_cast %116 : vector<1x20x10xf32> to vector<20x10xf32>
    %c0_92 = arith.constant 0 : index
    %c26 = arith.constant 26 : index
    %118 = vector.load %arg14[%c0_92, %c26] : memref<10x169xf32, #tpu.memory_space<vmem>>, vector<10x141xf32>
    %cst_93 = arith.constant dense<0.000000e+00> : vector<20x141xf32>
    %119 = tpu.matmul %117, %118, %cst_93 {dimension_numbers = #tpu.dot_dimension_numbers<[1], [0], [0], [1], [0, 0, 1, 1], [], []>} : vector<20x10xf32>, vector<10x141xf32>, vector<20x141xf32> -> vector<20x141xf32>
    %120 = arith.addf %115, %119 : vector<20x141xf32>
    %c7_94 = arith.constant 7 : index
    %c0_95 = arith.constant 0 : index
    %c0_96 = arith.constant 0 : index
    %121 = vector.load %arg5[%c7_94, %c0_95, %c0_96] : memref<9x20x10xf32, #tpu.memory_space<vmem>>, vector<1x20x10xf32>
    %122 = vector.shape_cast %121 : vector<1x20x10xf32> to vector<20x10xf32>
    %c0_97 = arith.constant 0 : index
    %c27 = arith.constant 27 : index
    %123 = vector.load %arg14[%c0_97, %c27] : memref<10x169xf32, #tpu.memory_space<vmem>>, vector<10x141xf32>
    %cst_98 = arith.constant dense<0.000000e+00> : vector<20x141xf32>
    %124 = tpu.matmul %122, %123, %cst_98 {dimension_numbers = #tpu.dot_dimension_numbers<[1], [0], [0], [1], [0, 0, 1, 1], [], []>} : vector<20x10xf32>, vector<10x141xf32>, vector<20x141xf32> -> vector<20x141xf32>
    %125 = arith.addf %120, %124 : vector<20x141xf32>
    %c8_99 = arith.constant 8 : index
    %c0_100 = arith.constant 0 : index
    %c0_101 = arith.constant 0 : index
    %126 = vector.load %arg5[%c8_99, %c0_100, %c0_101] : memref<9x20x10xf32, #tpu.memory_space<vmem>>, vector<1x20x10xf32>
    %127 = vector.shape_cast %126 : vector<1x20x10xf32> to vector<20x10xf32>
    %c0_102 = arith.constant 0 : index
    %c28_103 = arith.constant 28 : index
    %128 = vector.load %arg14[%c0_102, %c28_103] : memref<10x169xf32, #tpu.memory_space<vmem>>, vector<10x141xf32>
    %cst_104 = arith.constant dense<0.000000e+00> : vector<20x141xf32>
    %129 = tpu.matmul %127, %128, %cst_104 {dimension_numbers = #tpu.dot_dimension_numbers<[1], [0], [0], [1], [0, 0, 1, 1], [], []>} : vector<20x10xf32>, vector<10x141xf32>, vector<20x141xf32> -> vector<20x141xf32>
    %130 = arith.addf %125, %129 : vector<20x141xf32>
    %c0_105 = arith.constant 0 : index
    %c0_106 = arith.constant 0 : index
    %131 = vector.load %arg6[%c0_105, %c0_106] : memref<20x1xf32, #tpu.memory_space<vmem>>, vector<20x1xf32>
    %132 = vector.broadcast %131 : vector<20x1xf32> to vector<20x141xf32>
    %133 = arith.addf %130, %132 : vector<20x141xf32>
    %cst_107 = arith.constant 0.000000e+00 : f32
    %134 = vector.broadcast %cst_107 : f32 to vector<20x141xf32>
    %135 = arith.maximumf %133, %134 : vector<20x141xf32>
    %c0_108 = arith.constant 0 : index
    %c0_109 = arith.constant 0 : index
    %136 = vector.load %arg15[%c0_108, %c0_109] : memref<20x141xf32, #tpu.memory_space<vmem>>, vector<20x141xf32>
    tpu.vector_store %arg15[%c0_108, %c0_109], %135 {strides = array<i32>} : memref<20x141xf32, #tpu.memory_space<vmem>>, vector<20x141xf32>,
    %c0_110 = arith.constant 0 : index
    %c0_111 = arith.constant 0 : index
    %137 = vector.load %arg15[%c0_110, %c0_111] : memref<20x141xf32, #tpu.memory_space<vmem>>, vector<20x113xf32>
    %c0_112 = arith.constant 0 : index
    %c1_113 = arith.constant 1 : index
    %138 = vector.load %arg15[%c0_112, %c1_113] : memref<20x141xf32, #tpu.memory_space<vmem>>, vector<20x113xf32>
    %139 = arith.maximumf %137, %138 : vector<20x113xf32>
    %c0_114 = arith.constant 0 : index
    %c13_115 = arith.constant 13 : index
    %140 = vector.load %arg15[%c0_114, %c13_115] : memref<20x141xf32, #tpu.memory_space<vmem>>, vector<20x113xf32>
    %c0_116 = arith.constant 0 : index
    %c14_117 = arith.constant 14 : index
    %141 = vector.load %arg15[%c0_116, %c14_117] : memref<20x141xf32, #tpu.memory_space<vmem>>, vector<20x113xf32>
    %142 = arith.maximumf %140, %141 : vector<20x113xf32>
    %143 = arith.maximumf %139, %142 : vector<20x113xf32>
    %c0_118 = arith.constant 0 : index
    %c0_119 = arith.constant 0 : index
    %144 = vector.load %arg7[%c0_118, %c0_119] : memref<113x25xf32, #tpu.memory_space<vmem>>, vector<113x25xf32>
    %cst_120 = arith.constant dense<0.000000e+00> : vector<20x25xf32>
    %145 = tpu.matmul %143, %144, %cst_120 {dimension_numbers = #tpu.dot_dimension_numbers<[1], [0], [0], [1], [0, 0, 1, 1], [], []>} : vector<20x113xf32>, vector<113x25xf32>, vector<20x25xf32> -> vector<20x25xf32>
    %c0_121 = arith.constant 0 : index
    %c0_122 = arith.constant 0 : index
    %146 = vector.load %arg9[%c0_121, %c0_122] : memref<1x50xf32, #tpu.memory_space<vmem>>, vector<1x50xf32>
    %147 = vector.extract_strided_slice %145 {offsets = [0, 0], sizes = [1, 25], strides = [1, 1]} : vector<20x25xf32> to vector<1x25xf32>
    %c0_123 = arith.constant 0 : index
    %c0_124 = arith.constant 0 : index
    %c0_125 = arith.constant 0 : index
    %148 = vector.load %arg8[%c0_123, %c0_124, %c0_125] : memref<20x25x50xf32, #tpu.memory_space<vmem>>, vector<1x25x50xf32>
    %149 = vector.shape_cast %148 : vector<1x25x50xf32> to vector<25x50xf32>
    %cst_126 = arith.constant dense<0.000000e+00> : vector<1x50xf32>
    %150 = tpu.matmul %147, %149, %cst_126 {dimension_numbers = #tpu.dot_dimension_numbers<[1], [0], [0], [1], [0, 0, 1, 1], [], []>} : vector<1x25xf32>, vector<25x50xf32>, vector<1x50xf32> -> vector<1x50xf32>
    %151 = arith.addf %146, %150 : vector<1x50xf32>
    %152 = vector.extract_strided_slice %145 {offsets = [1, 0], sizes = [1, 25], strides = [1, 1]} : vector<20x25xf32> to vector<1x25xf32>
    %c1_127 = arith.constant 1 : index
    %c0_128 = arith.constant 0 : index
    %c0_129 = arith.constant 0 : index
    %153 = vector.load %arg8[%c1_127, %c0_128, %c0_129] : memref<20x25x50xf32, #tpu.memory_space<vmem>>, vector<1x25x50xf32>
    %154 = vector.shape_cast %153 : vector<1x25x50xf32> to vector<25x50xf32>
    %cst_130 = arith.constant dense<0.000000e+00> : vector<1x50xf32>
    %155 = tpu.matmul %152, %154, %cst_130 {dimension_numbers = #tpu.dot_dimension_numbers<[1], [0], [0], [1], [0, 0, 1, 1], [], []>} : vector<1x25xf32>, vector<25x50xf32>, vector<1x50xf32> -> vector<1x50xf32>
    %156 = arith.addf %151, %155 : vector<1x50xf32>
    %157 = vector.extract_strided_slice %145 {offsets = [2, 0], sizes = [1, 25], strides = [1, 1]} : vector<20x25xf32> to vector<1x25xf32>
    %c2_131 = arith.constant 2 : index
    %c0_132 = arith.constant 0 : index
    %c0_133 = arith.constant 0 : index
    %158 = vector.load %arg8[%c2_131, %c0_132, %c0_133] : memref<20x25x50xf32, #tpu.memory_space<vmem>>, vector<1x25x50xf32>
    %159 = vector.shape_cast %158 : vector<1x25x50xf32> to vector<25x50xf32>
    %cst_134 = arith.constant dense<0.000000e+00> : vector<1x50xf32>
    %160 = tpu.matmul %157, %159, %cst_134 {dimension_numbers = #tpu.dot_dimension_numbers<[1], [0], [0], [1], [0, 0, 1, 1], [], []>} : vector<1x25xf32>, vector<25x50xf32>, vector<1x50xf32> -> vector<1x50xf32>
    %161 = arith.addf %156, %160 : vector<1x50xf32>
    %162 = vector.extract_strided_slice %145 {offsets = [3, 0], sizes = [1, 25], strides = [1, 1]} : vector<20x25xf32> to vector<1x25xf32>
    %c3_135 = arith.constant 3 : index
    %c0_136 = arith.constant 0 : index
    %c0_137 = arith.constant 0 : index
    %163 = vector.load %arg8[%c3_135, %c0_136, %c0_137] : memref<20x25x50xf32, #tpu.memory_space<vmem>>, vector<1x25x50xf32>
    %164 = vector.shape_cast %163 : vector<1x25x50xf32> to vector<25x50xf32>
    %cst_138 = arith.constant dense<0.000000e+00> : vector<1x50xf32>
    %165 = tpu.matmul %162, %164, %cst_138 {dimension_numbers = #tpu.dot_dimension_numbers<[1], [0], [0], [1], [0, 0, 1, 1], [], []>} : vector<1x25xf32>, vector<25x50xf32>, vector<1x50xf32> -> vector<1x50xf32>
    %166 = arith.addf %161, %165 : vector<1x50xf32>
    %167 = vector.extract_strided_slice %145 {offsets = [4, 0], sizes = [1, 25], strides = [1, 1]} : vector<20x25xf32> to vector<1x25xf32>
    %c4_139 = arith.constant 4 : index
    %c0_140 = arith.constant 0 : index
    %c0_141 = arith.constant 0 : index
    %168 = vector.load %arg8[%c4_139, %c0_140, %c0_141] : memref<20x25x50xf32, #tpu.memory_space<vmem>>, vector<1x25x50xf32>
    %169 = vector.shape_cast %168 : vector<1x25x50xf32> to vector<25x50xf32>
    %cst_142 = arith.constant dense<0.000000e+00> : vector<1x50xf32>
    %170 = tpu.matmul %167, %169, %cst_142 {dimension_numbers = #tpu.dot_dimension_numbers<[1], [0], [0], [1], [0, 0, 1, 1], [], []>} : vector<1x25xf32>, vector<25x50xf32>, vector<1x50xf32> -> vector<1x50xf32>
    %171 = arith.addf %166, %170 : vector<1x50xf32>
    %172 = vector.extract_strided_slice %145 {offsets = [5, 0], sizes = [1, 25], strides = [1, 1]} : vector<20x25xf32> to vector<1x25xf32>
    %c5_143 = arith.constant 5 : index
    %c0_144 = arith.constant 0 : index
    %c0_145 = arith.constant 0 : index
    %173 = vector.load %arg8[%c5_143, %c0_144, %c0_145] : memref<20x25x50xf32, #tpu.memory_space<vmem>>, vector<1x25x50xf32>
    %174 = vector.shape_cast %173 : vector<1x25x50xf32> to vector<25x50xf32>
    %cst_146 = arith.constant dense<0.000000e+00> : vector<1x50xf32>
    %175 = tpu.matmul %172, %174, %cst_146 {dimension_numbers = #tpu.dot_dimension_numbers<[1], [0], [0], [1], [0, 0, 1, 1], [], []>} : vector<1x25xf32>, vector<25x50xf32>, vector<1x50xf32> -> vector<1x50xf32>
    %176 = arith.addf %171, %175 : vector<1x50xf32>
    %177 = vector.extract_strided_slice %145 {offsets = [6, 0], sizes = [1, 25], strides = [1, 1]} : vector<20x25xf32> to vector<1x25xf32>
    %c6_147 = arith.constant 6 : index
    %c0_148 = arith.constant 0 : index
    %c0_149 = arith.constant 0 : index
    %178 = vector.load %arg8[%c6_147, %c0_148, %c0_149] : memref<20x25x50xf32, #tpu.memory_space<vmem>>, vector<1x25x50xf32>
    %179 = vector.shape_cast %178 : vector<1x25x50xf32> to vector<25x50xf32>
    %cst_150 = arith.constant dense<0.000000e+00> : vector<1x50xf32>
    %180 = tpu.matmul %177, %179, %cst_150 {dimension_numbers = #tpu.dot_dimension_numbers<[1], [0], [0], [1], [0, 0, 1, 1], [], []>} : vector<1x25xf32>, vector<25x50xf32>, vector<1x50xf32> -> vector<1x50xf32>
    %181 = arith.addf %176, %180 : vector<1x50xf32>
    %182 = vector.extract_strided_slice %145 {offsets = [7, 0], sizes = [1, 25], strides = [1, 1]} : vector<20x25xf32> to vector<1x25xf32>
    %c7_151 = arith.constant 7 : index
    %c0_152 = arith.constant 0 : index
    %c0_153 = arith.constant 0 : index
    %183 = vector.load %arg8[%c7_151, %c0_152, %c0_153] : memref<20x25x50xf32, #tpu.memory_space<vmem>>, vector<1x25x50xf32>
    %184 = vector.shape_cast %183 : vector<1x25x50xf32> to vector<25x50xf32>
    %cst_154 = arith.constant dense<0.000000e+00> : vector<1x50xf32>
    %185 = tpu.matmul %182, %184, %cst_154 {dimension_numbers = #tpu.dot_dimension_numbers<[1], [0], [0], [1], [0, 0, 1, 1], [], []>} : vector<1x25xf32>, vector<25x50xf32>, vector<1x50xf32> -> vector<1x50xf32>
    %186 = arith.addf %181, %185 : vector<1x50xf32>
    %187 = vector.extract_strided_slice %145 {offsets = [8, 0], sizes = [1, 25], strides = [1, 1]} : vector<20x25xf32> to vector<1x25xf32>
    %c8_155 = arith.constant 8 : index
    %c0_156 = arith.constant 0 : index
    %c0_157 = arith.constant 0 : index
    %188 = vector.load %arg8[%c8_155, %c0_156, %c0_157] : memref<20x25x50xf32, #tpu.memory_space<vmem>>, vector<1x25x50xf32>
    %189 = vector.shape_cast %188 : vector<1x25x50xf32> to vector<25x50xf32>
    %cst_158 = arith.constant dense<0.000000e+00> : vector<1x50xf32>
    %190 = tpu.matmul %187, %189, %cst_158 {dimension_numbers = #tpu.dot_dimension_numbers<[1], [0], [0], [1], [0, 0, 1, 1], [], []>} : vector<1x25xf32>, vector<25x50xf32>, vector<1x50xf32> -> vector<1x50xf32>
    %191 = arith.addf %186, %190 : vector<1x50xf32>
    %192 = vector.extract_strided_slice %145 {offsets = [9, 0], sizes = [1, 25], strides = [1, 1]} : vector<20x25xf32> to vector<1x25xf32>
    %c9 = arith.constant 9 : index
    %c0_159 = arith.constant 0 : index
    %c0_160 = arith.constant 0 : index
    %193 = vector.load %arg8[%c9, %c0_159, %c0_160] : memref<20x25x50xf32, #tpu.memory_space<vmem>>, vector<1x25x50xf32>
    %194 = vector.shape_cast %193 : vector<1x25x50xf32> to vector<25x50xf32>
    %cst_161 = arith.constant dense<0.000000e+00> : vector<1x50xf32>
    %195 = tpu.matmul %192, %194, %cst_161 {dimension_numbers = #tpu.dot_dimension_numbers<[1], [0], [0], [1], [0, 0, 1, 1], [], []>} : vector<1x25xf32>, vector<25x50xf32>, vector<1x50xf32> -> vector<1x50xf32>
    %196 = arith.addf %191, %195 : vector<1x50xf32>
    %197 = vector.extract_strided_slice %145 {offsets = [10, 0], sizes = [1, 25], strides = [1, 1]} : vector<20x25xf32> to vector<1x25xf32>
    %c10 = arith.constant 10 : index
    %c0_162 = arith.constant 0 : index
    %c0_163 = arith.constant 0 : index
    %198 = vector.load %arg8[%c10, %c0_162, %c0_163] : memref<20x25x50xf32, #tpu.memory_space<vmem>>, vector<1x25x50xf32>
    %199 = vector.shape_cast %198 : vector<1x25x50xf32> to vector<25x50xf32>
    %cst_164 = arith.constant dense<0.000000e+00> : vector<1x50xf32>
    %200 = tpu.matmul %197, %199, %cst_164 {dimension_numbers = #tpu.dot_dimension_numbers<[1], [0], [0], [1], [0, 0, 1, 1], [], []>} : vector<1x25xf32>, vector<25x50xf32>, vector<1x50xf32> -> vector<1x50xf32>
    %201 = arith.addf %196, %200 : vector<1x50xf32>
    %202 = vector.extract_strided_slice %145 {offsets = [11, 0], sizes = [1, 25], strides = [1, 1]} : vector<20x25xf32> to vector<1x25xf32>
    %c11 = arith.constant 11 : index
    %c0_165 = arith.constant 0 : index
    %c0_166 = arith.constant 0 : index
    %203 = vector.load %arg8[%c11, %c0_165, %c0_166] : memref<20x25x50xf32, #tpu.memory_space<vmem>>, vector<1x25x50xf32>
    %204 = vector.shape_cast %203 : vector<1x25x50xf32> to vector<25x50xf32>
    %cst_167 = arith.constant dense<0.000000e+00> : vector<1x50xf32>
    %205 = tpu.matmul %202, %204, %cst_167 {dimension_numbers = #tpu.dot_dimension_numbers<[1], [0], [0], [1], [0, 0, 1, 1], [], []>} : vector<1x25xf32>, vector<25x50xf32>, vector<1x50xf32> -> vector<1x50xf32>
    %206 = arith.addf %201, %205 : vector<1x50xf32>
    %207 = vector.extract_strided_slice %145 {offsets = [12, 0], sizes = [1, 25], strides = [1, 1]} : vector<20x25xf32> to vector<1x25xf32>
    %c12 = arith.constant 12 : index
    %c0_168 = arith.constant 0 : index
    %c0_169 = arith.constant 0 : index
    %208 = vector.load %arg8[%c12, %c0_168, %c0_169] : memref<20x25x50xf32, #tpu.memory_space<vmem>>, vector<1x25x50xf32>
    %209 = vector.shape_cast %208 : vector<1x25x50xf32> to vector<25x50xf32>
    %cst_170 = arith.constant dense<0.000000e+00> : vector<1x50xf32>
    %210 = tpu.matmul %207, %209, %cst_170 {dimension_numbers = #tpu.dot_dimension_numbers<[1], [0], [0], [1], [0, 0, 1, 1], [], []>} : vector<1x25xf32>, vector<25x50xf32>, vector<1x50xf32> -> vector<1x50xf32>
    %211 = arith.addf %206, %210 : vector<1x50xf32>
    %212 = vector.extract_strided_slice %145 {offsets = [13, 0], sizes = [1, 25], strides = [1, 1]} : vector<20x25xf32> to vector<1x25xf32>
    %c13_171 = arith.constant 13 : index
    %c0_172 = arith.constant 0 : index
    %c0_173 = arith.constant 0 : index
    %213 = vector.load %arg8[%c13_171, %c0_172, %c0_173] : memref<20x25x50xf32, #tpu.memory_space<vmem>>, vector<1x25x50xf32>
    %214 = vector.shape_cast %213 : vector<1x25x50xf32> to vector<25x50xf32>
    %cst_174 = arith.constant dense<0.000000e+00> : vector<1x50xf32>
    %215 = tpu.matmul %212, %214, %cst_174 {dimension_numbers = #tpu.dot_dimension_numbers<[1], [0], [0], [1], [0, 0, 1, 1], [], []>} : vector<1x25xf32>, vector<25x50xf32>, vector<1x50xf32> -> vector<1x50xf32>
    %216 = arith.addf %211, %215 : vector<1x50xf32>
    %217 = vector.extract_strided_slice %145 {offsets = [14, 0], sizes = [1, 25], strides = [1, 1]} : vector<20x25xf32> to vector<1x25xf32>
    %c14_175 = arith.constant 14 : index
    %c0_176 = arith.constant 0 : index
    %c0_177 = arith.constant 0 : index
    %218 = vector.load %arg8[%c14_175, %c0_176, %c0_177] : memref<20x25x50xf32, #tpu.memory_space<vmem>>, vector<1x25x50xf32>
    %219 = vector.shape_cast %218 : vector<1x25x50xf32> to vector<25x50xf32>
    %cst_178 = arith.constant dense<0.000000e+00> : vector<1x50xf32>
    %220 = tpu.matmul %217, %219, %cst_178 {dimension_numbers = #tpu.dot_dimension_numbers<[1], [0], [0], [1], [0, 0, 1, 1], [], []>} : vector<1x25xf32>, vector<25x50xf32>, vector<1x50xf32> -> vector<1x50xf32>
    %221 = arith.addf %216, %220 : vector<1x50xf32>
    %222 = vector.extract_strided_slice %145 {offsets = [15, 0], sizes = [1, 25], strides = [1, 1]} : vector<20x25xf32> to vector<1x25xf32>
    %c15_179 = arith.constant 15 : index
    %c0_180 = arith.constant 0 : index
    %c0_181 = arith.constant 0 : index
    %223 = vector.load %arg8[%c15_179, %c0_180, %c0_181] : memref<20x25x50xf32, #tpu.memory_space<vmem>>, vector<1x25x50xf32>
    %224 = vector.shape_cast %223 : vector<1x25x50xf32> to vector<25x50xf32>
    %cst_182 = arith.constant dense<0.000000e+00> : vector<1x50xf32>
    %225 = tpu.matmul %222, %224, %cst_182 {dimension_numbers = #tpu.dot_dimension_numbers<[1], [0], [0], [1], [0, 0, 1, 1], [], []>} : vector<1x25xf32>, vector<25x50xf32>, vector<1x50xf32> -> vector<1x50xf32>
    %226 = arith.addf %221, %225 : vector<1x50xf32>
    %227 = vector.extract_strided_slice %145 {offsets = [16, 0], sizes = [1, 25], strides = [1, 1]} : vector<20x25xf32> to vector<1x25xf32>
    %c16 = arith.constant 16 : index
    %c0_183 = arith.constant 0 : index
    %c0_184 = arith.constant 0 : index
    %228 = vector.load %arg8[%c16, %c0_183, %c0_184] : memref<20x25x50xf32, #tpu.memory_space<vmem>>, vector<1x25x50xf32>
    %229 = vector.shape_cast %228 : vector<1x25x50xf32> to vector<25x50xf32>
    %cst_185 = arith.constant dense<0.000000e+00> : vector<1x50xf32>
    %230 = tpu.matmul %227, %229, %cst_185 {dimension_numbers = #tpu.dot_dimension_numbers<[1], [0], [0], [1], [0, 0, 1, 1], [], []>} : vector<1x25xf32>, vector<25x50xf32>, vector<1x50xf32> -> vector<1x50xf32>
    %231 = arith.addf %226, %230 : vector<1x50xf32>
    %232 = vector.extract_strided_slice %145 {offsets = [17, 0], sizes = [1, 25], strides = [1, 1]} : vector<20x25xf32> to vector<1x25xf32>
    %c17 = arith.constant 17 : index
    %c0_186 = arith.constant 0 : index
    %c0_187 = arith.constant 0 : index
    %233 = vector.load %arg8[%c17, %c0_186, %c0_187] : memref<20x25x50xf32, #tpu.memory_space<vmem>>, vector<1x25x50xf32>
    %234 = vector.shape_cast %233 : vector<1x25x50xf32> to vector<25x50xf32>
    %cst_188 = arith.constant dense<0.000000e+00> : vector<1x50xf32>
    %235 = tpu.matmul %232, %234, %cst_188 {dimension_numbers = #tpu.dot_dimension_numbers<[1], [0], [0], [1], [0, 0, 1, 1], [], []>} : vector<1x25xf32>, vector<25x50xf32>, vector<1x50xf32> -> vector<1x50xf32>
    %236 = arith.addf %231, %235 : vector<1x50xf32>
    %237 = vector.extract_strided_slice %145 {offsets = [18, 0], sizes = [1, 25], strides = [1, 1]} : vector<20x25xf32> to vector<1x25xf32>
    %c18 = arith.constant 18 : index
    %c0_189 = arith.constant 0 : index
    %c0_190 = arith.constant 0 : index
    %238 = vector.load %arg8[%c18, %c0_189, %c0_190] : memref<20x25x50xf32, #tpu.memory_space<vmem>>, vector<1x25x50xf32>
    %239 = vector.shape_cast %238 : vector<1x25x50xf32> to vector<25x50xf32>
    %cst_191 = arith.constant dense<0.000000e+00> : vector<1x50xf32>
    %240 = tpu.matmul %237, %239, %cst_191 {dimension_numbers = #tpu.dot_dimension_numbers<[1], [0], [0], [1], [0, 0, 1, 1], [], []>} : vector<1x25xf32>, vector<25x50xf32>, vector<1x50xf32> -> vector<1x50xf32>
    %241 = arith.addf %236, %240 : vector<1x50xf32>
    %242 = vector.extract_strided_slice %145 {offsets = [19, 0], sizes = [1, 25], strides = [1, 1]} : vector<20x25xf32> to vector<1x25xf32>
    %c19 = arith.constant 19 : index
    %c0_192 = arith.constant 0 : index
    %c0_193 = arith.constant 0 : index
    %243 = vector.load %arg8[%c19, %c0_192, %c0_193] : memref<20x25x50xf32, #tpu.memory_space<vmem>>, vector<1x25x50xf32>
    %244 = vector.shape_cast %243 : vector<1x25x50xf32> to vector<25x50xf32>
    %cst_194 = arith.constant dense<0.000000e+00> : vector<1x50xf32>
    %245 = tpu.matmul %242, %244, %cst_194 {dimension_numbers = #tpu.dot_dimension_numbers<[1], [0], [0], [1], [0, 0, 1, 1], [], []>} : vector<1x25xf32>, vector<25x50xf32>, vector<1x50xf32> -> vector<1x50xf32>
    %246 = arith.addf %241, %245 : vector<1x50xf32>
    %cst_195 = arith.constant 0.000000e+00 : f32
    %247 = vector.broadcast %cst_195 : f32 to vector<1x50xf32>
    %248 = arith.maximumf %246, %247 : vector<1x50xf32>
    %c0_196 = arith.constant 0 : index
    %c0_197 = arith.constant 0 : index
    %249 = vector.load %arg10[%c0_196, %c0_197] : memref<50x10xf32, #tpu.memory_space<vmem>>, vector<50x10xf32>
    %cst_198 = arith.constant dense<0.000000e+00> : vector<1x10xf32>
    %250 = tpu.matmul %248, %249, %cst_198 {dimension_numbers = #tpu.dot_dimension_numbers<[1], [0], [0], [1], [0, 0, 1, 1], [], []>} : vector<1x50xf32>, vector<50x10xf32>, vector<1x10xf32> -> vector<1x10xf32>
    %c0_199 = arith.constant 0 : index
    %c0_200 = arith.constant 0 : index
    %251 = vector.load %arg11[%c0_199, %c0_200] : memref<1x10xf32, #tpu.memory_space<vmem>>, vector<1x10xf32>
    %252 = arith.addf %250, %251 : vector<1x10xf32>
    %c0_201 = arith.constant 0 : index
    %c0_202 = arith.constant 0 : index
    %c0_203 = arith.constant 0 : index
    %253 = vector.load %arg12[%c0_201, %c0_202, %c0_203] : memref<1x1x10xf32, #tpu.memory_space<vmem>>, vector<1x1x10xf32>
    %254 = vector.shape_cast %253 : vector<1x1x10xf32> to vector<1x10xf32>
    %255 = vector.shape_cast %252 : vector<1x10xf32> to vector<1x1x10xf32>
    tpu.vector_store %arg12[%c0_201, %c0_202, %c0_203], %255 {strides = array<i32>} : memref<1x1x10xf32, #tpu.memory_space<vmem>>, vector<1x1x10xf32>,
    return
  }
  func.func @transform_0(%arg0: i32) -> (i32, i32, i32) {
    %c0_i32 = arith.constant 0 : i32
    %c0_i32_0 = arith.constant 0 : i32
    %c0_i32_1 = arith.constant 0 : i32
    return %arg0, %c0_i32, %c0_i32_0 : i32, i32, i32
  }
  func.func @transform_1(%arg0: i32) -> (i32, i32, i32) {
    %c0_i32 = arith.constant 0 : i32
    %c0_i32_0 = arith.constant 0 : i32
    %c0_i32_1 = arith.constant 0 : i32
    %c0_i32_2 = arith.constant 0 : i32
    return %c0_i32, %c0_i32_0, %c0_i32_1 : i32, i32, i32
  }
  func.func @transform_2(%arg0: i32) -> (i32, i32) {
    %c0_i32 = arith.constant 0 : i32
    %c0_i32_0 = arith.constant 0 : i32
    %c0_i32_1 = arith.constant 0 : i32
    return %c0_i32, %c0_i32_0 : i32, i32
  }
  func.func @transform_3(%arg0: i32) -> (i32, i32) {
    %c0_i32 = arith.constant 0 : i32
    %c0_i32_0 = arith.constant 0 : i32
    %c0_i32_1 = arith.constant 0 : i32
    return %c0_i32, %c0_i32_0 : i32, i32
  }
  func.func @transform_4(%arg0: i32) -> (i32, i32, i32) {
    %c0_i32 = arith.constant 0 : i32
    %c0_i32_0 = arith.constant 0 : i32
    %c0_i32_1 = arith.constant 0 : i32
    %c0_i32_2 = arith.constant 0 : i32
    return %c0_i32, %c0_i32_0, %c0_i32_1 : i32, i32, i32
  }
  func.func @transform_5(%arg0: i32) -> (i32, i32) {
    %c0_i32 = arith.constant 0 : i32
    %c0_i32_0 = arith.constant 0 : i32
    %c0_i32_1 = arith.constant 0 : i32
    return %c0_i32, %c0_i32_0 : i32, i32
  }
  func.func @transform_6(%arg0: i32) -> (i32, i32) {
    %c0_i32 = arith.constant 0 : i32
    %c0_i32_0 = arith.constant 0 : i32
    %c0_i32_1 = arith.constant 0 : i32
    return %c0_i32, %c0_i32_0 : i32, i32
  }
  func.func @transform_7(%arg0: i32) -> (i32, i32, i32) {
    %c0_i32 = arith.constant 0 : i32
    %c0_i32_0 = arith.constant 0 : i32
    %c0_i32_1 = arith.constant 0 : i32
    %c0_i32_2 = arith.constant 0 : i32
    return %c0_i32, %c0_i32_0, %c0_i32_1 : i32, i32, i32
  }
  func.func @transform_8(%arg0: i32) -> (i32, i32) {
    %c0_i32 = arith.constant 0 : i32
    %c0_i32_0 = arith.constant 0 : i32
    %c0_i32_1 = arith.constant 0 : i32
    return %c0_i32, %c0_i32_0 : i32, i32
  }
  func.func @transform_9(%arg0: i32) -> (i32, i32) {
    %c0_i32 = arith.constant 0 : i32
    %c0_i32_0 = arith.constant 0 : i32
    %c0_i32_1 = arith.constant 0 : i32
    return %c0_i32, %c0_i32_0 : i32, i32
  }
  func.func @transform_10(%arg0: i32) -> (i32, i32) {
    %c0_i32 = arith.constant 0 : i32
    %c0_i32_0 = arith.constant 0 : i32
    %c0_i32_1 = arith.constant 0 : i32
    return %c0_i32, %c0_i32_0 : i32, i32
  }
  func.func @transform_11(%arg0: i32) -> (i32, i32, i32) {
    %c0_i32 = arith.constant 0 : i32
    %c0_i32_0 = arith.constant 0 : i32
    %c0_i32_1 = arith.constant 0 : i32
    return %arg0, %c0_i32, %c0_i32_0 : i32, i32, i32
  }
}

</mosaic_0001>

<llo_original>
// kernel: net_forward.1
$region0: #{net_forward.1}
  #allocation0 [shape = 'u32[]', space=smem, size = 0x4, offset = 0x4, fixed_abs, tag = 'smem constant byte address 0x4 - core index']
  #allocation1 [shape = 'u32[72,128]{1,0:T(1,128)}', space=vmem, size = 0x9000, scoped, tag = 'internal scratch']
  #allocation2 [shape = 'f32[10,726]{1,0:T(8,128)}', space=vmem, size = 0xc000, scoped, tag = 'scratch operand']
  #allocation3 [shape = 'f32[10,169]{1,0:T(8,128)}', space=vmem, size = 0x4000, scoped, tag = 'scratch operand']
  #allocation4 [shape = 'f32[20,141]{1,0:T(8,128)}', space=vmem, size = 0x6000, scoped, tag = 'scratch operand']
  %s0 = inlined_call_operand.vmem [shape: f32[2,1,784], index: 0, kind: input, shape index: {}]
  %s1 = inlined_call_operand.vmem [shape: f32[9,10,1], index: 1, kind: input, shape index: {}]
  %s2 = inlined_call_operand.vmem [shape: f32[10,1], index: 2, kind: input, shape index: {}]
  %s3 = inlined_call_operand.vmem [shape: f32[697,169], index: 3, kind: input, shape index: {}]
  %s4 = inlined_call_operand.vmem [shape: f32[9,20,10], index: 4, kind: input, shape index: {}]
  %s5 = inlined_call_operand.vmem [shape: f32[20,1], index: 5, kind: input, shape index: {}]
  %s6 = inlined_call_operand.vmem [shape: f32[113,25], index: 6, kind: input, shape index: {}]
  %s7 = inlined_call_operand.vmem [shape: f32[20,25,50], index: 7, kind: input, shape index: {}]
  %s8 = inlined_call_operand.vmem [shape: f32[1,50], index: 8, kind: input, shape index: {}]
  %s9 = inlined_call_operand.vmem [shape: f32[50,10], index: 9, kind: input, shape index: {}]
  %s10 = inlined_call_operand.vmem [shape: f32[1,10], index: 10, kind: input, shape index: {}]
  %s11 = inlined_call_operand.hbm [shape: f32[2,1,10], index: 11, kind: output, shape index: {}]
  %s12 = sld [smem:[#allocation0]]
  $region77: #{net_forward.1} parent=0
    _
  %s14 = ssub.s32 1, %s12
  %s15 = scalar_select 0, %s14, %s12
  $region1: #{net_forward.1} parent=0
    #allocation5 [shape = 'u8[1024]{0}', space=vmem, size = 0x400, scoped, tag = 'output window, operand 0']
    #allocation6 [shape = 's32[2]{0}', space=sflag, size = 0x8, scoped, tag = 'scoped memory for net_forward.1']
    %16 = vsyncpa [#allocation6], 0
    %s17 = scalar_lea.sflag [#allocation6], 1
    %18 = vsyncpa %s17, 0
    loop: start=0, step=1, limit=4
    $region2: #{net_forward.1} parent=1 // loop_pre_header
      _
    $region3: #{net_forward.1} parent=1 // loop_header
      %s20 = sphi 0, %s24
      %p21 = scmp.ge.s32.totalorder %s20, 4
      %s30 = sphi 0, %s32
      %s33 = sphi 0, %s30
      %s34 = sphi 0, %s33
      %s50 = sphi 0, %s34
      %s54 = sphi 0, %s54
      %s56 = sphi 0, %s54
      %s57 = sphi 0, %s56
      %s71 = sphi 0, %s57
      %s75 = sphi 0, %s75
      %s77 = sphi 0, %s75
      %s78 = sphi 0, %s77
      %s92 = sphi 0, %s78
      %s96 = sphi 0, %s96
      %s98 = sphi 0, %s96
      %s99 = sphi 0, %s98
      %s113 = sphi 0, %s99
      %s117 = sphi 0, %s117
      %s119 = sphi 0, %s117
      %s120 = sphi 0, %s119
      %s134 = sphi 0, %s120
      %s138 = sphi 0, %s138
      %s140 = sphi 0, %s138
      %s141 = sphi 0, %s140
      %s155 = sphi 0, %s141
      %s159 = sphi 0, %s159
      %s161 = sphi 0, %s159
      %s162 = sphi 0, %s161
      %s176 = sphi 0, %s162
      %s180 = sphi 0, %s180
      %s182 = sphi 0, %s180
      %s183 = sphi 0, %s182
      %s197 = sphi 0, %s183
      %s201 = sphi 0, %s201
      %s203 = sphi 0, %s201
      %s204 = sphi 0, %s203
      %s218 = sphi 0, %s204
      %s222 = sphi 0, %s222
      %s224 = sphi 0, %s222
      %s225 = sphi 0, %s224
      %s239 = sphi 0, %s225
      %s243 = sphi 0, %s243
      %s245 = sphi 0, %s243
      %s246 = sphi 0, %s245
      %s260 = sphi 0, %s246
      %s266 = sphi 0, %s268
      %s269 = sphi 0, %s266
      %s270 = sphi 0, %s269
      %s286 = sphi 0, %s270
    $region4: #{net_forward.1} parent=1 // loop_header_branch
      %23 = sbr.rel (%p21) target = $region8
    $region5: #{net_forward.1} parent=1 // loop_body
      %s25 = ssub.s32 %s20, 1
      %s26 = ssub.s32 %s20, 2
      %s27 = sadd.s32 %s20, 1
      %s28 = ssub.s32 %s20, %s27
      %p29 = scmp.eq.s32.totalorder %s28, 0
      %s31 = sadd.s32 %s30, 1
      %s32 = scalar_select %p29, %s30, %s31
      %p35 = pneg %p29
      %p36 = scmp.eq.s32.totalorder %s20, 1
      %p37 = por %p35, %p36
      %p38 = scmp.ne.s32.totalorder %s30, %s33
      %p39 = scmp.eq.s32.totalorder %s20, 0
      %p40 = por %p38, %p39
      %p41 = scmp.ne.s32.totalorder %s30, %s33
      %p42 = scmp.eq.s32.totalorder %s25, 1
      %p43 = por %p41, %p42
      %p44 = scmp.ne.s32.totalorder %s33, %s34
      %p45 = scmp.eq.s32.totalorder %s25, 0
      %p46 = por %p44, %p45
      %p47 = scmp.ne.s32.totalorder %s33, %s34
      %p48 = scmp.eq.s32.totalorder %s26, 1
      %p49 = por %p47, %p48
      %p51 = scmp.ne.s32.totalorder %s34, %s50
      %p52 = scmp.eq.s32.totalorder %s26, 0
      %p53 = por %p51, %p52
      %s55 = sadd.s32 %s54, 1
      %p58 = scmp.eq.s32.totalorder %s20, 1
      %p59 = scmp.ne.s32.totalorder %s54, %s56
      %p60 = scmp.eq.s32.totalorder %s20, 0
      %p61 = por %p59, %p60
      %p62 = scmp.ne.s32.totalorder %s54, %s56
      %p63 = scmp.eq.s32.totalorder %s25, 1
      %p64 = por %p62, %p63
      %p65 = scmp.ne.s32.totalorder %s56, %s57
      %p66 = scmp.eq.s32.totalorder %s25, 0
      %p67 = por %p65, %p66
      %p68 = scmp.ne.s32.totalorder %s56, %s57
      %p69 = scmp.eq.s32.totalorder %s26, 1
      %p70 = por %p68, %p69
      %p72 = scmp.ne.s32.totalorder %s57, %s71
      %p73 = scmp.eq.s32.totalorder %s26, 0
      %p74 = por %p72, %p73
      %s76 = sadd.s32 %s75, 1
      %p79 = scmp.eq.s32.totalorder %s20, 1
      %p80 = scmp.ne.s32.totalorder %s75, %s77
      %p81 = scmp.eq.s32.totalorder %s20, 0
      %p82 = por %p80, %p81
      %p83 = scmp.ne.s32.totalorder %s75, %s77
      %p84 = scmp.eq.s32.totalorder %s25, 1
      %p85 = por %p83, %p84
      %p86 = scmp.ne.s32.totalorder %s77, %s78
      %p87 = scmp.eq.s32.totalorder %s25, 0
      %p88 = por %p86, %p87
      %p89 = scmp.ne.s32.totalorder %s77, %s78
      %p90 = scmp.eq.s32.totalorder %s26, 1
      %p91 = por %p89, %p90
      %p93 = scmp.ne.s32.totalorder %s78, %s92
      %p94 = scmp.eq.s32.totalorder %s26, 0
      %p95 = por %p93, %p94
      %s97 = sadd.s32 %s96, 1
      %p100 = scmp.eq.s32.totalorder %s20, 1
      %p101 = scmp.ne.s32.totalorder %s96, %s98
      %p102 = scmp.eq.s32.totalorder %s20, 0
      %p103 = por %p101, %p102
      %p104 = scmp.ne.s32.totalorder %s96, %s98
      %p105 = scmp.eq.s32.totalorder %s25, 1
      %p106 = por %p104, %p105
      %p107 = scmp.ne.s32.totalorder %s98, %s99
      %p108 = scmp.eq.s32.totalorder %s25, 0
      %p109 = por %p107, %p108
      %p110 = scmp.ne.s32.totalorder %s98, %s99
      %p111 = scmp.eq.s32.totalorder %s26, 1
      %p112 = por %p110, %p111
      %p114 = scmp.ne.s32.totalorder %s99, %s113
      %p115 = scmp.eq.s32.totalorder %s26, 0
      %p116 = por %p114, %p115
      %s118 = sadd.s32 %s117, 1
      %p121 = scmp.eq.s32.totalorder %s20, 1
      %p122 = scmp.ne.s32.totalorder %s117, %s119
      %p123 = scmp.eq.s32.totalorder %s20, 0
      %p124 = por %p122, %p123
      %p125 = scmp.ne.s32.totalorder %s117, %s119
      %p126 = scmp.eq.s32.totalorder %s25, 1
      %p127 = por %p125, %p126
      %p128 = scmp.ne.s32.totalorder %s119, %s120
      %p129 = scmp.eq.s32.totalorder %s25, 0
      %p130 = por %p128, %p129
      %p131 = scmp.ne.s32.totalorder %s119, %s120
      %p132 = scmp.eq.s32.totalorder %s26, 1
      %p133 = por %p131, %p132
      %p135 = scmp.ne.s32.totalorder %s120, %s134
      %p136 = scmp.eq.s32.totalorder %s26, 0
      %p137 = por %p135, %p136
      %s139 = sadd.s32 %s138, 1
      %p142 = scmp.eq.s32.totalorder %s20, 1
      %p143 = scmp.ne.s32.totalorder %s138, %s140
      %p144 = scmp.eq.s32.totalorder %s20, 0
      %p145 = por %p143, %p144
      %p146 = scmp.ne.s32.totalorder %s138, %s140
      %p147 = scmp.eq.s32.totalorder %s25, 1
      %p148 = por %p146, %p147
      %p149 = scmp.ne.s32.totalorder %s140, %s141
      %p150 = scmp.eq.s32.totalorder %s25, 0
      %p151 = por %p149, %p150
      %p152 = scmp.ne.s32.totalorder %s140, %s141
      %p153 = scmp.eq.s32.totalorder %s26, 1
      %p154 = por %p152, %p153
      %p156 = scmp.ne.s32.totalorder %s141, %s155
      %p157 = scmp.eq.s32.totalorder %s26, 0
      %p158 = por %p156, %p157
      %s160 = sadd.s32 %s159, 1
      %p163 = scmp.eq.s32.totalorder %s20, 1
      %p164 = scmp.ne.s32.totalorder %s159, %s161
      %p165 = scmp.eq.s32.totalorder %s20, 0
      %p166 = por %p164, %p165
      %p167 = scmp.ne.s32.totalorder %s159, %s161
      %p168 = scmp.eq.s32.totalorder %s25, 1
      %p169 = por %p167, %p168
      %p170 = scmp.ne.s32.totalorder %s161, %s162
      %p171 = scmp.eq.s32.totalorder %s25, 0
      %p172 = por %p170, %p171
      %p173 = scmp.ne.s32.totalorder %s161, %s162
      %p174 = scmp.eq.s32.totalorder %s26, 1
      %p175 = por %p173, %p174
      %p177 = scmp.ne.s32.totalorder %s162, %s176
      %p178 = scmp.eq.s32.totalorder %s26, 0
      %p179 = por %p177, %p178
      %s181 = sadd.s32 %s180, 1
      %p184 = scmp.eq.s32.totalorder %s20, 1
      %p185 = scmp.ne.s32.totalorder %s180, %s182
      %p186 = scmp.eq.s32.totalorder %s20, 0
      %p187 = por %p185, %p186
      %p188 = scmp.ne.s32.totalorder %s180, %s182
      %p189 = scmp.eq.s32.totalorder %s25, 1
      %p190 = por %p188, %p189
      %p191 = scmp.ne.s32.totalorder %s182, %s183
      %p192 = scmp.eq.s32.totalorder %s25, 0
      %p193 = por %p191, %p192
      %p194 = scmp.ne.s32.totalorder %s182, %s183
      %p195 = scmp.eq.s32.totalorder %s26, 1
      %p196 = por %p194, %p195
      %p198 = scmp.ne.s32.totalorder %s183, %s197
      %p199 = scmp.eq.s32.totalorder %s26, 0
      %p200 = por %p198, %p199
      %s202 = sadd.s32 %s201, 1
      %p205 = scmp.eq.s32.totalorder %s20, 1
      %p206 = scmp.ne.s32.totalorder %s201, %s203
      %p207 = scmp.eq.s32.totalorder %s20, 0
      %p208 = por %p206, %p207
      %p209 = scmp.ne.s32.totalorder %s201, %s203
      %p210 = scmp.eq.s32.totalorder %s25, 1
      %p211 = por %p209, %p210
      %p212 = scmp.ne.s32.totalorder %s203, %s204
      %p213 = scmp.eq.s32.totalorder %s25, 0
      %p214 = por %p212, %p213
      %p215 = scmp.ne.s32.totalorder %s203, %s204
      %p216 = scmp.eq.s32.totalorder %s26, 1
      %p217 = por %p215, %p216
      %p219 = scmp.ne.s32.totalorder %s204, %s218
      %p220 = scmp.eq.s32.totalorder %s26, 0
      %p221 = por %p219, %p220
      %s223 = sadd.s32 %s222, 1
      %p226 = scmp.eq.s32.totalorder %s20, 1
      %p227 = scmp.ne.s32.totalorder %s222, %s224
      %p228 = scmp.eq.s32.totalorder %s20, 0
      %p229 = por %p227, %p228
      %p230 = scmp.ne.s32.totalorder %s222, %s224
      %p231 = scmp.eq.s32.totalorder %s25, 1
      %p232 = por %p230, %p231
      %p233 = scmp.ne.s32.totalorder %s224, %s225
      %p234 = scmp.eq.s32.totalorder %s25, 0
      %p235 = por %p233, %p234
      %p236 = scmp.ne.s32.totalorder %s224, %s225
      %p237 = scmp.eq.s32.totalorder %s26, 1
      %p238 = por %p236, %p237
      %p240 = scmp.ne.s32.totalorder %s225, %s239
      %p241 = scmp.eq.s32.totalorder %s26, 0
      %p242 = por %p240, %p241
      %s244 = sadd.s32 %s243, 1
      %p247 = scmp.eq.s32.totalorder %s20, 1
      %p248 = scmp.ne.s32.totalorder %s243, %s245
      %p249 = scmp.eq.s32.totalorder %s20, 0
      %p250 = por %p248, %p249
      %p251 = scmp.ne.s32.totalorder %s243, %s245
      %p252 = scmp.eq.s32.totalorder %s25, 1
      %p253 = por %p251, %p252
      %p254 = scmp.ne.s32.totalorder %s245, %s246
      %p255 = scmp.eq.s32.totalorder %s25, 0
      %p256 = por %p254, %p255
      %p257 = scmp.ne.s32.totalorder %s245, %s246
      %p258 = scmp.eq.s32.totalorder %s26, 1
      %p259 = por %p257, %p258
      %p261 = scmp.ne.s32.totalorder %s246, %s260
      %p262 = scmp.eq.s32.totalorder %s26, 0
      %p263 = por %p261, %p262
      %s264 = ssub.s32 %s20, %s27
      %p265 = scmp.eq.s32.totalorder %s264, 0
      %s267 = sadd.s32 %s266, 1
      %s268 = scalar_select %p265, %s266, %s267
      %p271 = pneg %p265
      %p272 = scmp.eq.s32.totalorder %s20, 1
      %p273 = por %p271, %p272
      %p274 = scmp.ne.s32.totalorder %s266, %s269
      %p275 = scmp.eq.s32.totalorder %s20, 0
      %p276 = por %p274, %p275
      %p277 = scmp.ne.s32.totalorder %s266, %s269
      %p278 = scmp.eq.s32.totalorder %s25, 1
      %p279 = por %p277, %p278
      %p280 = scmp.ne.s32.totalorder %s269, %s270
      %p281 = scmp.eq.s32.totalorder %s25, 0
      %p282 = por %p280, %p281
      %p283 = scmp.ne.s32.totalorder %s269, %s270
      %p284 = scmp.eq.s32.totalorder %s26, 1
      %p285 = por %p283, %p284
      %p287 = scmp.ne.s32.totalorder %s270, %s286
      %p288 = scmp.eq.s32.totalorder %s26, 0
      %p289 = por %p287, %p288
      %p290 = scmp.le.s32.totalorder 1, %s20
      %p291 = scmp.lt.s32.totalorder %s20, 3
      %p292 = pnand %p290, %p291
      %p293 = pneg %p292
      // Predicated region
      $region9: #{net_forward.1} parent=5 // pred_check
        _
      $region10: #{net_forward.1} parent=5 // pred_check_branch
        %295 = sbr.rel (%p292) target = $region12
      $region11: #{net_forward.1} parent=5 // pred_region
        %s296 = ssub.s32 %s20, 1
        // Predicated region
        $region13: #{net_forward.1} parent=11 // pred_check
          %p297 = pneg %p67
        $region14: #{net_forward.1} parent=11 // pred_check_branch
          %299 = sbr.rel (%p297) target = $region16
        $region15: #{net_forward.1} parent=11 // pred_region
          _
        $region16: #{net_forward.1} parent=11 // pred_fallthru
          _
        // Predicated region
        $region17: #{net_forward.1} parent=11 // pred_check
          %p300 = pneg %p88
        $region18: #{net_forward.1} parent=11 // pred_check_branch
          %302 = sbr.rel (%p300) target = $region20
        $region19: #{net_forward.1} parent=11 // pred_region
          _
        $region20: #{net_forward.1} parent=11 // pred_fallthru
          _
        // Predicated region
        $region21: #{net_forward.1} parent=11 // pred_check
          %p303 = pneg %p109
        $region22: #{net_forward.1} parent=11 // pred_check_branch
          %305 = sbr.rel (%p303) target = $region24
        $region23: #{net_forward.1} parent=11 // pred_region
          _
        $region24: #{net_forward.1} parent=11 // pred_fallthru
          _
        // Predicated region
        $region25: #{net_forward.1} parent=11 // pred_check
          %p306 = pneg %p130
        $region26: #{net_forward.1} parent=11 // pred_check_branch
          %308 = sbr.rel (%p306) target = $region28
        $region27: #{net_forward.1} parent=11 // pred_region
          _
        $region28: #{net_forward.1} parent=11 // pred_fallthru
          _
        // Predicated region
        $region29: #{net_forward.1} parent=11 // pred_check
          %p309 = pneg %p151
        $region30: #{net_forward.1} parent=11 // pred_check_branch
          %311 = sbr.rel (%p309) target = $region32
        $region31: #{net_forward.1} parent=11 // pred_region
          _
        $region32: #{net_forward.1} parent=11 // pred_fallthru
          _
        // Predicated region
        $region33: #{net_forward.1} parent=11 // pred_check
          %p312 = pneg %p172
        $region34: #{net_forward.1} parent=11 // pred_check_branch
          %314 = sbr.rel (%p312) target = $region36
        $region35: #{net_forward.1} parent=11 // pred_region
          _
        $region36: #{net_forward.1} parent=11 // pred_fallthru
          _
        // Predicated region
        $region37: #{net_forward.1} parent=11 // pred_check
          %p315 = pneg %p193
        $region38: #{net_forward.1} parent=11 // pred_check_branch
          %317 = sbr.rel (%p315) target = $region40
        $region39: #{net_forward.1} parent=11 // pred_region
          _
        $region40: #{net_forward.1} parent=11 // pred_fallthru
          _
        // Predicated region
        $region41: #{net_forward.1} parent=11 // pred_check
          %p318 = pneg %p214
        $region42: #{net_forward.1} parent=11 // pred_check_branch
          %320 = sbr.rel (%p318) target = $region44
        $region43: #{net_forward.1} parent=11 // pred_region
          _
        $region44: #{net_forward.1} parent=11 // pred_fallthru
          _
        // Predicated region
        $region45: #{net_forward.1} parent=11 // pred_check
          %p321 = pneg %p235
        $region46: #{net_forward.1} parent=11 // pred_check_branch
          %323 = sbr.rel (%p321) target = $region48
        $region47: #{net_forward.1} parent=11 // pred_region
          _
        $region48: #{net_forward.1} parent=11 // pred_fallthru
          _
        // Predicated region
        $region49: #{net_forward.1} parent=11 // pred_check
          %p324 = pneg %p256
        $region50: #{net_forward.1} parent=11 // pred_check_branch
          %326 = sbr.rel (%p324) target = $region52
        $region51: #{net_forward.1} parent=11 // pred_region
          _
        $region52: #{net_forward.1} parent=11 // pred_fallthru
          _
      $region12: #{net_forward.1} parent=5 // pred_fallthru
        _
      %p327 = scmp.lt.s32.totalorder %s20, 2
      // Predicated region
      $region53: #{net_forward.1} parent=5 // pred_check
        %p328 = pneg %p327
      $region54: #{net_forward.1} parent=5 // pred_check_branch
        %330 = sbr.rel (%p328) target = $region56
      $region55: #{net_forward.1} parent=5 // pred_region
        // Predicated region
        $region57: #{net_forward.1} parent=55 // pred_check
          %p331 = pneg %p40
        $region58: #{net_forward.1} parent=55 // pred_check_branch
          %333 = sbr.rel (%p331) target = $region60
        $region59: #{net_forward.1} parent=55 // pred_region
          %p334 = scmp.lt.s32.totalorder %s20, 1
          %s335 = scalar_select %p334, %s20, 1
          %s336 = smul.addr %s335, 7
          %s337 = scalar_lea.vmem %s0, %s336
        $region60: #{net_forward.1} parent=55 // pred_fallthru
          _
      $region56: #{net_forward.1} parent=5 // pred_fallthru
        _
      %p338 = scmp.le.s32.totalorder 1, %s20
      %p339 = scmp.lt.s32.totalorder %s20, 3
      %p340 = pnand %p338, %p339
      %p341 = pneg %p340
      // Predicated region
      $region61: #{net_forward.1} parent=5 // pred_check
        _
      $region62: #{net_forward.1} parent=5 // pred_check_branch
        %343 = sbr.rel (%p340) target = $region64
      $region63: #{net_forward.1} parent=5 // pred_region
        %s344 = ssub.s32 %s20, 1
        %p345 = scmp.lt.s32.totalorder %s25, 1
        %s346 = scalar_select %p345, %s25, 1
        %s347 = smul.addr %s346, 7
        %s348 = scalar_lea.vmem %s0, %s347
        %p349 = pneg %p46
        %p350 = pneg %p43
        %p351 = pneg %p67
        %p352 = pneg %p64
        %p353 = pneg %p88
        %p354 = pneg %p85
        %p355 = pneg %p109
        %p356 = pneg %p106
        %p357 = pneg %p130
        %p358 = pneg %p127
        %p359 = pneg %p151
        %p360 = pneg %p148
        %p361 = pneg %p172
        %p362 = pneg %p169
        %p363 = pneg %p193
        %p364 = pneg %p190
        %p365 = pneg %p214
        %p366 = pneg %p211
        %p367 = pneg %p235
        %p368 = pneg %p232
        %p369 = pneg %p256
        %p370 = pneg %p253
        %p371 = pneg %p282
        %p372 = pneg %p279
        %s373 = sand.u32 %s269, 1
        %s374 = scalar_lea.sflag [#allocation6], %s373
        %s375 = sand.u32 %s269, 1
        %s376 = scalar_lea.vmem [#allocation5], %s375
        %p377 = scmp.lt.s32.totalorder %s25, 1
        %s378 = scalar_select %p377, %s25, 1
        %s379 = smul.addr %s378, 7
        %s380 = scalar_lea.vmem %s0, %s379
        %v381 = vld [vmem:[%s380] sm:$0x3f]
        %v382 = vld [vmem:[%s1] sm:$0xff]
        %v383 = vld [vmem:[%s1 + $0x8] sm:$0x3]
        %385 = vset.pattern.permute.xlu0 0
        %386 = vperm.xlu0 %385, %v382
        %v387 = vpop.permute.xlu0 %386
        %390 = vset.pattern.permute.xlu0 0
        %391 = vperm.xlu0 %390, %v383
        %v392 = vpop.permute.xlu0 %391
        %v395 = vperm.slane %v381, 0
        %v396 = vperm.slane %v381, 1
        %v397 = vperm.slane %v381, 2
        %v398 = vperm.slane %v381, 3
        %v399 = vperm.slane %v381, 4
        %v400 = vperm.slane %v381, 5
        %v407 = vmul.f32 %v387, %v395
        %v408 = vmul.f32 %v387, %v396
        %v409 = vmul.f32 %v387, %v397
        %v410 = vmul.f32 %v387, %v398
        %v411 = vmul.f32 %v387, %v399
        %v412 = vmul.f32 %v387, %v400
        %v413 = vmul.f32 %v392, %v395
        %v414 = vmul.f32 %v392, %v396
        %v415 = vmul.f32 %v392, %v397
        %v416 = vmul.f32 %v392, %v398
        %v417 = vmul.f32 %v392, %v399
        %v418 = vmul.f32 %v392, %v400
        %s419 = scalar_lea.vmem %s1, 16
        %v420 = vld [vmem:[%s419] sm:$0xff]
        %v421 = vld [vmem:[%s419 + $0x8] sm:$0x3]
        %423 = vset.pattern.permute.xlu0 0
        %424 = vperm.xlu0 %423, %v420
        %v425 = vpop.permute.xlu0 %424
        %428 = vset.pattern.permute.xlu0 0
        %429 = vperm.xlu0 %428, %v421
        %v430 = vpop.permute.xlu0 %429
        %v432 = vmul.f32 %v425, %v395
        %v433 = vmul.f32 %v425, %v396
        %v434 = vmul.f32 %v425, %v397
        %v435 = vmul.f32 %v425, %v398
        %v436 = vmul.f32 %v425, %v399
        %v437 = vmul.f32 %v425, %v400
        %v438 = vmul.f32 %v430, %v395
        %v439 = vmul.f32 %v430, %v396
        %v440 = vmul.f32 %v430, %v397
        %v441 = vmul.f32 %v430, %v398
        %v442 = vmul.f32 %v430, %v399
        %v443 = vmul.f32 %v430, %v400
        %456 = vrot.lane.b32.xlu0 %v432, 127
        %v457 = vpop.permute.xlu0 %456
        %458 = vrot.lane.b32.xlu0 %v433, 127
        %v459 = vpop.permute.xlu0 %458
        %460 = vrot.lane.b32.xlu0 %v434, 127
        %v461 = vpop.permute.xlu0 %460
        %462 = vrot.lane.b32.xlu0 %v435, 127
        %v463 = vpop.permute.xlu0 %462
        %464 = vrot.lane.b32.xlu0 %v436, 127
        %v465 = vpop.permute.xlu0 %464
        %466 = vrot.lane.b32.xlu0 %v437, 127
        %v467 = vpop.permute.xlu0 %466
        %468 = vrot.lane.b32.xlu0 %v438, 127
        %v469 = vpop.permute.xlu0 %468
        %470 = vrot.lane.b32.xlu0 %v439, 127
        %v471 = vpop.permute.xlu0 %470
        %472 = vrot.lane.b32.xlu0 %v440, 127
        %v473 = vpop.permute.xlu0 %472
        %474 = vrot.lane.b32.xlu0 %v441, 127
        %v475 = vpop.permute.xlu0 %474
        %476 = vrot.lane.b32.xlu0 %v442, 127
        %v477 = vpop.permute.xlu0 %476
        %478 = vrot.lane.b32.xlu0 %v443, 127
        %v479 = vpop.permute.xlu0 %478
        %vm480 = vcmask 1039360
        %v481 = vsel %vm480, %v457, %v459
        %v482 = vsel %vm480, %v459, %v461
        %v483 = vsel %vm480, %v461, %v463
        %v484 = vsel %vm480, %v463, %v465
        %v485 = vsel %vm480, %v465, %v467
        %v486 = vsel %vm480, %v469, %v471
        %v487 = vsel %vm480, %v471, %v473
        %v488 = vsel %vm480, %v473, %v475
        %v489 = vsel %vm480, %v475, %v477
        %v490 = vsel %vm480, %v477, %v479
        %v503 = vadd.f32 %v407, %v481
        %v504 = vadd.f32 %v408, %v482
        %v505 = vadd.f32 %v409, %v483
        %v506 = vadd.f32 %v410, %v484
        %v507 = vadd.f32 %v411, %v485
        %v508 = vadd.f32 %v412, %v467
        %v509 = vadd.f32 %v413, %v486
        %v510 = vadd.f32 %v414, %v487
        %v511 = vadd.f32 %v415, %v488
        %v512 = vadd.f32 %v416, %v489
        %v513 = vadd.f32 %v417, %v490
        %v514 = vadd.f32 %v418, %v479
        %s515 = scalar_lea.vmem %s1, 32
        %v516 = vld [vmem:[%s515] sm:$0xff]
        %v517 = vld [vmem:[%s515 + $0x8] sm:$0x3]
        %519 = vset.pattern.permute.xlu0 0
        %520 = vperm.xlu0 %519, %v516
        %v521 = vpop.permute.xlu0 %520
        %524 = vset.pattern.permute.xlu0 0
        %525 = vperm.xlu0 %524, %v517
        %v526 = vpop.permute.xlu0 %525
        %v528 = vmul.f32 %v521, %v395
        %v529 = vmul.f32 %v521, %v396
        %v530 = vmul.f32 %v521, %v397
        %v531 = vmul.f32 %v521, %v398
        %v532 = vmul.f32 %v521, %v399
        %v533 = vmul.f32 %v521, %v400
        %v534 = vmul.f32 %v526, %v395
        %v535 = vmul.f32 %v526, %v396
        %v536 = vmul.f32 %v526, %v397
        %v537 = vmul.f32 %v526, %v398
        %v538 = vmul.f32 %v526, %v399
        %v539 = vmul.f32 %v526, %v400
        %552 = vrot.lane.b32.xlu0 %v528, 126
        %v553 = vpop.permute.xlu0 %552
        %554 = vrot.lane.b32.xlu0 %v529, 126
        %v555 = vpop.permute.xlu0 %554
        %556 = vrot.lane.b32.xlu0 %v530, 126
        %v557 = vpop.permute.xlu0 %556
        %558 = vrot.lane.b32.xlu0 %v531, 126
        %v559 = vpop.permute.xlu0 %558
        %560 = vrot.lane.b32.xlu0 %v532, 126
        %v561 = vpop.permute.xlu0 %560
        %562 = vrot.lane.b32.xlu0 %v533, 126
        %v563 = vpop.permute.xlu0 %562
        %564 = vrot.lane.b32.xlu0 %v534, 126
        %v565 = vpop.permute.xlu0 %564
        %566 = vrot.lane.b32.xlu0 %v535, 126
        %v567 = vpop.permute.xlu0 %566
        %568 = vrot.lane.b32.xlu0 %v536, 126
        %v569 = vpop.permute.xlu0 %568
        %570 = vrot.lane.b32.xlu0 %v537, 126
        %v571 = vpop.permute.xlu0 %570
        %572 = vrot.lane.b32.xlu0 %v538, 126
        %v573 = vpop.permute.xlu0 %572
        %574 = vrot.lane.b32.xlu0 %v539, 126
        %v575 = vpop.permute.xlu0 %574
        %vm576 = vcmask 1031168
        %v577 = vsel %vm576, %v553, %v555
        %v578 = vsel %vm576, %v555, %v557
        %v579 = vsel %vm576, %v557, %v559
        %v580 = vsel %vm576, %v559, %v561
        %v581 = vsel %vm576, %v561, %v563
        %v582 = vsel %vm576, %v565, %v567
        %v583 = vsel %vm576, %v567, %v569
        %v584 = vsel %vm576, %v569, %v571
        %v585 = vsel %vm576, %v571, %v573
        %v586 = vsel %vm576, %v573, %v575
        %v599 = vadd.f32 %v503, %v577
        %v600 = vadd.f32 %v504, %v578
        %v601 = vadd.f32 %v505, %v579
        %v602 = vadd.f32 %v506, %v580
        %v603 = vadd.f32 %v507, %v581
        %v604 = vadd.f32 %v508, %v563
        %v605 = vadd.f32 %v509, %v582
        %v606 = vadd.f32 %v510, %v583
        %v607 = vadd.f32 %v511, %v584
        %v608 = vadd.f32 %v512, %v585
        %v609 = vadd.f32 %v513, %v586
        %v610 = vadd.f32 %v514, %v575
        %s611 = scalar_lea.vmem %s1, 48
        %v612 = vld [vmem:[%s611] sm:$0xff]
        %v613 = vld [vmem:[%s611 + $0x8] sm:$0x3]
        %615 = vset.pattern.permute.xlu0 0
        %616 = vperm.xlu0 %615, %v612
        %v617 = vpop.permute.xlu0 %616
        %620 = vset.pattern.permute.xlu0 0
        %621 = vperm.xlu0 %620, %v613
        %v622 = vpop.permute.xlu0 %621
        %v624 = vmul.f32 %v617, %v395
        %v625 = vmul.f32 %v617, %v396
        %v626 = vmul.f32 %v617, %v397
        %v627 = vmul.f32 %v617, %v398
        %v628 = vmul.f32 %v617, %v399
        %v629 = vmul.f32 %v617, %v400
        %v630 = vmul.f32 %v622, %v395
        %v631 = vmul.f32 %v622, %v396
        %v632 = vmul.f32 %v622, %v397
        %v633 = vmul.f32 %v622, %v398
        %v634 = vmul.f32 %v622, %v399
        %v635 = vmul.f32 %v622, %v400
        %648 = vrot.lane.b32.xlu0 %v624, 100
        %v649 = vpop.permute.xlu0 %648
        %650 = vrot.lane.b32.xlu0 %v625, 100
        %v651 = vpop.permute.xlu0 %650
        %652 = vrot.lane.b32.xlu0 %v626, 100
        %v653 = vpop.permute.xlu0 %652
        %654 = vrot.lane.b32.xlu0 %v627, 100
        %v655 = vpop.permute.xlu0 %654
        %656 = vrot.lane.b32.xlu0 %v628, 100
        %v657 = vpop.permute.xlu0 %656
        %658 = vrot.lane.b32.xlu0 %v629, 100
        %v659 = vpop.permute.xlu0 %658
        %660 = vrot.lane.b32.xlu0 %v630, 100
        %v661 = vpop.permute.xlu0 %660
        %662 = vrot.lane.b32.xlu0 %v631, 100
        %v663 = vpop.permute.xlu0 %662
        %664 = vrot.lane.b32.xlu0 %v632, 100
        %v665 = vpop.permute.xlu0 %664
        %666 = vrot.lane.b32.xlu0 %v633, 100
        %v667 = vpop.permute.xlu0 %666
        %668 = vrot.lane.b32.xlu0 %v634, 100
        %v669 = vpop.permute.xlu0 %668
        %670 = vrot.lane.b32.xlu0 %v635, 100
        %v671 = vpop.permute.xlu0 %670
        %vm672 = vcmask 818176
        %v673 = vsel %vm672, %v649, %v651
        %v674 = vsel %vm672, %v651, %v653
        %v675 = vsel %vm672, %v653, %v655
        %v676 = vsel %vm672, %v655, %v657
        %v677 = vsel %vm672, %v657, %v659
        %v678 = vsel %vm672, %v661, %v663
        %v679 = vsel %vm672, %v663, %v665
        %v680 = vsel %vm672, %v665, %v667
        %v681 = vsel %vm672, %v667, %v669
        %v682 = vsel %vm672, %v669, %v671
        %v695 = vadd.f32 %v599, %v673
        %v696 = vadd.f32 %v600, %v674
        %v697 = vadd.f32 %v601, %v675
        %v698 = vadd.f32 %v602, %v676
        %v699 = vadd.f32 %v603, %v677
        %v700 = vadd.f32 %v604, %v659
        %v701 = vadd.f32 %v605, %v678
        %v702 = vadd.f32 %v606, %v679
        %v703 = vadd.f32 %v607, %v680
        %v704 = vadd.f32 %v608, %v681
        %v705 = vadd.f32 %v609, %v682
        %v706 = vadd.f32 %v610, %v671
        %s707 = scalar_lea.vmem %s1, 64
        %v708 = vld [vmem:[%s707] sm:$0xff]
        %v709 = vld [vmem:[%s707 + $0x8] sm:$0x3]
        %711 = vset.pattern.permute.xlu0 0
        %712 = vperm.xlu0 %711, %v708
        %v713 = vpop.permute.xlu0 %712
        %716 = vset.pattern.permute.xlu0 0
        %717 = vperm.xlu0 %716, %v709
        %v718 = vpop.permute.xlu0 %717
        %v720 = vmul.f32 %v713, %v395
        %v721 = vmul.f32 %v713, %v396
        %v722 = vmul.f32 %v713, %v397
        %v723 = vmul.f32 %v713, %v398
        %v724 = vmul.f32 %v713, %v399
        %v725 = vmul.f32 %v713, %v400
        %v726 = vmul.f32 %v718, %v395
        %v727 = vmul.f32 %v718, %v396
        %v728 = vmul.f32 %v718, %v397
        %v729 = vmul.f32 %v718, %v398
        %v730 = vmul.f32 %v718, %v399
        %v731 = vmul.f32 %v718, %v400
        %744 = vrot.lane.b32.xlu0 %v720, 99
        %v745 = vpop.permute.xlu0 %744
        %746 = vrot.lane.b32.xlu0 %v721, 99
        %v747 = vpop.permute.xlu0 %746
        %748 = vrot.lane.b32.xlu0 %v722, 99
        %v749 = vpop.permute.xlu0 %748
        %750 = vrot.lane.b32.xlu0 %v723, 99
        %v751 = vpop.permute.xlu0 %750
        %752 = vrot.lane.b32.xlu0 %v724, 99
        %v753 = vpop.permute.xlu0 %752
        %754 = vrot.lane.b32.xlu0 %v725, 99
        %v755 = vpop.permute.xlu0 %754
        %756 = vrot.lane.b32.xlu0 %v726, 99
        %v757 = vpop.permute.xlu0 %756
        %758 = vrot.lane.b32.xlu0 %v727, 99
        %v759 = vpop.permute.xlu0 %758
        %760 = vrot.lane.b32.xlu0 %v728, 99
        %v761 = vpop.permute.xlu0 %760
        %762 = vrot.lane.b32.xlu0 %v729, 99
        %v763 = vpop.permute.xlu0 %762
        %764 = vrot.lane.b32.xlu0 %v730, 99
        %v765 = vpop.permute.xlu0 %764
        %766 = vrot.lane.b32.xlu0 %v731, 99
        %v767 = vpop.permute.xlu0 %766
        %vm768 = vcmask 809984
        %v769 = vsel %vm768, %v745, %v747
        %v770 = vsel %vm768, %v747, %v749
        %v771 = vsel %vm768, %v749, %v751
        %v772 = vsel %vm768, %v751, %v753
        %v773 = vsel %vm768, %v753, %v755
        %v774 = vsel %vm768, %v757, %v759
        %v775 = vsel %vm768, %v759, %v761
        %v776 = vsel %vm768, %v761, %v763
        %v777 = vsel %vm768, %v763, %v765
        %v778 = vsel %vm768, %v765, %v767
        %v791 = vadd.f32 %v695, %v769
        %v792 = vadd.f32 %v696, %v770
        %v793 = vadd.f32 %v697, %v771
        %v794 = vadd.f32 %v698, %v772
        %v795 = vadd.f32 %v699, %v773
        %v796 = vadd.f32 %v700, %v755
        %v797 = vadd.f32 %v701, %v774
        %v798 = vadd.f32 %v702, %v775
        %v799 = vadd.f32 %v703, %v776
        %v800 = vadd.f32 %v704, %v777
        %v801 = vadd.f32 %v705, %v778
        %v802 = vadd.f32 %v706, %v767
        %s803 = scalar_lea.vmem %s1, 80
        %v804 = vld [vmem:[%s803] sm:$0xff]
        %v805 = vld [vmem:[%s803 + $0x8] sm:$0x3]
        %807 = vset.pattern.permute.xlu0 0
        %808 = vperm.xlu0 %807, %v804
        %v809 = vpop.permute.xlu0 %808
        %812 = vset.pattern.permute.xlu0 0
        %813 = vperm.xlu0 %812, %v805
        %v814 = vpop.permute.xlu0 %813
        %v816 = vmul.f32 %v809, %v395
        %v817 = vmul.f32 %v809, %v396
        %v818 = vmul.f32 %v809, %v397
        %v819 = vmul.f32 %v809, %v398
        %v820 = vmul.f32 %v809, %v399
        %v821 = vmul.f32 %v809, %v400
        %v822 = vmul.f32 %v814, %v395
        %v823 = vmul.f32 %v814, %v396
        %v824 = vmul.f32 %v814, %v397
        %v825 = vmul.f32 %v814, %v398
        %v826 = vmul.f32 %v814, %v399
        %v827 = vmul.f32 %v814, %v400
        %840 = vrot.lane.b32.xlu0 %v816, 98
        %v841 = vpop.permute.xlu0 %840
        %842 = vrot.lane.b32.xlu0 %v817, 98
        %v843 = vpop.permute.xlu0 %842
        %844 = vrot.lane.b32.xlu0 %v818, 98
        %v845 = vpop.permute.xlu0 %844
        %846 = vrot.lane.b32.xlu0 %v819, 98
        %v847 = vpop.permute.xlu0 %846
        %848 = vrot.lane.b32.xlu0 %v820, 98
        %v849 = vpop.permute.xlu0 %848
        %850 = vrot.lane.b32.xlu0 %v821, 98
        %v851 = vpop.permute.xlu0 %850
        %852 = vrot.lane.b32.xlu0 %v822, 98
        %v853 = vpop.permute.xlu0 %852
        %854 = vrot.lane.b32.xlu0 %v823, 98
        %v855 = vpop.permute.xlu0 %854
        %856 = vrot.lane.b32.xlu0 %v824, 98
        %v857 = vpop.permute.xlu0 %856
        %858 = vrot.lane.b32.xlu0 %v825, 98
        %v859 = vpop.permute.xlu0 %858
        %860 = vrot.lane.b32.xlu0 %v826, 98
        %v861 = vpop.permute.xlu0 %860
        %862 = vrot.lane.b32.xlu0 %v827, 98
        %v863 = vpop.permute.xlu0 %862
        %vm864 = vcmask 801792
        %v865 = vsel %vm864, %v841, %v843
        %v866 = vsel %vm864, %v843, %v845
        %v867 = vsel %vm864, %v845, %v847
        %v868 = vsel %vm864, %v847, %v849
        %v869 = vsel %vm864, %v849, %v851
        %v870 = vsel %vm864, %v853, %v855
        %v871 = vsel %vm864, %v855, %v857
        %v872 = vsel %vm864, %v857, %v859
        %v873 = vsel %vm864, %v859, %v861
        %v874 = vsel %vm864, %v861, %v863
        %v887 = vadd.f32 %v791, %v865
        %v888 = vadd.f32 %v792, %v866
        %v889 = vadd.f32 %v793, %v867
        %v890 = vadd.f32 %v794, %v868
        %v891 = vadd.f32 %v795, %v869
        %v892 = vadd.f32 %v796, %v851
        %v893 = vadd.f32 %v797, %v870
        %v894 = vadd.f32 %v798, %v871
        %v895 = vadd.f32 %v799, %v872
        %v896 = vadd.f32 %v800, %v873
        %v897 = vadd.f32 %v801, %v874
        %v898 = vadd.f32 %v802, %v863
        %v899 = vld [vmem:[%s380] sm:$0x7f]
        %s900 = scalar_lea.vmem %s1, 96
        %v901 = vld [vmem:[%s900] sm:$0xff]
        %v902 = vld [vmem:[%s900 + $0x8] sm:$0x3]
        %904 = vset.pattern.permute.xlu0 0
        %905 = vperm.xlu0 %904, %v901
        %v906 = vpop.permute.xlu0 %905
        %909 = vset.pattern.permute.xlu0 0
        %910 = vperm.xlu0 %909, %v902
        %v911 = vpop.permute.xlu0 %910
        %v914 = vperm.slane %v899, 0
        %v915 = vperm.slane %v899, 1
        %v916 = vperm.slane %v899, 2
        %v917 = vperm.slane %v899, 3
        %v918 = vperm.slane %v899, 4
        %v919 = vperm.slane %v899, 5
        %v920 = vperm.slane %v899, 6
        %v928 = vmul.f32 %v906, %v914
        %v929 = vmul.f32 %v906, %v915
        %v930 = vmul.f32 %v906, %v916
        %v931 = vmul.f32 %v906, %v917
        %v932 = vmul.f32 %v906, %v918
        %v933 = vmul.f32 %v906, %v919
        %v934 = vmul.f32 %v906, %v920
        %v935 = vmul.f32 %v911, %v914
        %v936 = vmul.f32 %v911, %v915
        %v937 = vmul.f32 %v911, %v916
        %v938 = vmul.f32 %v911, %v917
        %v939 = vmul.f32 %v911, %v918
        %v940 = vmul.f32 %v911, %v919
        %v941 = vmul.f32 %v911, %v920
        %956 = vrot.lane.b32.xlu0 %v928, 72
        %v957 = vpop.permute.xlu0 %956
        %958 = vrot.lane.b32.xlu0 %v929, 72
        %v959 = vpop.permute.xlu0 %958
        %960 = vrot.lane.b32.xlu0 %v930, 72
        %v961 = vpop.permute.xlu0 %960
        %962 = vrot.lane.b32.xlu0 %v931, 72
        %v963 = vpop.permute.xlu0 %962
        %964 = vrot.lane.b32.xlu0 %v932, 72
        %v965 = vpop.permute.xlu0 %964
        %966 = vrot.lane.b32.xlu0 %v933, 72
        %v967 = vpop.permute.xlu0 %966
        %968 = vrot.lane.b32.xlu0 %v934, 72
        %v969 = vpop.permute.xlu0 %968
        %970 = vrot.lane.b32.xlu0 %v935, 72
        %v971 = vpop.permute.xlu0 %970
        %972 = vrot.lane.b32.xlu0 %v936, 72
        %v973 = vpop.permute.xlu0 %972
        %974 = vrot.lane.b32.xlu0 %v937, 72
        %v975 = vpop.permute.xlu0 %974
        %976 = vrot.lane.b32.xlu0 %v938, 72
        %v977 = vpop.permute.xlu0 %976
        %978 = vrot.lane.b32.xlu0 %v939, 72
        %v979 = vpop.permute.xlu0 %978
        %980 = vrot.lane.b32.xlu0 %v940, 72
        %v981 = vpop.permute.xlu0 %980
        %982 = vrot.lane.b32.xlu0 %v941, 72
        %v983 = vpop.permute.xlu0 %982
        %vm984 = vcmask 588800
        %v985 = vsel %vm984, %v957, %v959
        %v986 = vsel %vm984, %v959, %v961
        %v987 = vsel %vm984, %v961, %v963
        %v988 = vsel %vm984, %v963, %v965
        %v989 = vsel %vm984, %v965, %v967
        %v990 = vsel %vm984, %v967, %v969
        %v991 = vsel %vm984, %v971, %v973
        %v992 = vsel %vm984, %v973, %v975
        %v993 = vsel %vm984, %v975, %v977
        %v994 = vsel %vm984, %v977, %v979
        %v995 = vsel %vm984, %v979, %v981
        %v996 = vsel %vm984, %v981, %v983
        %v1009 = vadd.f32 %v887, %v985
        %v1010 = vadd.f32 %v888, %v986
        %v1011 = vadd.f32 %v889, %v987
        %v1012 = vadd.f32 %v890, %v988
        %v1013 = vadd.f32 %v891, %v989
        %v1014 = vadd.f32 %v892, %v990
        %v1015 = vadd.f32 %v893, %v991
        %v1016 = vadd.f32 %v894, %v992
        %v1017 = vadd.f32 %v895, %v993
        %v1018 = vadd.f32 %v896, %v994
        %v1019 = vadd.f32 %v897, %v995
        %v1020 = vadd.f32 %v898, %v996
        %s1021 = scalar_lea.vmem %s1, 112
        %v1022 = vld [vmem:[%s1021] sm:$0xff]
        %v1023 = vld [vmem:[%s1021 + $0x8] sm:$0x3]
        %1025 = vset.pattern.permute.xlu0 0
        %1026 = vperm.xlu0 %1025, %v1022
        %v1027 = vpop.permute.xlu0 %1026
        %1030 = vset.pattern.permute.xlu0 0
        %1031 = vperm.xlu0 %1030, %v1023
        %v1032 = vpop.permute.xlu0 %1031
        %v1034 = vmul.f32 %v1027, %v914
        %v1035 = vmul.f32 %v1027, %v915
        %v1036 = vmul.f32 %v1027, %v916
        %v1037 = vmul.f32 %v1027, %v917
        %v1038 = vmul.f32 %v1027, %v918
        %v1039 = vmul.f32 %v1027, %v919
        %v1040 = vmul.f32 %v1027, %v920
        %v1041 = vmul.f32 %v1032, %v914
        %v1042 = vmul.f32 %v1032, %v915
        %v1043 = vmul.f32 %v1032, %v916
        %v1044 = vmul.f32 %v1032, %v917
        %v1045 = vmul.f32 %v1032, %v918
        %v1046 = vmul.f32 %v1032, %v919
        %v1047 = vmul.f32 %v1032, %v920
        %1062 = vrot.lane.b32.xlu0 %v1034, 71
        %v1063 = vpop.permute.xlu0 %1062
        %1064 = vrot.lane.b32.xlu0 %v1035, 71
        %v1065 = vpop.permute.xlu0 %1064
        %1066 = vrot.lane.b32.xlu0 %v1036, 71
        %v1067 = vpop.permute.xlu0 %1066
        %1068 = vrot.lane.b32.xlu0 %v1037, 71
        %v1069 = vpop.permute.xlu0 %1068
        %1070 = vrot.lane.b32.xlu0 %v1038, 71
        %v1071 = vpop.permute.xlu0 %1070
        %1072 = vrot.lane.b32.xlu0 %v1039, 71
        %v1073 = vpop.permute.xlu0 %1072
        %1074 = vrot.lane.b32.xlu0 %v1040, 71
        %v1075 = vpop.permute.xlu0 %1074
        %1076 = vrot.lane.b32.xlu0 %v1041, 71
        %v1077 = vpop.permute.xlu0 %1076
        %1078 = vrot.lane.b32.xlu0 %v1042, 71
        %v1079 = vpop.permute.xlu0 %1078
        %1080 = vrot.lane.b32.xlu0 %v1043, 71
        %v1081 = vpop.permute.xlu0 %1080
        %1082 = vrot.lane.b32.xlu0 %v1044, 71
        %v1083 = vpop.permute.xlu0 %1082
        %1084 = vrot.lane.b32.xlu0 %v1045, 71
        %v1085 = vpop.permute.xlu0 %1084
        %1086 = vrot.lane.b32.xlu0 %v1046, 71
        %v1087 = vpop.permute.xlu0 %1086
        %1088 = vrot.lane.b32.xlu0 %v1047, 71
        %v1089 = vpop.permute.xlu0 %1088
        %vm1090 = vcmask 580608
        %v1091 = vsel %vm1090, %v1063, %v1065
        %v1092 = vsel %vm1090, %v1065, %v1067
        %v1093 = vsel %vm1090, %v1067, %v1069
        %v1094 = vsel %vm1090, %v1069, %v1071
        %v1095 = vsel %vm1090, %v1071, %v1073
        %v1096 = vsel %vm1090, %v1073, %v1075
        %v1097 = vsel %vm1090, %v1077, %v1079
        %v1098 = vsel %vm1090, %v1079, %v1081
        %v1099 = vsel %vm1090, %v1081, %v1083
        %v1100 = vsel %vm1090, %v1083, %v1085
        %v1101 = vsel %vm1090, %v1085, %v1087
        %v1102 = vsel %vm1090, %v1087, %v1089
        %v1115 = vadd.f32 %v1009, %v1091
        %v1116 = vadd.f32 %v1010, %v1092
        %v1117 = vadd.f32 %v1011, %v1093
        %v1118 = vadd.f32 %v1012, %v1094
        %v1119 = vadd.f32 %v1013, %v1095
        %v1120 = vadd.f32 %v1014, %v1096
        %v1121 = vadd.f32 %v1015, %v1097
        %v1122 = vadd.f32 %v1016, %v1098
        %v1123 = vadd.f32 %v1017, %v1099
        %v1124 = vadd.f32 %v1018, %v1100
        %v1125 = vadd.f32 %v1019, %v1101
        %v1126 = vadd.f32 %v1020, %v1102
        %s1127 = scalar_lea.vmem %s1, 128
        %v1128 = vld [vmem:[%s1127] sm:$0xff]
        %v1129 = vld [vmem:[%s1127 + $0x8] sm:$0x3]
        %1131 = vset.pattern.permute.xlu0 0
        %1132 = vperm.xlu0 %1131, %v1128
        %v1133 = vpop.permute.xlu0 %1132
        %1136 = vset.pattern.permute.xlu0 0
        %1137 = vperm.xlu0 %1136, %v1129
        %v1138 = vpop.permute.xlu0 %1137
        %v1140 = vmul.f32 %v1133, %v914
        %v1141 = vmul.f32 %v1133, %v915
        %v1142 = vmul.f32 %v1133, %v916
        %v1143 = vmul.f32 %v1133, %v917
        %v1144 = vmul.f32 %v1133, %v918
        %v1145 = vmul.f32 %v1133, %v919
        %v1146 = vmul.f32 %v1133, %v920
        %v1147 = vmul.f32 %v1138, %v914
        %v1148 = vmul.f32 %v1138, %v915
        %v1149 = vmul.f32 %v1138, %v916
        %v1150 = vmul.f32 %v1138, %v917
        %v1151 = vmul.f32 %v1138, %v918
        %v1152 = vmul.f32 %v1138, %v919
        %v1153 = vmul.f32 %v1138, %v920
        %1168 = vrot.lane.b32.xlu0 %v1140, 70
        %v1169 = vpop.permute.xlu0 %1168
        %1170 = vrot.lane.b32.xlu0 %v1141, 70
        %v1171 = vpop.permute.xlu0 %1170
        %1172 = vrot.lane.b32.xlu0 %v1142, 70
        %v1173 = vpop.permute.xlu0 %1172
        %1174 = vrot.lane.b32.xlu0 %v1143, 70
        %v1175 = vpop.permute.xlu0 %1174
        %1176 = vrot.lane.b32.xlu0 %v1144, 70
        %v1177 = vpop.permute.xlu0 %1176
        %1178 = vrot.lane.b32.xlu0 %v1145, 70
        %v1179 = vpop.permute.xlu0 %1178
        %1180 = vrot.lane.b32.xlu0 %v1146, 70
        %v1181 = vpop.permute.xlu0 %1180
        %1182 = vrot.lane.b32.xlu0 %v1147, 70
        %v1183 = vpop.permute.xlu0 %1182
        %1184 = vrot.lane.b32.xlu0 %v1148, 70
        %v1185 = vpop.permute.xlu0 %1184
        %1186 = vrot.lane.b32.xlu0 %v1149, 70
        %v1187 = vpop.permute.xlu0 %1186
        %1188 = vrot.lane.b32.xlu0 %v1150, 70
        %v1189 = vpop.permute.xlu0 %1188
        %1190 = vrot.lane.b32.xlu0 %v1151, 70
        %v1191 = vpop.permute.xlu0 %1190
        %1192 = vrot.lane.b32.xlu0 %v1152, 70
        %v1193 = vpop.permute.xlu0 %1192
        %1194 = vrot.lane.b32.xlu0 %v1153, 70
        %v1195 = vpop.permute.xlu0 %1194
        %vm1196 = vcmask 572416
        %v1197 = vsel %vm1196, %v1169, %v1171
        %v1198 = vsel %vm1196, %v1171, %v1173
        %v1199 = vsel %vm1196, %v1173, %v1175
        %v1200 = vsel %vm1196, %v1175, %v1177
        %v1201 = vsel %vm1196, %v1177, %v1179
        %v1202 = vsel %vm1196, %v1179, %v1181
        %v1203 = vsel %vm1196, %v1183, %v1185
        %v1204 = vsel %vm1196, %v1185, %v1187
        %v1205 = vsel %vm1196, %v1187, %v1189
        %v1206 = vsel %vm1196, %v1189, %v1191
        %v1207 = vsel %vm1196, %v1191, %v1193
        %v1208 = vsel %vm1196, %v1193, %v1195
        %v1221 = vadd.f32 %v1115, %v1197
        %v1222 = vadd.f32 %v1116, %v1198
        %v1223 = vadd.f32 %v1117, %v1199
        %v1224 = vadd.f32 %v1118, %v1200
        %v1225 = vadd.f32 %v1119, %v1201
        %v1226 = vadd.f32 %v1120, %v1202
        %v1227 = vadd.f32 %v1121, %v1203
        %v1228 = vadd.f32 %v1122, %v1204
        %v1229 = vadd.f32 %v1123, %v1205
        %v1230 = vadd.f32 %v1124, %v1206
        %v1231 = vadd.f32 %v1125, %v1207
        %v1232 = vadd.f32 %v1126, %v1208
        %v1233 = vld [vmem:[%s2] sm:$0xff]
        %v1234 = vld [vmem:[%s2 + $0x8] sm:$0x3]
        %1236 = vset.pattern.permute.xlu0 0
        %1237 = vperm.xlu0 %1236, %v1233
        %v1238 = vpop.permute.xlu0 %1237
        %1241 = vset.pattern.permute.xlu0 0
        %1242 = vperm.xlu0 %1241, %v1234
        %v1243 = vpop.permute.xlu0 %1242
        %v1245 = vadd.f32 %v1221, %v1238
        %v1246 = vadd.f32 %v1222, %v1238
        %v1247 = vadd.f32 %v1223, %v1238
        %v1248 = vadd.f32 %v1224, %v1238
        %v1249 = vadd.f32 %v1225, %v1238
        %v1250 = vadd.f32 %v1226, %v1238
        %v1251 = vadd.f32 %v1227, %v1243
        %v1252 = vadd.f32 %v1228, %v1243
        %v1253 = vadd.f32 %v1229, %v1243
        %v1254 = vadd.f32 %v1230, %v1243
        %v1255 = vadd.f32 %v1231, %v1243
        %v1256 = vadd.f32 %v1232, %v1243
        %v1257 = vmax.f32 %v1245, 0.0
        %v1258 = vmax.f32 %v1246, 0.0
        %v1259 = vmax.f32 %v1247, 0.0
        %v1260 = vmax.f32 %v1248, 0.0
        %v1261 = vmax.f32 %v1249, 0.0
        %v1262 = vmax.f32 %v1250, 0.0
        %v1263 = vmax.f32 %v1251, 0.0
        %v1264 = vmax.f32 %v1252, 0.0
        %v1265 = vmax.f32 %v1253, 0.0
        %v1266 = vmax.f32 %v1254, 0.0
        %v1267 = vmax.f32 %v1255, 0.0
        %v1268 = vmax.f32 %v1256, 0.0
        %1269 = vst [vmem:[#allocation2] sm:$0xff] %v1257
        %1270 = vst [vmem:[#allocation2 + $0x8] sm:$0xff] %v1258
        %1271 = vst [vmem:[#allocation2 + $0x10] sm:$0xff] %v1259
        %1272 = vst [vmem:[#allocation2 + $0x18] sm:$0xff] %v1260
        %1273 = vst [vmem:[#allocation2 + $0x20] sm:$0xff] %v1261
        %vm1274 = vcmask 703488
        %1275 = vst.msk [vmem:[#allocation2 + $0x28] sm:$0xff] %vm1274, %v1262
        %1276 = vst [vmem:[#allocation2 + $0x30] sm:$0x3] %v1263
        %1277 = vst [vmem:[#allocation2 + $0x38] sm:$0x3] %v1264
        %1278 = vst [vmem:[#allocation2 + $0x40] sm:$0x3] %v1265
        %1279 = vst [vmem:[#allocation2 + $0x48] sm:$0x3] %v1266
        %1280 = vst [vmem:[#allocation2 + $0x50] sm:$0x3] %v1267
        %vm1281 = vcmask 697344
        %1282 = vst.msk [vmem:[#allocation2 + $0x58] sm:$0x3] %vm1281, %v1268
        %v1283 = vld [vmem:[#allocation2] sm:$0xff]
        %v1284 = vld [vmem:[#allocation2 + $0x8] sm:$0xff]
        %v1285 = vld [vmem:[#allocation2 + $0x10] sm:$0xff]
        %v1286 = vld [vmem:[#allocation2 + $0x18] sm:$0xff]
        %v1287 = vld [vmem:[#allocation2 + $0x20] sm:$0xff]
        %v1288 = vld [vmem:[#allocation2 + $0x28] sm:$0xff]
        %v1289 = vld [vmem:[#allocation2 + $0x30] sm:$0x3]
        %v1290 = vld [vmem:[#allocation2 + $0x38] sm:$0x3]
        %v1291 = vld [vmem:[#allocation2 + $0x40] sm:$0x3]
        %v1292 = vld [vmem:[#allocation2 + $0x48] sm:$0x3]
        %v1293 = vld [vmem:[#allocation2 + $0x50] sm:$0x3]
        %v1294 = vld [vmem:[#allocation2 + $0x58] sm:$0x3]
        %1307 = vrot.lane.b32.xlu0 %v1283, 127
        %v1308 = vpop.permute.xlu0 %1307
        %1309 = vrot.lane.b32.xlu0 %v1284, 127
        %v1310 = vpop.permute.xlu0 %1309
        %1311 = vrot.lane.b32.xlu0 %v1285, 127
        %v1312 = vpop.permute.xlu0 %1311
        %1313 = vrot.lane.b32.xlu0 %v1286, 127
        %v1314 = vpop.permute.xlu0 %1313
        %1315 = vrot.lane.b32.xlu0 %v1287, 127
        %v1316 = vpop.permute.xlu0 %1315
        %1317 = vrot.lane.b32.xlu0 %v1288, 127
        %v1318 = vpop.permute.xlu0 %1317
        %1319 = vrot.lane.b32.xlu0 %v1289, 127
        %v1320 = vpop.permute.xlu0 %1319
        %1321 = vrot.lane.b32.xlu0 %v1290, 127
        %v1322 = vpop.permute.xlu0 %1321
        %1323 = vrot.lane.b32.xlu0 %v1291, 127
        %v1324 = vpop.permute.xlu0 %1323
        %1325 = vrot.lane.b32.xlu0 %v1292, 127
        %v1326 = vpop.permute.xlu0 %1325
        %1327 = vrot.lane.b32.xlu0 %v1293, 127
        %v1328 = vpop.permute.xlu0 %1327
        %1329 = vrot.lane.b32.xlu0 %v1294, 127
        %v1330 = vpop.permute.xlu0 %1329
        %v1331 = vsel %vm480, %v1308, %v1310
        %v1332 = vsel %vm480, %v1310, %v1312
        %v1333 = vsel %vm480, %v1312, %v1314
        %v1334 = vsel %vm480, %v1314, %v1316
        %v1335 = vsel %vm480, %v1316, %v1318
        %v1336 = vsel %vm480, %v1320, %v1322
        %v1337 = vsel %vm480, %v1322, %v1324
        %v1338 = vsel %vm480, %v1324, %v1326
        %v1339 = vsel %vm480, %v1326, %v1328
        %v1340 = vsel %vm480, %v1328, %v1330
        %v1353 = vmax.f32 %v1283, %v1331
        %v1354 = vmax.f32 %v1284, %v1332
        %v1355 = vmax.f32 %v1285, %v1333
        %v1356 = vmax.f32 %v1286, %v1334
        %v1357 = vmax.f32 %v1287, %v1335
        %v1358 = vmax.f32 %v1288, %v1318
        %v1359 = vmax.f32 %v1289, %v1336
        %v1360 = vmax.f32 %v1290, %v1337
        %v1361 = vmax.f32 %v1291, %v1338
        %v1362 = vmax.f32 %v1292, %v1339
        %v1363 = vmax.f32 %v1293, %v1340
        %v1364 = vmax.f32 %v1294, %v1330
        %1377 = vrot.lane.b32.xlu0 %v1353, 100
        %v1378 = vpop.permute.xlu0 %1377
        %1379 = vrot.lane.b32.xlu0 %v1354, 100
        %v1380 = vpop.permute.xlu0 %1379
        %1381 = vrot.lane.b32.xlu0 %v1355, 100
        %v1382 = vpop.permute.xlu0 %1381
        %1383 = vrot.lane.b32.xlu0 %v1356, 100
        %v1384 = vpop.permute.xlu0 %1383
        %1385 = vrot.lane.b32.xlu0 %v1357, 100
        %v1386 = vpop.permute.xlu0 %1385
        %1387 = vrot.lane.b32.xlu0 %v1358, 100
        %v1388 = vpop.permute.xlu0 %1387
        %1389 = vrot.lane.b32.xlu0 %v1359, 100
        %v1390 = vpop.permute.xlu0 %1389
        %1391 = vrot.lane.b32.xlu0 %v1360, 100
        %v1392 = vpop.permute.xlu0 %1391
        %1393 = vrot.lane.b32.xlu0 %v1361, 100
        %v1394 = vpop.permute.xlu0 %1393
        %1395 = vrot.lane.b32.xlu0 %v1362, 100
        %v1396 = vpop.permute.xlu0 %1395
        %1397 = vrot.lane.b32.xlu0 %v1363, 100
        %v1398 = vpop.permute.xlu0 %1397
        %1399 = vrot.lane.b32.xlu0 %v1364, 100
        %v1400 = vpop.permute.xlu0 %1399
        %v1401 = vsel %vm672, %v1378, %v1380
        %v1402 = vsel %vm672, %v1380, %v1382
        %v1403 = vsel %vm672, %v1382, %v1384
        %v1404 = vsel %vm672, %v1384, %v1386
        %v1405 = vsel %vm672, %v1386, %v1388
        %v1406 = vsel %vm672, %v1390, %v1392
        %v1407 = vsel %vm672, %v1392, %v1394
        %v1408 = vsel %vm672, %v1394, %v1396
        %v1409 = vsel %vm672, %v1396, %v1398
        %v1410 = vsel %vm672, %v1398, %v1400
        %v1423 = vmax.f32 %v1353, %v1401
        %v1424 = vmax.f32 %v1354, %v1402
        %v1425 = vmax.f32 %v1355, %v1403
        %v1426 = vmax.f32 %v1356, %v1404
        %v1427 = vmax.f32 %v1357, %v1405
        %v1428 = vmax.f32 %v1358, %v1388
        %v1429 = vmax.f32 %v1359, %v1406
        %v1430 = vmax.f32 %v1360, %v1407
        %v1431 = vmax.f32 %v1361, %v1408
        %v1432 = vmax.f32 %v1362, %v1409
        %v1433 = vmax.f32 %v1363, %v1410
        %v1434 = vmax.f32 %v1364, %v1400
        %v1435 = vld [vmem:[%s3] sm:$0xff]
        %v1436 = vld [vmem:[%s3 + $0x8] sm:$0xff]
        %v1437 = vld [vmem:[%s3 + $0x10] sm:$0xff]
        %v1438 = vld [vmem:[%s3 + $0x18] sm:$0xff]
        %v1439 = vld [vmem:[%s3 + $0x20] sm:$0xff]
        %v1440 = vld [vmem:[%s3 + $0x28] sm:$0xff]
        %v1441 = vld [vmem:[%s3 + $0x30] sm:$0xff]
        %v1442 = vld [vmem:[%s3 + $0x38] sm:$0xff]
        %v1443 = vld [vmem:[%s3 + $0x40] sm:$0xff]
        %v1444 = vld [vmem:[%s3 + $0x48] sm:$0xff]
        %v1445 = vld [vmem:[%s3 + $0x50] sm:$0xff]
        %v1446 = vld [vmem:[%s3 + $0x58] sm:$0xff]
        %v1447 = vld [vmem:[%s3 + $0x60] sm:$0xff]
        %v1448 = vld [vmem:[%s3 + $0x68] sm:$0xff]
        %v1449 = vld [vmem:[%s3 + $0x70] sm:$0xff]
        %v1450 = vld [vmem:[%s3 + $0x78] sm:$0xff]
        %v1451 = vld [vmem:[%s3 + $0x80] sm:$0xff]
        %v1452 = vld [vmem:[%s3 + $0x88] sm:$0xff]
        %v1453 = vld [vmem:[%s3 + $0x90] sm:$0xff]
        %v1454 = vld [vmem:[%s3 + $0x98] sm:$0xff]
        %v1455 = vld [vmem:[%s3 + $0xa0] sm:$0xff]
        %v1456 = vld [vmem:[%s3 + $0xa8] sm:$0xff]
        %v1457 = vld [vmem:[%s3 + $0xb0] sm:$0xff]
        %v1458 = vld [vmem:[%s3 + $0xb8] sm:$0xff]
        %v1459 = vld [vmem:[%s3 + $0xc0] sm:$0xff]
        %v1460 = vld [vmem:[%s3 + $0xc8] sm:$0xff]
        %v1461 = vld [vmem:[%s3 + $0xd0] sm:$0xff]
        %v1462 = vld [vmem:[%s3 + $0xd8] sm:$0xff]
        %v1463 = vld [vmem:[%s3 + $0xe0] sm:$0xff]
        %v1464 = vld [vmem:[%s3 + $0xe8] sm:$0xff]
        %v1465 = vld [vmem:[%s3 + $0xf0] sm:$0xff]
        %v1466 = vld [vmem:[%s3 + $0xf8] sm:$0xff]
        %v1467 = vld [vmem:[%s3 + $0x100] sm:$0xff]
        %v1468 = vld [vmem:[%s3 + $0x108] sm:$0xff]
        %v1469 = vld [vmem:[%s3 + $0x110] sm:$0xff]
        %v1470 = vld [vmem:[%s3 + $0x118] sm:$0xff]
        %v1471 = vld [vmem:[%s3 + $0x120] sm:$0xff]
        %v1472 = vld [vmem:[%s3 + $0x128] sm:$0xff]
        %v1473 = vld [vmem:[%s3 + $0x130] sm:$0xff]
        %v1474 = vld [vmem:[%s3 + $0x138] sm:$0xff]
        %v1475 = vld [vmem:[%s3 + $0x140] sm:$0xff]
        %v1476 = vld [vmem:[%s3 + $0x148] sm:$0xff]
        %v1477 = vld [vmem:[%s3 + $0x150] sm:$0xff]
        %v1478 = vld [vmem:[%s3 + $0x158] sm:$0xff]
        %v1479 = vld [vmem:[%s3 + $0x160] sm:$0xff]
        %v1480 = vld [vmem:[%s3 + $0x168] sm:$0xff]
        %v1481 = vld [vmem:[%s3 + $0x170] sm:$0xff]
        %v1482 = vld [vmem:[%s3 + $0x178] sm:$0xff]
        %v1483 = vld [vmem:[%s3 + $0x180] sm:$0xff]
        %v1484 = vld [vmem:[%s3 + $0x188] sm:$0xff]
        %v1485 = vld [vmem:[%s3 + $0x190] sm:$0xff]
        %v1486 = vld [vmem:[%s3 + $0x198] sm:$0xff]
        %v1487 = vld [vmem:[%s3 + $0x1a0] sm:$0xff]
        %v1488 = vld [vmem:[%s3 + $0x1a8] sm:$0xff]
        %v1489 = vld [vmem:[%s3 + $0x1b0] sm:$0xff]
        %v1490 = vld [vmem:[%s3 + $0x1b8] sm:$0xff]
        %v1491 = vld [vmem:[%s3 + $0x1c0] sm:$0xff]
        %v1492 = vld [vmem:[%s3 + $0x1c8] sm:$0xff]
        %v1493 = vld [vmem:[%s3 + $0x1d0] sm:$0xff]
        %v1494 = vld [vmem:[%s3 + $0x1d8] sm:$0xff]
        %v1495 = vld [vmem:[%s3 + $0x1e0] sm:$0xff]
        %v1496 = vld [vmem:[%s3 + $0x1e8] sm:$0xff]
        %v1497 = vld [vmem:[%s3 + $0x1f0] sm:$0xff]
        %v1498 = vld [vmem:[%s3 + $0x1f8] sm:$0xff]
        %v1499 = vld [vmem:[%s3 + $0x200] sm:$0xff]
        %v1500 = vld [vmem:[%s3 + $0x208] sm:$0xff]
        %v1501 = vld [vmem:[%s3 + $0x210] sm:$0xff]
        %v1502 = vld [vmem:[%s3 + $0x218] sm:$0xff]
        %v1503 = vld [vmem:[%s3 + $0x220] sm:$0xff]
        %v1504 = vld [vmem:[%s3 + $0x228] sm:$0xff]
        %v1505 = vld [vmem:[%s3 + $0x230] sm:$0xff]
        %v1506 = vld [vmem:[%s3 + $0x238] sm:$0xff]
        %v1507 = vld [vmem:[%s3 + $0x240] sm:$0xff]
        %v1508 = vld [vmem:[%s3 + $0x248] sm:$0xff]
        %v1509 = vld [vmem:[%s3 + $0x250] sm:$0xff]
        %v1510 = vld [vmem:[%s3 + $0x258] sm:$0xff]
        %v1511 = vld [vmem:[%s3 + $0x260] sm:$0xff]
        %v1512 = vld [vmem:[%s3 + $0x268] sm:$0xff]
        %v1513 = vld [vmem:[%s3 + $0x270] sm:$0xff]
        %v1514 = vld [vmem:[%s3 + $0x278] sm:$0xff]
        %v1515 = vld [vmem:[%s3 + $0x280] sm:$0xff]
        %v1516 = vld [vmem:[%s3 + $0x288] sm:$0xff]
        %v1517 = vld [vmem:[%s3 + $0x290] sm:$0xff]
        %v1518 = vld [vmem:[%s3 + $0x298] sm:$0xff]
        %v1519 = vld [vmem:[%s3 + $0x2a0] sm:$0xff]
        %v1520 = vld [vmem:[%s3 + $0x2a8] sm:$0xff]
        %v1521 = vld [vmem:[%s3 + $0x2b0] sm:$0xff]
        %v1522 = vld [vmem:[%s3 + $0x2b8] sm:$0xff]
        %v1523 = vld [vmem:[%s3 + $0x2c0] sm:$0xff]
        %v1524 = vld [vmem:[%s3 + $0x2c8] sm:$0xff]
        %v1525 = vld [vmem:[%s3 + $0x2d0] sm:$0xff]
        %v1526 = vld [vmem:[%s3 + $0x2d8] sm:$0xff]
        %v1527 = vld [vmem:[%s3 + $0x2e0] sm:$0xff]
        %v1528 = vld [vmem:[%s3 + $0x2e8] sm:$0xff]
        %v1529 = vld [vmem:[%s3 + $0x2f0] sm:$0xff]
        %v1530 = vld [vmem:[%s3 + $0x2f8] sm:$0xff]
        %v1531 = vld [vmem:[%s3 + $0x300] sm:$0xff]
        %v1532 = vld [vmem:[%s3 + $0x308] sm:$0xff]
        %v1533 = vld [vmem:[%s3 + $0x310] sm:$0xff]
        %v1534 = vld [vmem:[%s3 + $0x318] sm:$0xff]
        %v1535 = vld [vmem:[%s3 + $0x320] sm:$0xff]
        %v1536 = vld [vmem:[%s3 + $0x328] sm:$0xff]
        %v1537 = vld [vmem:[%s3 + $0x330] sm:$0xff]
        %v1538 = vld [vmem:[%s3 + $0x338] sm:$0xff]
        %v1539 = vld [vmem:[%s3 + $0x340] sm:$0xff]
        %v1540 = vld [vmem:[%s3 + $0x348] sm:$0xff]
        %v1541 = vld [vmem:[%s3 + $0x350] sm:$0xff]
        %v1542 = vld [vmem:[%s3 + $0x358] sm:$0xff]
        %v1543 = vld [vmem:[%s3 + $0x360] sm:$0xff]
        %v1544 = vld [vmem:[%s3 + $0x368] sm:$0xff]
        %v1545 = vld [vmem:[%s3 + $0x370] sm:$0xff]
        %v1546 = vld [vmem:[%s3 + $0x378] sm:$0xff]
        %v1547 = vld [vmem:[%s3 + $0x380] sm:$0xff]
        %v1548 = vld [vmem:[%s3 + $0x388] sm:$0xff]
        %v1549 = vld [vmem:[%s3 + $0x390] sm:$0xff]
        %v1550 = vld [vmem:[%s3 + $0x398] sm:$0xff]
        %v1551 = vld [vmem:[%s3 + $0x3a0] sm:$0xff]
        %v1552 = vld [vmem:[%s3 + $0x3a8] sm:$0xff]
        %v1553 = vld [vmem:[%s3 + $0x3b0] sm:$0xff]
        %v1554 = vld [vmem:[%s3 + $0x3b8] sm:$0xff]
        %v1555 = vld [vmem:[%s3 + $0x3c0] sm:$0xff]
        %v1556 = vld [vmem:[%s3 + $0x3c8] sm:$0xff]
        %v1557 = vld [vmem:[%s3 + $0x3d0] sm:$0xff]
        %v1558 = vld [vmem:[%s3 + $0x3d8] sm:$0xff]
        %v1559 = vld [vmem:[%s3 + $0x3e0] sm:$0xff]
        %v1560 = vld [vmem:[%s3 + $0x3e8] sm:$0xff]
        %v1561 = vld [vmem:[%s3 + $0x3f0] sm:$0xff]
        %v1562 = vld [vmem:[%s3 + $0x3f8] sm:$0xff]
        %v1563 = vld [vmem:[%s3 + $0x400] sm:$0xff]
        %v1564 = vld [vmem:[%s3 + $0x408] sm:$0xff]
        %v1565 = vld [vmem:[%s3 + $0x410] sm:$0xff]
        %v1566 = vld [vmem:[%s3 + $0x418] sm:$0xff]
        %v1567 = vld [vmem:[%s3 + $0x420] sm:$0xff]
        %v1568 = vld [vmem:[%s3 + $0x428] sm:$0xff]
        %v1569 = vld [vmem:[%s3 + $0x430] sm:$0xff]
        %v1570 = vld [vmem:[%s3 + $0x438] sm:$0xff]
        %v1571 = vld [vmem:[%s3 + $0x440] sm:$0xff]
        %v1572 = vld [vmem:[%s3 + $0x448] sm:$0xff]
        %v1573 = vld [vmem:[%s3 + $0x450] sm:$0xff]
        %v1574 = vld [vmem:[%s3 + $0x458] sm:$0xff]
        %v1575 = vld [vmem:[%s3 + $0x460] sm:$0xff]
        %v1576 = vld [vmem:[%s3 + $0x468] sm:$0xff]
        %v1577 = vld [vmem:[%s3 + $0x470] sm:$0xff]
        %v1578 = vld [vmem:[%s3 + $0x478] sm:$0xff]
        %v1579 = vld [vmem:[%s3 + $0x480] sm:$0xff]
        %v1580 = vld [vmem:[%s3 + $0x488] sm:$0xff]
        %v1581 = vld [vmem:[%s3 + $0x490] sm:$0xff]
        %v1582 = vld [vmem:[%s3 + $0x498] sm:$0xff]
        %v1583 = vld [vmem:[%s3 + $0x4a0] sm:$0xff]
        %v1584 = vld [vmem:[%s3 + $0x4a8] sm:$0xff]
        %v1585 = vld [vmem:[%s3 + $0x4b0] sm:$0xff]
        %v1586 = vld [vmem:[%s3 + $0x4b8] sm:$0xff]
        %v1587 = vld [vmem:[%s3 + $0x4c0] sm:$0xff]
        %v1588 = vld [vmem:[%s3 + $0x4c8] sm:$0xff]
        %v1589 = vld [vmem:[%s3 + $0x4d0] sm:$0xff]
        %v1590 = vld [vmem:[%s3 + $0x4d8] sm:$0xff]
        %v1591 = vld [vmem:[%s3 + $0x4e0] sm:$0xff]
        %v1592 = vld [vmem:[%s3 + $0x4e8] sm:$0xff]
        %v1593 = vld [vmem:[%s3 + $0x4f0] sm:$0xff]
        %v1594 = vld [vmem:[%s3 + $0x4f8] sm:$0xff]
        %v1595 = vld [vmem:[%s3 + $0x500] sm:$0xff]
        %v1596 = vld [vmem:[%s3 + $0x508] sm:$0xff]
        %v1597 = vld [vmem:[%s3 + $0x510] sm:$0xff]
        %v1598 = vld [vmem:[%s3 + $0x518] sm:$0xff]
        %v1599 = vld [vmem:[%s3 + $0x520] sm:$0xff]
        %v1600 = vld [vmem:[%s3 + $0x528] sm:$0xff]
        %v1601 = vld [vmem:[%s3 + $0x530] sm:$0xff]
        %v1602 = vld [vmem:[%s3 + $0x538] sm:$0xff]
        %v1603 = vld [vmem:[%s3 + $0x540] sm:$0xff]
        %v1604 = vld [vmem:[%s3 + $0x548] sm:$0xff]
        %v1605 = vld [vmem:[%s3 + $0x550] sm:$0xff]
        %v1606 = vld [vmem:[%s3 + $0x558] sm:$0xff]
        %v1607 = vld [vmem:[%s3 + $0x560] sm:$0xff]
        %v1608 = vld [vmem:[%s3 + $0x568] sm:$0xff]
        %v1609 = vld [vmem:[%s3 + $0x570] sm:$0x1]
        %v1610 = vld [vmem:[%s3 + $0x578] sm:$0x1]
        %vm1611 = vcmask 465920
        %v1613 = vsel %vm1611, %v1428, 0
        %v1616 = vsel %vm1611, %v1434, 0
        %vm1618 = vcmask 1040384
        %v1620 = vsel %vm1618, %v1609, 0
        %v1623 = vsel %vm1618, %v1610, 0
        %1625 = vmatpush.msra.mxu0 %v1465
        %1626 = vmatpush.msra.mxu0 %v1463
        %1627 = vmatpush.msra.mxu0 %v1461
        %1628 = vmatpush.msra.mxu0 %v1459
        %1629 = vmatpush.msra.mxu0 %v1457
        %1630 = vmatpush.msra.mxu0 %v1455
        %1631 = vmatpush.msra.mxu0 %v1453
        %1632 = vmatpush.msra.mxu0 %v1451
        %1633 = vmatpush.msra.mxu0 %v1449
        %1634 = vmatpush.msra.mxu0 %v1447
        %1635 = vmatpush.msra.mxu0 %v1445
        %1636 = vmatpush.msra.mxu0 %v1443
        %1637 = vmatpush.msra.mxu0 %v1441
        %1638 = vmatpush.msra.mxu0 %v1439
        %1639 = vmatpush.msra.mxu0 %v1437
        %1640 = vmatpush.msra.mxu0 %v1435
        %1641 = vmatmul.f32.gmra.mxu0 %v1423
        %v1642 = vpop.f32.mrf.mxu0
        %v1643 = vadd.f32 0.0, %v1642
        %1644 = vmatmul.f32.gmra.mxu0 %v1429
        %v1645 = vpop.f32.mrf.mxu0
        %v1646 = vadd.f32 0.0, %v1645
        %1647 = vdwg.mxu0
        %1648 = vmatpush.msra.mxu0 %v1497
        %1649 = vmatpush.msra.mxu0 %v1495
        %1650 = vmatpush.msra.mxu0 %v1493
        %1651 = vmatpush.msra.mxu0 %v1491
        %1652 = vmatpush.msra.mxu0 %v1489
        %1653 = vmatpush.msra.mxu0 %v1487
        %1654 = vmatpush.msra.mxu0 %v1485
        %1655 = vmatpush.msra.mxu0 %v1483
        %1656 = vmatpush.msra.mxu0 %v1481
        %1657 = vmatpush.msra.mxu0 %v1479
        %1658 = vmatpush.msra.mxu0 %v1477
        %1659 = vmatpush.msra.mxu0 %v1475
        %1660 = vmatpush.msra.mxu0 %v1473
        %1661 = vmatpush.msra.mxu0 %v1471
        %1662 = vmatpush.msra.mxu0 %v1469
        %1663 = vmatpush.msra.mxu0 %v1467
        %1664 = vmatmul.f32.gmra.mxu0 %v1424
        %v1665 = vpop.f32.mrf.mxu0
        %v1666 = vadd.f32 %v1643, %v1665
        %1667 = vmatmul.f32.gmra.mxu0 %v1430
        %v1668 = vpop.f32.mrf.mxu0
        %v1669 = vadd.f32 %v1646, %v1668
        %1670 = vdwg.mxu0
        %1671 = vmatpush.msra.mxu0 %v1529
        %1672 = vmatpush.msra.mxu0 %v1527
        %1673 = vmatpush.msra.mxu0 %v1525
        %1674 = vmatpush.msra.mxu0 %v1523
        %1675 = vmatpush.msra.mxu0 %v1521
        %1676 = vmatpush.msra.mxu0 %v1519
        %1677 = vmatpush.msra.mxu0 %v1517
        %1678 = vmatpush.msra.mxu0 %v1515
        %1679 = vmatpush.msra.mxu0 %v1513
        %1680 = vmatpush.msra.mxu0 %v1511
        %1681 = vmatpush.msra.mxu0 %v1509
        %1682 = vmatpush.msra.mxu0 %v1507
        %1683 = vmatpush.msra.mxu0 %v1505
        %1684 = vmatpush.msra.mxu0 %v1503
        %1685 = vmatpush.msra.mxu0 %v1501
        %1686 = vmatpush.msra.mxu0 %v1499
        %1687 = vmatmul.f32.gmra.mxu0 %v1425
        %v1688 = vpop.f32.mrf.mxu0
        %v1689 = vadd.f32 %v1666, %v1688
        %1690 = vmatmul.f32.gmra.mxu0 %v1431
        %v1691 = vpop.f32.mrf.mxu0
        %v1692 = vadd.f32 %v1669, %v1691
        %1693 = vdwg.mxu0
        %1694 = vmatpush.msra.mxu0 %v1561
        %1695 = vmatpush.msra.mxu0 %v1559
        %1696 = vmatpush.msra.mxu0 %v1557
        %1697 = vmatpush.msra.mxu0 %v1555
        %1698 = vmatpush.msra.mxu0 %v1553
        %1699 = vmatpush.msra.mxu0 %v1551
        %1700 = vmatpush.msra.mxu0 %v1549
        %1701 = vmatpush.msra.mxu0 %v1547
        %1702 = vmatpush.msra.mxu0 %v1545
        %1703 = vmatpush.msra.mxu0 %v1543
        %1704 = vmatpush.msra.mxu0 %v1541
        %1705 = vmatpush.msra.mxu0 %v1539
        %1706 = vmatpush.msra.mxu0 %v1537
        %1707 = vmatpush.msra.mxu0 %v1535
        %1708 = vmatpush.msra.mxu0 %v1533
        %1709 = vmatpush.msra.mxu0 %v1531
        %1710 = vmatmul.f32.gmra.mxu0 %v1426
        %v1711 = vpop.f32.mrf.mxu0
        %v1712 = vadd.f32 %v1689, %v1711
        %1713 = vmatmul.f32.gmra.mxu0 %v1432
        %v1714 = vpop.f32.mrf.mxu0
        %v1715 = vadd.f32 %v1692, %v1714
        %1716 = vdwg.mxu0
        %1717 = vmatpush.msra.mxu0 %v1593
        %1718 = vmatpush.msra.mxu0 %v1591
        %1719 = vmatpush.msra.mxu0 %v1589
        %1720 = vmatpush.msra.mxu0 %v1587
        %1721 = vmatpush.msra.mxu0 %v1585
        %1722 = vmatpush.msra.mxu0 %v1583
        %1723 = vmatpush.msra.mxu0 %v1581
        %1724 = vmatpush.msra.mxu0 %v1579
        %1725 = vmatpush.msra.mxu0 %v1577
        %1726 = vmatpush.msra.mxu0 %v1575
        %1727 = vmatpush.msra.mxu0 %v1573
        %1728 = vmatpush.msra.mxu0 %v1571
        %1729 = vmatpush.msra.mxu0 %v1569
        %1730 = vmatpush.msra.mxu0 %v1567
        %1731 = vmatpush.msra.mxu0 %v1565
        %1732 = vmatpush.msra.mxu0 %v1563
        %1733 = vmatmul.f32.gmra.mxu0 %v1427
        %v1734 = vpop.f32.mrf.mxu0
        %v1735 = vadd.f32 %v1712, %v1734
        %1736 = vmatmul.f32.gmra.mxu0 %v1433
        %v1737 = vpop.f32.mrf.mxu0
        %v1738 = vadd.f32 %v1715, %v1737
        %1739 = vdwg.mxu0
        %1740 = vmatpush.msra.mxu0 0.0
        %1741 = vmatpush.msra.mxu0 0.0
        %1742 = vmatpush.msra.mxu0 0.0
        %1743 = vmatpush.msra.mxu0 0.0
        %1744 = vmatpush.msra.mxu0 0.0
        %1745 = vmatpush.msra.mxu0 0.0
        %1746 = vmatpush.msra.mxu0 0.0
        %1747 = vmatpush.msra.mxu0 0.0
        %1748 = vmatpush.msra.mxu0 %v1620
        %1749 = vmatpush.msra.mxu0 %v1607
        %1750 = vmatpush.msra.mxu0 %v1605
        %1751 = vmatpush.msra.mxu0 %v1603
        %1752 = vmatpush.msra.mxu0 %v1601
        %1753 = vmatpush.msra.mxu0 %v1599
        %1754 = vmatpush.msra.mxu0 %v1597
        %1755 = vmatpush.msra.mxu0 %v1595
        %1756 = vmatmul.f32.gmra.mxu0 %v1613
        %v1757 = vpop.f32.mrf.mxu0
        %v1758 = vadd.f32 %v1735, %v1757
        %1759 = vmatmul.f32.gmra.mxu0 %v1616
        %v1760 = vpop.f32.mrf.mxu0
        %v1761 = vadd.f32 %v1738, %v1760
        %1762 = vdwg.mxu0
        %1763 = vmatpush.msra.mxu0 %v1466
        %1764 = vmatpush.msra.mxu0 %v1464
        %1765 = vmatpush.msra.mxu0 %v1462
        %1766 = vmatpush.msra.mxu0 %v1460
        %1767 = vmatpush.msra.mxu0 %v1458
        %1768 = vmatpush.msra.mxu0 %v1456
        %1769 = vmatpush.msra.mxu0 %v1454
        %1770 = vmatpush.msra.mxu0 %v1452
        %1771 = vmatpush.msra.mxu0 %v1450
        %1772 = vmatpush.msra.mxu0 %v1448
        %1773 = vmatpush.msra.mxu0 %v1446
        %1774 = vmatpush.msra.mxu0 %v1444
        %1775 = vmatpush.msra.mxu0 %v1442
        %1776 = vmatpush.msra.mxu0 %v1440
        %1777 = vmatpush.msra.mxu0 %v1438
        %1778 = vmatpush.msra.mxu0 %v1436
        %1779 = vmatmul.f32.gmra.mxu0 %v1423
        %v1780 = vpop.f32.mrf.mxu0
        %v1781 = vadd.f32 0.0, %v1780
        %1782 = vmatmul.f32.gmra.mxu0 %v1429
        %v1783 = vpop.f32.mrf.mxu0
        %v1784 = vadd.f32 0.0, %v1783
        %1785 = vdwg.mxu0
        %1786 = vmatpush.msra.mxu0 %v1498
        %1787 = vmatpush.msra.mxu0 %v1496
        %1788 = vmatpush.msra.mxu0 %v1494
        %1789 = vmatpush.msra.mxu0 %v1492
        %1790 = vmatpush.msra.mxu0 %v1490
        %1791 = vmatpush.msra.mxu0 %v1488
        %1792 = vmatpush.msra.mxu0 %v1486
        %1793 = vmatpush.msra.mxu0 %v1484
        %1794 = vmatpush.msra.mxu0 %v1482
        %1795 = vmatpush.msra.mxu0 %v1480
        %1796 = vmatpush.msra.mxu0 %v1478
        %1797 = vmatpush.msra.mxu0 %v1476
        %1798 = vmatpush.msra.mxu0 %v1474
        %1799 = vmatpush.msra.mxu0 %v1472
        %1800 = vmatpush.msra.mxu0 %v1470
        %1801 = vmatpush.msra.mxu0 %v1468
        %1802 = vmatmul.f32.gmra.mxu0 %v1424
        %v1803 = vpop.f32.mrf.mxu0
        %v1804 = vadd.f32 %v1781, %v1803
        %1805 = vmatmul.f32.gmra.mxu0 %v1430
        %v1806 = vpop.f32.mrf.mxu0
        %v1807 = vadd.f32 %v1784, %v1806
        %1808 = vdwg.mxu0
        %1809 = vmatpush.msra.mxu0 %v1530
        %1810 = vmatpush.msra.mxu0 %v1528
        %1811 = vmatpush.msra.mxu0 %v1526
        %1812 = vmatpush.msra.mxu0 %v1524
        %1813 = vmatpush.msra.mxu0 %v1522
        %1814 = vmatpush.msra.mxu0 %v1520
        %1815 = vmatpush.msra.mxu0 %v1518
        %1816 = vmatpush.msra.mxu0 %v1516
        %1817 = vmatpush.msra.mxu0 %v1514
        %1818 = vmatpush.msra.mxu0 %v1512
        %1819 = vmatpush.msra.mxu0 %v1510
        %1820 = vmatpush.msra.mxu0 %v1508
        %1821 = vmatpush.msra.mxu0 %v1506
        %1822 = vmatpush.msra.mxu0 %v1504
        %1823 = vmatpush.msra.mxu0 %v1502
        %1824 = vmatpush.msra.mxu0 %v1500
        %1825 = vmatmul.f32.gmra.mxu0 %v1425
        %v1826 = vpop.f32.mrf.mxu0
        %v1827 = vadd.f32 %v1804, %v1826
        %1828 = vmatmul.f32.gmra.mxu0 %v1431
        %v1829 = vpop.f32.mrf.mxu0
        %v1830 = vadd.f32 %v1807, %v1829
        %1831 = vdwg.mxu0
        %1832 = vmatpush.msra.mxu0 %v1562
        %1833 = vmatpush.msra.mxu0 %v1560
        %1834 = vmatpush.msra.mxu0 %v1558
        %1835 = vmatpush.msra.mxu0 %v1556
        %1836 = vmatpush.msra.mxu0 %v1554
        %1837 = vmatpush.msra.mxu0 %v1552
        %1838 = vmatpush.msra.mxu0 %v1550
        %1839 = vmatpush.msra.mxu0 %v1548
        %1840 = vmatpush.msra.mxu0 %v1546
        %1841 = vmatpush.msra.mxu0 %v1544
        %1842 = vmatpush.msra.mxu0 %v1542
        %1843 = vmatpush.msra.mxu0 %v1540
        %1844 = vmatpush.msra.mxu0 %v1538
        %1845 = vmatpush.msra.mxu0 %v1536
        %1846 = vmatpush.msra.mxu0 %v1534
        %1847 = vmatpush.msra.mxu0 %v1532
        %1848 = vmatmul.f32.gmra.mxu0 %v1426
        %v1849 = vpop.f32.mrf.mxu0
        %v1850 = vadd.f32 %v1827, %v1849
        %1851 = vmatmul.f32.gmra.mxu0 %v1432
        %v1852 = vpop.f32.mrf.mxu0
        %v1853 = vadd.f32 %v1830, %v1852
        %1854 = vdwg.mxu0
        %1855 = vmatpush.msra.mxu0 %v1594
        %1856 = vmatpush.msra.mxu0 %v1592
        %1857 = vmatpush.msra.mxu0 %v1590
        %1858 = vmatpush.msra.mxu0 %v1588
        %1859 = vmatpush.msra.mxu0 %v1586
        %1860 = vmatpush.msra.mxu0 %v1584
        %1861 = vmatpush.msra.mxu0 %v1582
        %1862 = vmatpush.msra.mxu0 %v1580
        %1863 = vmatpush.msra.mxu0 %v1578
        %1864 = vmatpush.msra.mxu0 %v1576
        %1865 = vmatpush.msra.mxu0 %v1574
        %1866 = vmatpush.msra.mxu0 %v1572
        %1867 = vmatpush.msra.mxu0 %v1570
        %1868 = vmatpush.msra.mxu0 %v1568
        %1869 = vmatpush.msra.mxu0 %v1566
        %1870 = vmatpush.msra.mxu0 %v1564
        %1871 = vmatmul.f32.gmra.mxu0 %v1427
        %v1872 = vpop.f32.mrf.mxu0
        %v1873 = vadd.f32 %v1850, %v1872
        %1874 = vmatmul.f32.gmra.mxu0 %v1433
        %v1875 = vpop.f32.mrf.mxu0
        %v1876 = vadd.f32 %v1853, %v1875
        %1877 = vdwg.mxu0
        %1878 = vmatpush.msra.mxu0 0.0
        %1879 = vmatpush.msra.mxu0 0.0
        %1880 = vmatpush.msra.mxu0 0.0
        %1881 = vmatpush.msra.mxu0 0.0
        %1882 = vmatpush.msra.mxu0 0.0
        %1883 = vmatpush.msra.mxu0 0.0
        %1884 = vmatpush.msra.mxu0 0.0
        %1885 = vmatpush.msra.mxu0 0.0
        %1886 = vmatpush.msra.mxu0 %v1623
        %1887 = vmatpush.msra.mxu0 %v1608
        %1888 = vmatpush.msra.mxu0 %v1606
        %1889 = vmatpush.msra.mxu0 %v1604
        %1890 = vmatpush.msra.mxu0 %v1602
        %1891 = vmatpush.msra.mxu0 %v1600
        %1892 = vmatpush.msra.mxu0 %v1598
        %1893 = vmatpush.msra.mxu0 %v1596
        %1894 = vmatmul.f32.gmra.mxu0 %v1613
        %v1895 = vpop.f32.mrf.mxu0
        %v1896 = vadd.f32 %v1873, %v1895
        %1897 = vmatmul.f32.gmra.mxu0 %v1616
        %v1898 = vpop.f32.mrf.mxu0
        %v1899 = vadd.f32 %v1876, %v1898
        %1900 = vdwg.mxu0
        %1901 = vst [vmem:[#allocation3] sm:$0xff] %v1758
        %vm1902 = vcmask 334848
        %1903 = vst.msk [vmem:[#allocation3 + $0x8] sm:$0xff] %vm1902, %v1896
        %1904 = vst [vmem:[#allocation3 + $0x10] sm:$0x3] %v1761
        %vm1905 = vcmask 328704
        %1906 = vst.msk [vmem:[#allocation3 + $0x18] sm:$0x3] %vm1905, %v1899
        %v1907 = vld [vmem:[%s4] sm:$0xff]
        %v1908 = vld [vmem:[%s4 + $0x8] sm:$0xff]
        %v1909 = vld [vmem:[%s4 + $0x10] sm:$0xf]
        %v1910 = vld [vmem:[#allocation3] sm:$0xff]
        %v1911 = vld [vmem:[#allocation3 + $0x8] sm:$0xff]
        %v1912 = vld [vmem:[#allocation3 + $0x10] sm:$0x3]
        %v1913 = vld [vmem:[#allocation3 + $0x18] sm:$0x3]
        %s1914 = scalar_lea.vmem %s4, 24
        %v1915 = vld [vmem:[%s1914] sm:$0xff]
        %v1916 = vld [vmem:[%s1914 + $0x8] sm:$0xff]
        %v1917 = vld [vmem:[%s1914 + $0x10] sm:$0xf]
        %1922 = vrot.lane.b32.xlu0 %v1910, 127
        %v1923 = vpop.permute.xlu0 %1922
        %1924 = vrot.lane.b32.xlu0 %v1911, 127
        %v1925 = vpop.permute.xlu0 %1924
        %1926 = vrot.lane.b32.xlu0 %v1912, 127
        %v1927 = vpop.permute.xlu0 %1926
        %1928 = vrot.lane.b32.xlu0 %v1913, 127
        %v1929 = vpop.permute.xlu0 %1928
        %v1930 = vsel %vm480, %v1923, %v1925
        %v1931 = vsel %vm480, %v1927, %v1929
        %vm1934 = vcmask 80896
        %v1936 = vsel %vm1934, %v1915, 0
        %v1939 = vsel %vm1934, %v1916, 0
        %v1942 = vsel %vm1934, %v1917, 0
        %vm1944 = vcmask 1041408
        %v1945 = vsel %vm1944, %v1931, 0
        %v1947 = vsel %vm1944, %v1929, 0
        %1949 = vmatpush.msra.mxu0 0.0
        %1950 = vmatpush.msra.mxu0 0.0
        %1951 = vmatpush.msra.mxu0 0.0
        %1952 = vmatpush.msra.mxu0 0.0
        %1953 = vmatpush.msra.mxu0 0.0
        %1954 = vmatpush.msra.mxu0 0.0
        %1955 = vmatpush.msra.mxu0 0.0
        %1956 = vmatpush.msra.mxu0 0.0
        %1957 = vmatpush.msra.mxu0 0.0
        %1958 = vmatpush.msra.mxu0 0.0
        %1959 = vmatpush.msra.mxu0 0.0
        %1960 = vmatpush.msra.mxu0 0.0
        %1961 = vmatpush.msra.mxu0 0.0
        %1962 = vmatpush.msra.mxu0 0.0
        %1963 = vmatpush.msra.mxu0 %v1945
        %1964 = vmatpush.msra.mxu0 %v1930
        %1965 = vmatmul.f32.gmra.mxu0 %v1936
        %v1966 = vpop.f32.mrf.mxu0
        %v1967 = vadd.f32 0.0, %v1966
        %1968 = vmatmul.f32.gmra.mxu0 %v1939
        %v1969 = vpop.f32.mrf.mxu0
        %v1970 = vadd.f32 0.0, %v1969
        %1971 = vmatmul.f32.gmra.mxu0 %v1942
        %v1972 = vpop.f32.mrf.mxu0
        %v1973 = vadd.f32 0.0, %v1972
        %1974 = vdwg.mxu0
        %1975 = vmatpush.msra.mxu0 0.0
        %1976 = vmatpush.msra.mxu0 0.0
        %1977 = vmatpush.msra.mxu0 0.0
        %1978 = vmatpush.msra.mxu0 0.0
        %1979 = vmatpush.msra.mxu0 0.0
        %1980 = vmatpush.msra.mxu0 0.0
        %1981 = vmatpush.msra.mxu0 0.0
        %1982 = vmatpush.msra.mxu0 0.0
        %1983 = vmatpush.msra.mxu0 0.0
        %1984 = vmatpush.msra.mxu0 0.0
        %1985 = vmatpush.msra.mxu0 0.0
        %1986 = vmatpush.msra.mxu0 0.0
        %1987 = vmatpush.msra.mxu0 0.0
        %1988 = vmatpush.msra.mxu0 0.0
        %1989 = vmatpush.msra.mxu0 %v1947
        %1990 = vmatpush.msra.mxu0 %v1925
        %1991 = vmatmul.f32.gmra.mxu0 %v1936
        %v1992 = vpop.f32.mrf.mxu0
        %v1993 = vadd.f32 0.0, %v1992
        %1994 = vmatmul.f32.gmra.mxu0 %v1939
        %v1995 = vpop.f32.mrf.mxu0
        %v1996 = vadd.f32 0.0, %v1995
        %1997 = vmatmul.f32.gmra.mxu0 %v1942
        %v1998 = vpop.f32.mrf.mxu0
        %v1999 = vadd.f32 0.0, %v1998
        %2000 = vdwg.mxu0
        %v2002 = vsel %vm1934, %v1907, 0
        %v2005 = vsel %vm1934, %v1908, 0
        %v2008 = vsel %vm1934, %v1909, 0
        %v2010 = vsel %vm1944, %v1912, 0
        %v2012 = vsel %vm1944, %v1913, 0
        %2014 = vmatpush.msra.mxu0 0.0
        %2015 = vmatpush.msra.mxu0 0.0
        %2016 = vmatpush.msra.mxu0 0.0
        %2017 = vmatpush.msra.mxu0 0.0
        %2018 = vmatpush.msra.mxu0 0.0
        %2019 = vmatpush.msra.mxu0 0.0
        %2020 = vmatpush.msra.mxu0 0.0
        %2021 = vmatpush.msra.mxu0 0.0
        %2022 = vmatpush.msra.mxu0 0.0
        %2023 = vmatpush.msra.mxu0 0.0
        %2024 = vmatpush.msra.mxu0 0.0
        %2025 = vmatpush.msra.mxu0 0.0
        %2026 = vmatpush.msra.mxu0 0.0
        %2027 = vmatpush.msra.mxu0 0.0
        %2028 = vmatpush.msra.mxu0 %v2010
        %2029 = vmatpush.msra.mxu0 %v1910
        %2030 = vmatmul.f32.gmra.mxu0 %v2002
        %v2031 = vpop.f32.mrf.mxu0
        %v2032 = vadd.f32 %v1967, %v2031
        %2033 = vmatmul.f32.gmra.mxu0 %v2005
        %v2034 = vpop.f32.mrf.mxu0
        %v2035 = vadd.f32 %v1970, %v2034
        %2036 = vmatmul.f32.gmra.mxu0 %v2008
        %v2037 = vpop.f32.mrf.mxu0
        %v2038 = vadd.f32 %v1973, %v2037
        %2039 = vdwg.mxu0
        %2040 = vmatpush.msra.mxu0 0.0
        %2041 = vmatpush.msra.mxu0 0.0
        %2042 = vmatpush.msra.mxu0 0.0
        %2043 = vmatpush.msra.mxu0 0.0
        %2044 = vmatpush.msra.mxu0 0.0
        %2045 = vmatpush.msra.mxu0 0.0
        %2046 = vmatpush.msra.mxu0 0.0
        %2047 = vmatpush.msra.mxu0 0.0
        %2048 = vmatpush.msra.mxu0 0.0
        %2049 = vmatpush.msra.mxu0 0.0
        %2050 = vmatpush.msra.mxu0 0.0
        %2051 = vmatpush.msra.mxu0 0.0
        %2052 = vmatpush.msra.mxu0 0.0
        %2053 = vmatpush.msra.mxu0 0.0
        %2054 = vmatpush.msra.mxu0 %v2012
        %2055 = vmatpush.msra.mxu0 %v1911
        %2056 = vmatmul.f32.gmra.mxu0 %v2002
        %v2057 = vpop.f32.mrf.mxu0
        %v2058 = vadd.f32 %v1993, %v2057
        %2059 = vmatmul.f32.gmra.mxu0 %v2005
        %v2060 = vpop.f32.mrf.mxu0
        %v2061 = vadd.f32 %v1996, %v2060
        %2062 = vmatmul.f32.gmra.mxu0 %v2008
        %v2063 = vpop.f32.mrf.mxu0
        %v2064 = vadd.f32 %v1999, %v2063
        %2065 = vdwg.mxu0
        %s2066 = scalar_lea.vmem %s4, 48
        %v2067 = vld [vmem:[%s2066] sm:$0xff]
        %v2068 = vld [vmem:[%s2066 + $0x8] sm:$0xff]
        %v2069 = vld [vmem:[%s2066 + $0x10] sm:$0xf]
        %2070 = vrot.lane.b32.xlu0 %v1910, 126
        %v2071 = vpop.permute.xlu0 %2070
        %2072 = vrot.lane.b32.xlu0 %v1911, 126
        %v2073 = vpop.permute.xlu0 %2072
        %2074 = vrot.lane.b32.xlu0 %v1912, 126
        %v2075 = vpop.permute.xlu0 %2074
        %2076 = vrot.lane.b32.xlu0 %v1913, 126
        %v2077 = vpop.permute.xlu0 %2076
        %v2078 = vsel %vm576, %v2071, %v2073
        %v2079 = vsel %vm576, %v2075, %v2077
        %v2083 = vsel %vm1934, %v2067, 0
        %v2086 = vsel %vm1934, %v2068, 0
        %v2089 = vsel %vm1934, %v2069, 0
        %v2091 = vsel %vm1944, %v2079, 0
        %v2093 = vsel %vm1944, %v2077, 0
        %2095 = vmatpush.msra.mxu0 0.0
        %2096 = vmatpush.msra.mxu0 0.0
        %2097 = vmatpush.msra.mxu0 0.0
        %2098 = vmatpush.msra.mxu0 0.0
        %2099 = vmatpush.msra.mxu0 0.0
        %2100 = vmatpush.msra.mxu0 0.0
        %2101 = vmatpush.msra.mxu0 0.0
        %2102 = vmatpush.msra.mxu0 0.0
        %2103 = vmatpush.msra.mxu0 0.0
        %2104 = vmatpush.msra.mxu0 0.0
        %2105 = vmatpush.msra.mxu0 0.0
        %2106 = vmatpush.msra.mxu0 0.0
        %2107 = vmatpush.msra.mxu0 0.0
        %2108 = vmatpush.msra.mxu0 0.0
        %2109 = vmatpush.msra.mxu0 %v2091
        %2110 = vmatpush.msra.mxu0 %v2078
        %2111 = vmatmul.f32.gmra.mxu0 %v2083
        %v2112 = vpop.f32.mrf.mxu0
        %v2113 = vadd.f32 0.0, %v2112
        %2114 = vmatmul.f32.gmra.mxu0 %v2086
        %v2115 = vpop.f32.mrf.mxu0
        %v2116 = vadd.f32 0.0, %v2115
        %2117 = vmatmul.f32.gmra.mxu0 %v2089
        %v2118 = vpop.f32.mrf.mxu0
        %v2119 = vadd.f32 0.0, %v2118
        %2120 = vdwg.mxu0
        %2121 = vmatpush.msra.mxu0 0.0
        %2122 = vmatpush.msra.mxu0 0.0
        %2123 = vmatpush.msra.mxu0 0.0
        %2124 = vmatpush.msra.mxu0 0.0
        %2125 = vmatpush.msra.mxu0 0.0
        %2126 = vmatpush.msra.mxu0 0.0
        %2127 = vmatpush.msra.mxu0 0.0
        %2128 = vmatpush.msra.mxu0 0.0
        %2129 = vmatpush.msra.mxu0 0.0
        %2130 = vmatpush.msra.mxu0 0.0
        %2131 = vmatpush.msra.mxu0 0.0
        %2132 = vmatpush.msra.mxu0 0.0
        %2133 = vmatpush.msra.mxu0 0.0
        %2134 = vmatpush.msra.mxu0 0.0
        %2135 = vmatpush.msra.mxu0 %v2093
        %2136 = vmatpush.msra.mxu0 %v2073
        %2137 = vmatmul.f32.gmra.mxu0 %v2083
        %v2138 = vpop.f32.mrf.mxu0
        %v2139 = vadd.f32 0.0, %v2138
        %2140 = vmatmul.f32.gmra.mxu0 %v2086
        %v2141 = vpop.f32.mrf.mxu0
        %v2142 = vadd.f32 0.0, %v2141
        %2143 = vmatmul.f32.gmra.mxu0 %v2089
        %v2144 = vpop.f32.mrf.mxu0
        %v2145 = vadd.f32 0.0, %v2144
        %2146 = vdwg.mxu0
        %v2147 = vadd.f32 %v2032, %v2113
        %v2148 = vadd.f32 %v2058, %v2139
        %v2149 = vadd.f32 %v2035, %v2116
        %v2150 = vadd.f32 %v2061, %v2142
        %v2151 = vadd.f32 %v2038, %v2119
        %v2152 = vadd.f32 %v2064, %v2145
        %s2153 = scalar_lea.vmem %s4, 72
        %v2154 = vld [vmem:[%s2153] sm:$0xff]
        %v2155 = vld [vmem:[%s2153 + $0x8] sm:$0xff]
        %v2156 = vld [vmem:[%s2153 + $0x10] sm:$0xf]
        %2157 = vrot.lane.b32.xlu0 %v1910, 115
        %v2158 = vpop.permute.xlu0 %2157
        %2159 = vrot.lane.b32.xlu0 %v1911, 115
        %v2160 = vpop.permute.xlu0 %2159
        %2161 = vrot.lane.b32.xlu0 %v1912, 115
        %v2162 = vpop.permute.xlu0 %2161
        %2163 = vrot.lane.b32.xlu0 %v1913, 115
        %v2164 = vpop.permute.xlu0 %2163
        %vm2165 = vcmask 941056
        %v2166 = vsel %vm2165, %v2158, %v2160
        %v2167 = vsel %vm2165, %v2162, %v2164
        %v2171 = vsel %vm1934, %v2154, 0
        %v2174 = vsel %vm1934, %v2155, 0
        %v2177 = vsel %vm1934, %v2156, 0
        %v2179 = vsel %vm1944, %v2167, 0
        %v2181 = vsel %vm1944, %v2164, 0
        %2183 = vmatpush.msra.mxu0 0.0
        %2184 = vmatpush.msra.mxu0 0.0
        %2185 = vmatpush.msra.mxu0 0.0
        %2186 = vmatpush.msra.mxu0 0.0
        %2187 = vmatpush.msra.mxu0 0.0
        %2188 = vmatpush.msra.mxu0 0.0
        %2189 = vmatpush.msra.mxu0 0.0
        %2190 = vmatpush.msra.mxu0 0.0
        %2191 = vmatpush.msra.mxu0 0.0
        %2192 = vmatpush.msra.mxu0 0.0
        %2193 = vmatpush.msra.mxu0 0.0
        %2194 = vmatpush.msra.mxu0 0.0
        %2195 = vmatpush.msra.mxu0 0.0
        %2196 = vmatpush.msra.mxu0 0.0
        %2197 = vmatpush.msra.mxu0 %v2179
        %2198 = vmatpush.msra.mxu0 %v2166
        %2199 = vmatmul.f32.gmra.mxu0 %v2171
        %v2200 = vpop.f32.mrf.mxu0
        %v2201 = vadd.f32 0.0, %v2200
        %2202 = vmatmul.f32.gmra.mxu0 %v2174
        %v2203 = vpop.f32.mrf.mxu0
        %v2204 = vadd.f32 0.0, %v2203
        %2205 = vmatmul.f32.gmra.mxu0 %v2177
        %v2206 = vpop.f32.mrf.mxu0
        %v2207 = vadd.f32 0.0, %v2206
        %2208 = vdwg.mxu0
        %2209 = vmatpush.msra.mxu0 0.0
        %2210 = vmatpush.msra.mxu0 0.0
        %2211 = vmatpush.msra.mxu0 0.0
        %2212 = vmatpush.msra.mxu0 0.0
        %2213 = vmatpush.msra.mxu0 0.0
        %2214 = vmatpush.msra.mxu0 0.0
        %2215 = vmatpush.msra.mxu0 0.0
        %2216 = vmatpush.msra.mxu0 0.0
        %2217 = vmatpush.msra.mxu0 0.0
        %2218 = vmatpush.msra.mxu0 0.0
        %2219 = vmatpush.msra.mxu0 0.0
        %2220 = vmatpush.msra.mxu0 0.0
        %2221 = vmatpush.msra.mxu0 0.0
        %2222 = vmatpush.msra.mxu0 0.0
        %2223 = vmatpush.msra.mxu0 %v2181
        %2224 = vmatpush.msra.mxu0 %v2160
        %2225 = vmatmul.f32.gmra.mxu0 %v2171
        %v2226 = vpop.f32.mrf.mxu0
        %v2227 = vadd.f32 0.0, %v2226
        %2228 = vmatmul.f32.gmra.mxu0 %v2174
        %v2229 = vpop.f32.mrf.mxu0
        %v2230 = vadd.f32 0.0, %v2229
        %2231 = vmatmul.f32.gmra.mxu0 %v2177
        %v2232 = vpop.f32.mrf.mxu0
        %v2233 = vadd.f32 0.0, %v2232
        %2234 = vdwg.mxu0
        %v2235 = vadd.f32 %v2147, %v2201
        %v2236 = vadd.f32 %v2148, %v2227
        %v2237 = vadd.f32 %v2149, %v2204
        %v2238 = vadd.f32 %v2150, %v2230
        %v2239 = vadd.f32 %v2151, %v2207
        %v2240 = vadd.f32 %v2152, %v2233
        %s2241 = scalar_lea.vmem %s4, 96
        %v2242 = vld [vmem:[%s2241] sm:$0xff]
        %v2243 = vld [vmem:[%s2241 + $0x8] sm:$0xff]
        %v2244 = vld [vmem:[%s2241 + $0x10] sm:$0xf]
        %2245 = vrot.lane.b32.xlu0 %v1910, 114
        %v2246 = vpop.permute.xlu0 %2245
        %2247 = vrot.lane.b32.xlu0 %v1911, 114
        %v2248 = vpop.permute.xlu0 %2247
        %2249 = vrot.lane.b32.xlu0 %v1912, 114
        %v2250 = vpop.permute.xlu0 %2249
        %2251 = vrot.lane.b32.xlu0 %v1913, 114
        %v2252 = vpop.permute.xlu0 %2251
        %vm2253 = vcmask 932864
        %v2254 = vsel %vm2253, %v2246, %v2248
        %v2255 = vsel %vm2253, %v2250, %v2252
        %v2259 = vsel %vm1934, %v2242, 0
        %v2262 = vsel %vm1934, %v2243, 0
        %v2265 = vsel %vm1934, %v2244, 0
        %v2267 = vsel %vm1944, %v2255, 0
        %v2269 = vsel %vm1944, %v2252, 0
        %2271 = vmatpush.msra.mxu0 0.0
        %2272 = vmatpush.msra.mxu0 0.0
        %2273 = vmatpush.msra.mxu0 0.0
        %2274 = vmatpush.msra.mxu0 0.0
        %2275 = vmatpush.msra.mxu0 0.0
        %2276 = vmatpush.msra.mxu0 0.0
        %2277 = vmatpush.msra.mxu0 0.0
        %2278 = vmatpush.msra.mxu0 0.0
        %2279 = vmatpush.msra.mxu0 0.0
        %2280 = vmatpush.msra.mxu0 0.0
        %2281 = vmatpush.msra.mxu0 0.0
        %2282 = vmatpush.msra.mxu0 0.0
        %2283 = vmatpush.msra.mxu0 0.0
        %2284 = vmatpush.msra.mxu0 0.0
        %2285 = vmatpush.msra.mxu0 %v2267
        %2286 = vmatpush.msra.mxu0 %v2254
        %2287 = vmatmul.f32.gmra.mxu0 %v2259
        %v2288 = vpop.f32.mrf.mxu0
        %v2289 = vadd.f32 0.0, %v2288
        %2290 = vmatmul.f32.gmra.mxu0 %v2262
        %v2291 = vpop.f32.mrf.mxu0
        %v2292 = vadd.f32 0.0, %v2291
        %2293 = vmatmul.f32.gmra.mxu0 %v2265
        %v2294 = vpop.f32.mrf.mxu0
        %v2295 = vadd.f32 0.0, %v2294
        %2296 = vdwg.mxu0
        %2297 = vmatpush.msra.mxu0 0.0
        %2298 = vmatpush.msra.mxu0 0.0
        %2299 = vmatpush.msra.mxu0 0.0
        %2300 = vmatpush.msra.mxu0 0.0
        %2301 = vmatpush.msra.mxu0 0.0
        %2302 = vmatpush.msra.mxu0 0.0
        %2303 = vmatpush.msra.mxu0 0.0
        %2304 = vmatpush.msra.mxu0 0.0
        %2305 = vmatpush.msra.mxu0 0.0
        %2306 = vmatpush.msra.mxu0 0.0
        %2307 = vmatpush.msra.mxu0 0.0
        %2308 = vmatpush.msra.mxu0 0.0
        %2309 = vmatpush.msra.mxu0 0.0
        %2310 = vmatpush.msra.mxu0 0.0
        %2311 = vmatpush.msra.mxu0 %v2269
        %2312 = vmatpush.msra.mxu0 %v2248
        %2313 = vmatmul.f32.gmra.mxu0 %v2259
        %v2314 = vpop.f32.mrf.mxu0
        %v2315 = vadd.f32 0.0, %v2314
        %2316 = vmatmul.f32.gmra.mxu0 %v2262
        %v2317 = vpop.f32.mrf.mxu0
        %v2318 = vadd.f32 0.0, %v2317
        %2319 = vmatmul.f32.gmra.mxu0 %v2265
        %v2320 = vpop.f32.mrf.mxu0
        %v2321 = vadd.f32 0.0, %v2320
        %2322 = vdwg.mxu0
        %v2323 = vadd.f32 %v2235, %v2289
        %v2324 = vadd.f32 %v2236, %v2315
        %v2325 = vadd.f32 %v2237, %v2292
        %v2326 = vadd.f32 %v2238, %v2318
        %v2327 = vadd.f32 %v2239, %v2295
        %v2328 = vadd.f32 %v2240, %v2321
        %s2329 = scalar_lea.vmem %s4, 120
        %v2330 = vld [vmem:[%s2329] sm:$0xff]
        %v2331 = vld [vmem:[%s2329 + $0x8] sm:$0xff]
        %v2332 = vld [vmem:[%s2329 + $0x10] sm:$0xf]
        %2333 = vrot.lane.b32.xlu0 %v1910, 113
        %v2334 = vpop.permute.xlu0 %2333
        %2335 = vrot.lane.b32.xlu0 %v1911, 113
        %v2336 = vpop.permute.xlu0 %2335
        %2337 = vrot.lane.b32.xlu0 %v1912, 113
        %v2338 = vpop.permute.xlu0 %2337
        %2339 = vrot.lane.b32.xlu0 %v1913, 113
        %v2340 = vpop.permute.xlu0 %2339
        %vm2341 = vcmask 924672
        %v2342 = vsel %vm2341, %v2334, %v2336
        %v2343 = vsel %vm2341, %v2338, %v2340
        %v2347 = vsel %vm1934, %v2330, 0
        %v2350 = vsel %vm1934, %v2331, 0
        %v2353 = vsel %vm1934, %v2332, 0
        %v2355 = vsel %vm1944, %v2343, 0
        %v2357 = vsel %vm1944, %v2340, 0
        %2359 = vmatpush.msra.mxu0 0.0
        %2360 = vmatpush.msra.mxu0 0.0
        %2361 = vmatpush.msra.mxu0 0.0
        %2362 = vmatpush.msra.mxu0 0.0
        %2363 = vmatpush.msra.mxu0 0.0
        %2364 = vmatpush.msra.mxu0 0.0
        %2365 = vmatpush.msra.mxu0 0.0
        %2366 = vmatpush.msra.mxu0 0.0
        %2367 = vmatpush.msra.mxu0 0.0
        %2368 = vmatpush.msra.mxu0 0.0
        %2369 = vmatpush.msra.mxu0 0.0
        %2370 = vmatpush.msra.mxu0 0.0
        %2371 = vmatpush.msra.mxu0 0.0
        %2372 = vmatpush.msra.mxu0 0.0
        %2373 = vmatpush.msra.mxu0 %v2355
        %2374 = vmatpush.msra.mxu0 %v2342
        %2375 = vmatmul.f32.gmra.mxu0 %v2347
        %v2376 = vpop.f32.mrf.mxu0
        %v2377 = vadd.f32 0.0, %v2376
        %2378 = vmatmul.f32.gmra.mxu0 %v2350
        %v2379 = vpop.f32.mrf.mxu0
        %v2380 = vadd.f32 0.0, %v2379
        %2381 = vmatmul.f32.gmra.mxu0 %v2353
        %v2382 = vpop.f32.mrf.mxu0
        %v2383 = vadd.f32 0.0, %v2382
        %2384 = vdwg.mxu0
        %2385 = vmatpush.msra.mxu0 0.0
        %2386 = vmatpush.msra.mxu0 0.0
        %2387 = vmatpush.msra.mxu0 0.0
        %2388 = vmatpush.msra.mxu0 0.0
        %2389 = vmatpush.msra.mxu0 0.0
        %2390 = vmatpush.msra.mxu0 0.0
        %2391 = vmatpush.msra.mxu0 0.0
        %2392 = vmatpush.msra.mxu0 0.0
        %2393 = vmatpush.msra.mxu0 0.0
        %2394 = vmatpush.msra.mxu0 0.0
        %2395 = vmatpush.msra.mxu0 0.0
        %2396 = vmatpush.msra.mxu0 0.0
        %2397 = vmatpush.msra.mxu0 0.0
        %2398 = vmatpush.msra.mxu0 0.0
        %2399 = vmatpush.msra.mxu0 %v2357
        %2400 = vmatpush.msra.mxu0 %v2336
        %2401 = vmatmul.f32.gmra.mxu0 %v2347
        %v2402 = vpop.f32.mrf.mxu0
        %v2403 = vadd.f32 0.0, %v2402
        %2404 = vmatmul.f32.gmra.mxu0 %v2350
        %v2405 = vpop.f32.mrf.mxu0
        %v2406 = vadd.f32 0.0, %v2405
        %2407 = vmatmul.f32.gmra.mxu0 %v2353
        %v2408 = vpop.f32.mrf.mxu0
        %v2409 = vadd.f32 0.0, %v2408
        %2410 = vdwg.mxu0
        %v2411 = vadd.f32 %v2323, %v2377
        %v2412 = vadd.f32 %v2324, %v2403
        %v2413 = vadd.f32 %v2325, %v2380
        %v2414 = vadd.f32 %v2326, %v2406
        %v2415 = vadd.f32 %v2327, %v2383
        %v2416 = vadd.f32 %v2328, %v2409
        %s2417 = scalar_lea.vmem %s4, 144
        %v2418 = vld [vmem:[%s2417] sm:$0xff]
        %v2419 = vld [vmem:[%s2417 + $0x8] sm:$0xff]
        %v2420 = vld [vmem:[%s2417 + $0x10] sm:$0xf]
        %2421 = vrot.lane.b32.xlu0 %v1910, 102
        %v2422 = vpop.permute.xlu0 %2421
        %2423 = vrot.lane.b32.xlu0 %v1911, 102
        %v2424 = vpop.permute.xlu0 %2423
        %2425 = vrot.lane.b32.xlu0 %v1912, 102
        %v2426 = vpop.permute.xlu0 %2425
        %2427 = vrot.lane.b32.xlu0 %v1913, 102
        %v2428 = vpop.permute.xlu0 %2427
        %vm2429 = vcmask 834560
        %v2430 = vsel %vm2429, %v2422, %v2424
        %v2431 = vsel %vm2429, %v2426, %v2428
        %v2435 = vsel %vm1934, %v2418, 0
        %v2438 = vsel %vm1934, %v2419, 0
        %v2441 = vsel %vm1934, %v2420, 0
        %v2443 = vsel %vm1944, %v2431, 0
        %v2445 = vsel %vm1944, %v2428, 0
        %2447 = vmatpush.msra.mxu0 0.0
        %2448 = vmatpush.msra.mxu0 0.0
        %2449 = vmatpush.msra.mxu0 0.0
        %2450 = vmatpush.msra.mxu0 0.0
        %2451 = vmatpush.msra.mxu0 0.0
        %2452 = vmatpush.msra.mxu0 0.0
        %2453 = vmatpush.msra.mxu0 0.0
        %2454 = vmatpush.msra.mxu0 0.0
        %2455 = vmatpush.msra.mxu0 0.0
        %2456 = vmatpush.msra.mxu0 0.0
        %2457 = vmatpush.msra.mxu0 0.0
        %2458 = vmatpush.msra.mxu0 0.0
        %2459 = vmatpush.msra.mxu0 0.0
        %2460 = vmatpush.msra.mxu0 0.0
        %2461 = vmatpush.msra.mxu0 %v2443
        %2462 = vmatpush.msra.mxu0 %v2430
        %2463 = vmatmul.f32.gmra.mxu0 %v2435
        %v2464 = vpop.f32.mrf.mxu0
        %v2465 = vadd.f32 0.0, %v2464
        %2466 = vmatmul.f32.gmra.mxu0 %v2438
        %v2467 = vpop.f32.mrf.mxu0
        %v2468 = vadd.f32 0.0, %v2467
        %2469 = vmatmul.f32.gmra.mxu0 %v2441
        %v2470 = vpop.f32.mrf.mxu0
        %v2471 = vadd.f32 0.0, %v2470
        %2472 = vdwg.mxu0
        %2473 = vmatpush.msra.mxu0 0.0
        %2474 = vmatpush.msra.mxu0 0.0
        %2475 = vmatpush.msra.mxu0 0.0
        %2476 = vmatpush.msra.mxu0 0.0
        %2477 = vmatpush.msra.mxu0 0.0
        %2478 = vmatpush.msra.mxu0 0.0
        %2479 = vmatpush.msra.mxu0 0.0
        %2480 = vmatpush.msra.mxu0 0.0
        %2481 = vmatpush.msra.mxu0 0.0
        %2482 = vmatpush.msra.mxu0 0.0
        %2483 = vmatpush.msra.mxu0 0.0
        %2484 = vmatpush.msra.mxu0 0.0
        %2485 = vmatpush.msra.mxu0 0.0
        %2486 = vmatpush.msra.mxu0 0.0
        %2487 = vmatpush.msra.mxu0 %v2445
        %2488 = vmatpush.msra.mxu0 %v2424
        %2489 = vmatmul.f32.gmra.mxu0 %v2435
        %v2490 = vpop.f32.mrf.mxu0
        %v2491 = vadd.f32 0.0, %v2490
        %2492 = vmatmul.f32.gmra.mxu0 %v2438
        %v2493 = vpop.f32.mrf.mxu0
        %v2494 = vadd.f32 0.0, %v2493
        %2495 = vmatmul.f32.gmra.mxu0 %v2441
        %v2496 = vpop.f32.mrf.mxu0
        %v2497 = vadd.f32 0.0, %v2496
        %2498 = vdwg.mxu0
        %v2499 = vadd.f32 %v2411, %v2465
        %v2500 = vadd.f32 %v2412, %v2491
        %v2501 = vadd.f32 %v2413, %v2468
        %v2502 = vadd.f32 %v2414, %v2494
        %v2503 = vadd.f32 %v2415, %v2471
        %v2504 = vadd.f32 %v2416, %v2497
        %s2505 = scalar_lea.vmem %s4, 168
        %v2506 = vld [vmem:[%s2505] sm:$0xff]
        %v2507 = vld [vmem:[%s2505 + $0x8] sm:$0xff]
        %v2508 = vld [vmem:[%s2505 + $0x10] sm:$0xf]
        %2509 = vrot.lane.b32.xlu0 %v1910, 101
        %v2510 = vpop.permute.xlu0 %2509
        %2511 = vrot.lane.b32.xlu0 %v1911, 101
        %v2512 = vpop.permute.xlu0 %2511
        %2513 = vrot.lane.b32.xlu0 %v1912, 101
        %v2514 = vpop.permute.xlu0 %2513
        %2515 = vrot.lane.b32.xlu0 %v1913, 101
        %v2516 = vpop.permute.xlu0 %2515
        %vm2517 = vcmask 826368
        %v2518 = vsel %vm2517, %v2510, %v2512
        %v2519 = vsel %vm2517, %v2514, %v2516
        %v2523 = vsel %vm1934, %v2506, 0
        %v2526 = vsel %vm1934, %v2507, 0
        %v2529 = vsel %vm1934, %v2508, 0
        %v2531 = vsel %vm1944, %v2519, 0
        %v2533 = vsel %vm1944, %v2516, 0
        %2535 = vmatpush.msra.mxu0 0.0
        %2536 = vmatpush.msra.mxu0 0.0
        %2537 = vmatpush.msra.mxu0 0.0
        %2538 = vmatpush.msra.mxu0 0.0
        %2539 = vmatpush.msra.mxu0 0.0
        %2540 = vmatpush.msra.mxu0 0.0
        %2541 = vmatpush.msra.mxu0 0.0
        %2542 = vmatpush.msra.mxu0 0.0
        %2543 = vmatpush.msra.mxu0 0.0
        %2544 = vmatpush.msra.mxu0 0.0
        %2545 = vmatpush.msra.mxu0 0.0
        %2546 = vmatpush.msra.mxu0 0.0
        %2547 = vmatpush.msra.mxu0 0.0
        %2548 = vmatpush.msra.mxu0 0.0
        %2549 = vmatpush.msra.mxu0 %v2531
        %2550 = vmatpush.msra.mxu0 %v2518
        %2551 = vmatmul.f32.gmra.mxu0 %v2523
        %v2552 = vpop.f32.mrf.mxu0
        %v2553 = vadd.f32 0.0, %v2552
        %2554 = vmatmul.f32.gmra.mxu0 %v2526
        %v2555 = vpop.f32.mrf.mxu0
        %v2556 = vadd.f32 0.0, %v2555
        %2557 = vmatmul.f32.gmra.mxu0 %v2529
        %v2558 = vpop.f32.mrf.mxu0
        %v2559 = vadd.f32 0.0, %v2558
        %2560 = vdwg.mxu0
        %2561 = vmatpush.msra.mxu0 0.0
        %2562 = vmatpush.msra.mxu0 0.0
        %2563 = vmatpush.msra.mxu0 0.0
        %2564 = vmatpush.msra.mxu0 0.0
        %2565 = vmatpush.msra.mxu0 0.0
        %2566 = vmatpush.msra.mxu0 0.0
        %2567 = vmatpush.msra.mxu0 0.0
        %2568 = vmatpush.msra.mxu0 0.0
        %2569 = vmatpush.msra.mxu0 0.0
        %2570 = vmatpush.msra.mxu0 0.0
        %2571 = vmatpush.msra.mxu0 0.0
        %2572 = vmatpush.msra.mxu0 0.0
        %2573 = vmatpush.msra.mxu0 0.0
        %2574 = vmatpush.msra.mxu0 0.0
        %2575 = vmatpush.msra.mxu0 %v2533
        %2576 = vmatpush.msra.mxu0 %v2512
        %2577 = vmatmul.f32.gmra.mxu0 %v2523
        %v2578 = vpop.f32.mrf.mxu0
        %v2579 = vadd.f32 0.0, %v2578
        %2580 = vmatmul.f32.gmra.mxu0 %v2526
        %v2581 = vpop.f32.mrf.mxu0
        %v2582 = vadd.f32 0.0, %v2581
        %2583 = vmatmul.f32.gmra.mxu0 %v2529
        %v2584 = vpop.f32.mrf.mxu0
        %v2585 = vadd.f32 0.0, %v2584
        %2586 = vdwg.mxu0
        %v2587 = vadd.f32 %v2499, %v2553
        %v2588 = vadd.f32 %v2500, %v2579
        %v2589 = vadd.f32 %v2501, %v2556
        %v2590 = vadd.f32 %v2502, %v2582
        %v2591 = vadd.f32 %v2503, %v2559
        %v2592 = vadd.f32 %v2504, %v2585
        %s2593 = scalar_lea.vmem %s4, 192
        %v2594 = vld [vmem:[%s2593] sm:$0xff]
        %v2595 = vld [vmem:[%s2593 + $0x8] sm:$0xff]
        %v2596 = vld [vmem:[%s2593 + $0x10] sm:$0xf]
        %2597 = vrot.lane.b32.xlu0 %v1910, 100
        %v2598 = vpop.permute.xlu0 %2597
        %2599 = vrot.lane.b32.xlu0 %v1911, 100
        %v2600 = vpop.permute.xlu0 %2599
        %2601 = vrot.lane.b32.xlu0 %v1912, 100
        %v2602 = vpop.permute.xlu0 %2601
        %2603 = vrot.lane.b32.xlu0 %v1913, 100
        %v2604 = vpop.permute.xlu0 %2603
        %v2605 = vsel %vm672, %v2598, %v2600
        %v2606 = vsel %vm672, %v2602, %v2604
        %v2610 = vsel %vm1934, %v2594, 0
        %v2613 = vsel %vm1934, %v2595, 0
        %v2616 = vsel %vm1934, %v2596, 0
        %v2618 = vsel %vm1944, %v2606, 0
        %v2620 = vsel %vm1944, %v2604, 0
        %2622 = vmatpush.msra.mxu0 0.0
        %2623 = vmatpush.msra.mxu0 0.0
        %2624 = vmatpush.msra.mxu0 0.0
        %2625 = vmatpush.msra.mxu0 0.0
        %2626 = vmatpush.msra.mxu0 0.0
        %2627 = vmatpush.msra.mxu0 0.0
        %2628 = vmatpush.msra.mxu0 0.0
        %2629 = vmatpush.msra.mxu0 0.0
        %2630 = vmatpush.msra.mxu0 0.0
        %2631 = vmatpush.msra.mxu0 0.0
        %2632 = vmatpush.msra.mxu0 0.0
        %2633 = vmatpush.msra.mxu0 0.0
        %2634 = vmatpush.msra.mxu0 0.0
        %2635 = vmatpush.msra.mxu0 0.0
        %2636 = vmatpush.msra.mxu0 %v2618
        %2637 = vmatpush.msra.mxu0 %v2605
        %2638 = vmatmul.f32.gmra.mxu0 %v2610
        %v2639 = vpop.f32.mrf.mxu0
        %v2640 = vadd.f32 0.0, %v2639
        %2641 = vmatmul.f32.gmra.mxu0 %v2613
        %v2642 = vpop.f32.mrf.mxu0
        %v2643 = vadd.f32 0.0, %v2642
        %2644 = vmatmul.f32.gmra.mxu0 %v2616
        %v2645 = vpop.f32.mrf.mxu0
        %v2646 = vadd.f32 0.0, %v2645
        %2647 = vdwg.mxu0
        %2648 = vmatpush.msra.mxu0 0.0
        %2649 = vmatpush.msra.mxu0 0.0
        %2650 = vmatpush.msra.mxu0 0.0
        %2651 = vmatpush.msra.mxu0 0.0
        %2652 = vmatpush.msra.mxu0 0.0
        %2653 = vmatpush.msra.mxu0 0.0
        %2654 = vmatpush.msra.mxu0 0.0
        %2655 = vmatpush.msra.mxu0 0.0
        %2656 = vmatpush.msra.mxu0 0.0
        %2657 = vmatpush.msra.mxu0 0.0
        %2658 = vmatpush.msra.mxu0 0.0
        %2659 = vmatpush.msra.mxu0 0.0
        %2660 = vmatpush.msra.mxu0 0.0
        %2661 = vmatpush.msra.mxu0 0.0
        %2662 = vmatpush.msra.mxu0 %v2620
        %2663 = vmatpush.msra.mxu0 %v2600
        %2664 = vmatmul.f32.gmra.mxu0 %v2610
        %v2665 = vpop.f32.mrf.mxu0
        %v2666 = vadd.f32 0.0, %v2665
        %2667 = vmatmul.f32.gmra.mxu0 %v2613
        %v2668 = vpop.f32.mrf.mxu0
        %v2669 = vadd.f32 0.0, %v2668
        %2670 = vmatmul.f32.gmra.mxu0 %v2616
        %v2671 = vpop.f32.mrf.mxu0
        %v2672 = vadd.f32 0.0, %v2671
        %2673 = vdwg.mxu0
        %v2674 = vadd.f32 %v2587, %v2640
        %v2675 = vadd.f32 %v2588, %v2666
        %v2676 = vadd.f32 %v2589, %v2643
        %v2677 = vadd.f32 %v2590, %v2669
        %v2678 = vadd.f32 %v2591, %v2646
        %v2679 = vadd.f32 %v2592, %v2672
        %v2680 = vld [vmem:[%s5] sm:$0xff]
        %v2681 = vld [vmem:[%s5 + $0x8] sm:$0xff]
        %v2682 = vld [vmem:[%s5 + $0x10] sm:$0xf]
        %2684 = vset.pattern.permute.xlu0 0
        %2685 = vperm.xlu0 %2684, %v2680
        %v2686 = vpop.permute.xlu0 %2685
        %2689 = vset.pattern.permute.xlu0 0
        %2690 = vperm.xlu0 %2689, %v2681
        %v2691 = vpop.permute.xlu0 %2690
        %2694 = vset.pattern.permute.xlu0 0
        %2695 = vperm.xlu0 %2694, %v2682
        %v2696 = vpop.permute.xlu0 %2695
        %v2698 = vadd.f32 %v2674, %v2686
        %v2699 = vadd.f32 %v2675, %v2686
        %v2700 = vadd.f32 %v2676, %v2691
        %v2701 = vadd.f32 %v2677, %v2691
        %v2702 = vadd.f32 %v2678, %v2696
        %v2703 = vadd.f32 %v2679, %v2696
        %v2704 = vmax.f32 %v2698, 0.0
        %v2705 = vmax.f32 %v2699, 0.0
        %v2706 = vmax.f32 %v2700, 0.0
        %v2707 = vmax.f32 %v2701, 0.0
        %v2708 = vmax.f32 %v2702, 0.0
        %v2709 = vmax.f32 %v2703, 0.0
        %2710 = vst [vmem:[#allocation4] sm:$0xff] %v2704
        %vm2711 = vcmask 105472
        %2712 = vst.msk [vmem:[#allocation4 + $0x8] sm:$0xff] %vm2711, %v2705
        %2713 = vst [vmem:[#allocation4 + $0x10] sm:$0xff] %v2706
        %2714 = vst.msk [vmem:[#allocation4 + $0x18] sm:$0xff] %vm2711, %v2707
        %2715 = vst [vmem:[#allocation4 + $0x20] sm:$0xf] %v2708
        %vm2716 = vcmask 101376
        %2717 = vst.msk [vmem:[#allocation4 + $0x28] sm:$0xf] %vm2716, %v2709
        %v2718 = vld [vmem:[#allocation4] sm:$0xff]
        %v2719 = vld [vmem:[#allocation4 + $0x10] sm:$0xff]
        %v2720 = vld [vmem:[#allocation4 + $0x20] sm:$0xf]
        %2724 = vrot.lane.b32.xlu0 %v2718, 127
        %v2725 = vpop.permute.xlu0 %2724
        %2726 = vrot.lane.b32.xlu0 %v2719, 127
        %v2727 = vpop.permute.xlu0 %2726
        %2728 = vrot.lane.b32.xlu0 %v2720, 127
        %v2729 = vpop.permute.xlu0 %2728
        %v2733 = vmax.f32 %v2718, %v2725
        %v2734 = vmax.f32 %v2719, %v2727
        %v2735 = vmax.f32 %v2720, %v2729
        %2739 = vrot.lane.b32.xlu0 %v2733, 115
        %v2740 = vpop.permute.xlu0 %2739
        %2741 = vrot.lane.b32.xlu0 %v2734, 115
        %v2742 = vpop.permute.xlu0 %2741
        %2743 = vrot.lane.b32.xlu0 %v2735, 115
        %v2744 = vpop.permute.xlu0 %2743
        %v2748 = vmax.f32 %v2733, %v2740
        %v2749 = vmax.f32 %v2734, %v2742
        %v2750 = vmax.f32 %v2735, %v2744
        %v2751 = vld [vmem:[%s6] sm:$0xff]
        %v2752 = vld [vmem:[%s6 + $0x8] sm:$0xff]
        %v2753 = vld [vmem:[%s6 + $0x10] sm:$0xff]
        %v2754 = vld [vmem:[%s6 + $0x18] sm:$0xff]
        %v2755 = vld [vmem:[%s6 + $0x20] sm:$0xff]
        %v2756 = vld [vmem:[%s6 + $0x28] sm:$0xff]
        %v2757 = vld [vmem:[%s6 + $0x30] sm:$0xff]
        %v2758 = vld [vmem:[%s6 + $0x38] sm:$0xff]
        %v2759 = vld [vmem:[%s6 + $0x40] sm:$0xff]
        %v2760 = vld [vmem:[%s6 + $0x48] sm:$0xff]
        %v2761 = vld [vmem:[%s6 + $0x50] sm:$0xff]
        %v2762 = vld [vmem:[%s6 + $0x58] sm:$0xff]
        %v2763 = vld [vmem:[%s6 + $0x60] sm:$0xff]
        %v2764 = vld [vmem:[%s6 + $0x68] sm:$0xff]
        %v2765 = vld [vmem:[%s6 + $0x70] sm:$0x1]
        %v2767 = vsel %vm2341, %v2748, 0
        %v2770 = vsel %vm2341, %v2749, 0
        %v2773 = vsel %vm2341, %v2750, 0
        %v2776 = vsel %vm1618, %v2765, 0
        %2778 = vmatpush.msra.mxu0 0.0
        %2779 = vmatpush.msra.mxu0 %v2776
        %2780 = vmatpush.msra.mxu0 %v2764
        %2781 = vmatpush.msra.mxu0 %v2763
        %2782 = vmatpush.msra.mxu0 %v2762
        %2783 = vmatpush.msra.mxu0 %v2761
        %2784 = vmatpush.msra.mxu0 %v2760
        %2785 = vmatpush.msra.mxu0 %v2759
        %2786 = vmatpush.msra.mxu0 %v2758
        %2787 = vmatpush.msra.mxu0 %v2757
        %2788 = vmatpush.msra.mxu0 %v2756
        %2789 = vmatpush.msra.mxu0 %v2755
        %2790 = vmatpush.msra.mxu0 %v2754
        %2791 = vmatpush.msra.mxu0 %v2753
        %2792 = vmatpush.msra.mxu0 %v2752
        %2793 = vmatpush.msra.mxu0 %v2751
        %2794 = vmatmul.f32.gmra.mxu0 %v2767
        %v2795 = vpop.f32.mrf.mxu0
        %v2796 = vadd.f32 0.0, %v2795
        %2797 = vmatmul.f32.gmra.mxu0 %v2770
        %v2798 = vpop.f32.mrf.mxu0
        %v2799 = vadd.f32 0.0, %v2798
        %2800 = vmatmul.f32.gmra.mxu0 %v2773
        %v2801 = vpop.f32.mrf.mxu0
        %v2802 = vadd.f32 0.0, %v2801
        %2803 = vdwg.mxu0
        %v2804 = vld [vmem:[%s8] sm:$0x1]
        %v2805 = vld [vmem:[%s7] sm:$0xff]
        %v2806 = vld [vmem:[%s7 + $0x8] sm:$0xff]
        %v2807 = vld [vmem:[%s7 + $0x10] sm:$0xff]
        %v2808 = vld [vmem:[%s7 + $0x18] sm:$0x1]
        %vm2809 = vcmask 203776
        %v2811 = vsel %vm2809, %v2796, 0
        %v2814 = vsel %vm1618, %v2808, 0
        %2816 = vmatpush.msra.mxu0 0.0
        %2817 = vmatpush.msra.mxu0 0.0
        %2818 = vmatpush.msra.mxu0 0.0
        %2819 = vmatpush.msra.mxu0 0.0
        %2820 = vmatpush.msra.mxu0 0.0
        %2821 = vmatpush.msra.mxu0 0.0
        %2822 = vmatpush.msra.mxu0 0.0
        %2823 = vmatpush.msra.mxu0 0.0
        %2824 = vmatpush.msra.mxu0 0.0
        %2825 = vmatpush.msra.mxu0 0.0
        %2826 = vmatpush.msra.mxu0 0.0
        %2827 = vmatpush.msra.mxu0 0.0
        %2828 = vmatpush.msra.mxu0 %v2814
        %2829 = vmatpush.msra.mxu0 %v2807
        %2830 = vmatpush.msra.mxu0 %v2806
        %2831 = vmatpush.msra.mxu0 %v2805
        %2832 = vmatmul.f32.gmra.mxu0 %v2811
        %v2833 = vpop.f32.mrf.mxu0
        %v2834 = vadd.f32 0.0, %v2833
        %2835 = vdwg.mxu0
        %v2836 = vadd.f32 %v2804, %v2834
        %s2837 = scalar_lea.vmem %s7, 32
        %v2838 = vld [vmem:[%s2837] sm:$0xff]
        %v2839 = vld [vmem:[%s2837 + $0x8] sm:$0xff]
        %v2840 = vld [vmem:[%s2837 + $0x10] sm:$0xff]
        %v2841 = vld [vmem:[%s2837 + $0x18] sm:$0x1]
        %v2842 = vrot.slane %v2796, 1
        %v2843 = vsel %vm2809, %v2842, 0
        %v2846 = vsel %vm1618, %v2841, 0
        %2848 = vmatpush.msra.mxu0 0.0
        %2849 = vmatpush.msra.mxu0 0.0
        %2850 = vmatpush.msra.mxu0 0.0
        %2851 = vmatpush.msra.mxu0 0.0
        %2852 = vmatpush.msra.mxu0 0.0
        %2853 = vmatpush.msra.mxu0 0.0
        %2854 = vmatpush.msra.mxu0 0.0
        %2855 = vmatpush.msra.mxu0 0.0
        %2856 = vmatpush.msra.mxu0 0.0
        %2857 = vmatpush.msra.mxu0 0.0
        %2858 = vmatpush.msra.mxu0 0.0
        %2859 = vmatpush.msra.mxu0 0.0
        %2860 = vmatpush.msra.mxu0 %v2846
        %2861 = vmatpush.msra.mxu0 %v2840
        %2862 = vmatpush.msra.mxu0 %v2839
        %2863 = vmatpush.msra.mxu0 %v2838
        %2864 = vmatmul.f32.gmra.mxu0 %v2843
        %v2865 = vpop.f32.mrf.mxu0
        %v2866 = vadd.f32 0.0, %v2865
        %2867 = vdwg.mxu0
        %v2868 = vadd.f32 %v2836, %v2866
        %s2869 = scalar_lea.vmem %s7, 64
        %v2870 = vld [vmem:[%s2869] sm:$0xff]
        %v2871 = vld [vmem:[%s2869 + $0x8] sm:$0xff]
        %v2872 = vld [vmem:[%s2869 + $0x10] sm:$0xff]
        %v2873 = vld [vmem:[%s2869 + $0x18] sm:$0x1]
        %v2874 = vrot.slane %v2796, 2
        %v2875 = vsel %vm2809, %v2874, 0
        %v2878 = vsel %vm1618, %v2873, 0
        %2880 = vmatpush.msra.mxu0 0.0
        %2881 = vmatpush.msra.mxu0 0.0
        %2882 = vmatpush.msra.mxu0 0.0
        %2883 = vmatpush.msra.mxu0 0.0
        %2884 = vmatpush.msra.mxu0 0.0
        %2885 = vmatpush.msra.mxu0 0.0
        %2886 = vmatpush.msra.mxu0 0.0
        %2887 = vmatpush.msra.mxu0 0.0
        %2888 = vmatpush.msra.mxu0 0.0
        %2889 = vmatpush.msra.mxu0 0.0
        %2890 = vmatpush.msra.mxu0 0.0
        %2891 = vmatpush.msra.mxu0 0.0
        %2892 = vmatpush.msra.mxu0 %v2878
        %2893 = vmatpush.msra.mxu0 %v2872
        %2894 = vmatpush.msra.mxu0 %v2871
        %2895 = vmatpush.msra.mxu0 %v2870
        %2896 = vmatmul.f32.gmra.mxu0 %v2875
        %v2897 = vpop.f32.mrf.mxu0
        %v2898 = vadd.f32 0.0, %v2897
        %2899 = vdwg.mxu0
        %v2900 = vadd.f32 %v2868, %v2898
        %s2901 = scalar_lea.vmem %s7, 96
        %v2902 = vld [vmem:[%s2901] sm:$0xff]
        %v2903 = vld [vmem:[%s2901 + $0x8] sm:$0xff]
        %v2904 = vld [vmem:[%s2901 + $0x10] sm:$0xff]
        %v2905 = vld [vmem:[%s2901 + $0x18] sm:$0x1]
        %v2906 = vrot.slane %v2796, 3
        %v2907 = vsel %vm2809, %v2906, 0
        %v2910 = vsel %vm1618, %v2905, 0
        %2912 = vmatpush.msra.mxu0 0.0
        %2913 = vmatpush.msra.mxu0 0.0
        %2914 = vmatpush.msra.mxu0 0.0
        %2915 = vmatpush.msra.mxu0 0.0
        %2916 = vmatpush.msra.mxu0 0.0
        %2917 = vmatpush.msra.mxu0 0.0
        %2918 = vmatpush.msra.mxu0 0.0
        %2919 = vmatpush.msra.mxu0 0.0
        %2920 = vmatpush.msra.mxu0 0.0
        %2921 = vmatpush.msra.mxu0 0.0
        %2922 = vmatpush.msra.mxu0 0.0
        %2923 = vmatpush.msra.mxu0 0.0
        %2924 = vmatpush.msra.mxu0 %v2910
        %2925 = vmatpush.msra.mxu0 %v2904
        %2926 = vmatpush.msra.mxu0 %v2903
        %2927 = vmatpush.msra.mxu0 %v2902
        %2928 = vmatmul.f32.gmra.mxu0 %v2907
        %v2929 = vpop.f32.mrf.mxu0
        %v2930 = vadd.f32 0.0, %v2929
        %2931 = vdwg.mxu0
        %v2932 = vadd.f32 %v2900, %v2930
        %s2933 = scalar_lea.vmem %s7, 128
        %v2934 = vld [vmem:[%s2933] sm:$0xff]
        %v2935 = vld [vmem:[%s2933 + $0x8] sm:$0xff]
        %v2936 = vld [vmem:[%s2933 + $0x10] sm:$0xff]
        %v2937 = vld [vmem:[%s2933 + $0x18] sm:$0x1]
        %v2938 = vrot.slane %v2796, 4
        %v2939 = vsel %vm2809, %v2938, 0
        %v2942 = vsel %vm1618, %v2937, 0
        %2944 = vmatpush.msra.mxu0 0.0
        %2945 = vmatpush.msra.mxu0 0.0
        %2946 = vmatpush.msra.mxu0 0.0
        %2947 = vmatpush.msra.mxu0 0.0
        %2948 = vmatpush.msra.mxu0 0.0
        %2949 = vmatpush.msra.mxu0 0.0
        %2950 = vmatpush.msra.mxu0 0.0
        %2951 = vmatpush.msra.mxu0 0.0
        %2952 = vmatpush.msra.mxu0 0.0
        %2953 = vmatpush.msra.mxu0 0.0
        %2954 = vmatpush.msra.mxu0 0.0
        %2955 = vmatpush.msra.mxu0 0.0
        %2956 = vmatpush.msra.mxu0 %v2942
        %2957 = vmatpush.msra.mxu0 %v2936
        %2958 = vmatpush.msra.mxu0 %v2935
        %2959 = vmatpush.msra.mxu0 %v2934
        %2960 = vmatmul.f32.gmra.mxu0 %v2939
        %v2961 = vpop.f32.mrf.mxu0
        %v2962 = vadd.f32 0.0, %v2961
        %2963 = vdwg.mxu0
        %v2964 = vadd.f32 %v2932, %v2962
        %s2965 = scalar_lea.vmem %s7, 160
        %v2966 = vld [vmem:[%s2965] sm:$0xff]
        %v2967 = vld [vmem:[%s2965 + $0x8] sm:$0xff]
        %v2968 = vld [vmem:[%s2965 + $0x10] sm:$0xff]
        %v2969 = vld [vmem:[%s2965 + $0x18] sm:$0x1]
        %v2970 = vrot.slane %v2796, 5
        %v2971 = vsel %vm2809, %v2970, 0
        %v2974 = vsel %vm1618, %v2969, 0
        %2976 = vmatpush.msra.mxu0 0.0
        %2977 = vmatpush.msra.mxu0 0.0
        %2978 = vmatpush.msra.mxu0 0.0
        %2979 = vmatpush.msra.mxu0 0.0
        %2980 = vmatpush.msra.mxu0 0.0
        %2981 = vmatpush.msra.mxu0 0.0
        %2982 = vmatpush.msra.mxu0 0.0
        %2983 = vmatpush.msra.mxu0 0.0
        %2984 = vmatpush.msra.mxu0 0.0
        %2985 = vmatpush.msra.mxu0 0.0
        %2986 = vmatpush.msra.mxu0 0.0
        %2987 = vmatpush.msra.mxu0 0.0
        %2988 = vmatpush.msra.mxu0 %v2974
        %2989 = vmatpush.msra.mxu0 %v2968
        %2990 = vmatpush.msra.mxu0 %v2967
        %2991 = vmatpush.msra.mxu0 %v2966
        %2992 = vmatmul.f32.gmra.mxu0 %v2971
        %v2993 = vpop.f32.mrf.mxu0
        %v2994 = vadd.f32 0.0, %v2993
        %2995 = vdwg.mxu0
        %v2996 = vadd.f32 %v2964, %v2994
        %s2997 = scalar_lea.vmem %s7, 192
        %v2998 = vld [vmem:[%s2997] sm:$0xff]
        %v2999 = vld [vmem:[%s2997 + $0x8] sm:$0xff]
        %v3000 = vld [vmem:[%s2997 + $0x10] sm:$0xff]
        %v3001 = vld [vmem:[%s2997 + $0x18] sm:$0x1]
        %v3002 = vrot.slane %v2796, 6
        %v3003 = vsel %vm2809, %v3002, 0
        %v3006 = vsel %vm1618, %v3001, 0
        %3008 = vmatpush.msra.mxu0 0.0
        %3009 = vmatpush.msra.mxu0 0.0
        %3010 = vmatpush.msra.mxu0 0.0
        %3011 = vmatpush.msra.mxu0 0.0
        %3012 = vmatpush.msra.mxu0 0.0
        %3013 = vmatpush.msra.mxu0 0.0
        %3014 = vmatpush.msra.mxu0 0.0
        %3015 = vmatpush.msra.mxu0 0.0
        %3016 = vmatpush.msra.mxu0 0.0
        %3017 = vmatpush.msra.mxu0 0.0
        %3018 = vmatpush.msra.mxu0 0.0
        %3019 = vmatpush.msra.mxu0 0.0
        %3020 = vmatpush.msra.mxu0 %v3006
        %3021 = vmatpush.msra.mxu0 %v3000
        %3022 = vmatpush.msra.mxu0 %v2999
        %3023 = vmatpush.msra.mxu0 %v2998
        %3024 = vmatmul.f32.gmra.mxu0 %v3003
        %v3025 = vpop.f32.mrf.mxu0
        %v3026 = vadd.f32 0.0, %v3025
        %3027 = vdwg.mxu0
        %v3028 = vadd.f32 %v2996, %v3026
        %s3029 = scalar_lea.vmem %s7, 224
        %v3030 = vld [vmem:[%s3029] sm:$0xff]
        %v3031 = vld [vmem:[%s3029 + $0x8] sm:$0xff]
        %v3032 = vld [vmem:[%s3029 + $0x10] sm:$0xff]
        %v3033 = vld [vmem:[%s3029 + $0x18] sm:$0x1]
        %v3034 = vrot.slane %v2796, 7
        %v3035 = vsel %vm2809, %v3034, 0
        %v3038 = vsel %vm1618, %v3033, 0
        %3040 = vmatpush.msra.mxu0 0.0
        %3041 = vmatpush.msra.mxu0 0.0
        %3042 = vmatpush.msra.mxu0 0.0
        %3043 = vmatpush.msra.mxu0 0.0
        %3044 = vmatpush.msra.mxu0 0.0
        %3045 = vmatpush.msra.mxu0 0.0
        %3046 = vmatpush.msra.mxu0 0.0
        %3047 = vmatpush.msra.mxu0 0.0
        %3048 = vmatpush.msra.mxu0 0.0
        %3049 = vmatpush.msra.mxu0 0.0
        %3050 = vmatpush.msra.mxu0 0.0
        %3051 = vmatpush.msra.mxu0 0.0
        %3052 = vmatpush.msra.mxu0 %v3038
        %3053 = vmatpush.msra.mxu0 %v3032
        %3054 = vmatpush.msra.mxu0 %v3031
        %3055 = vmatpush.msra.mxu0 %v3030
        %3056 = vmatmul.f32.gmra.mxu0 %v3035
        %v3057 = vpop.f32.mrf.mxu0
        %v3058 = vadd.f32 0.0, %v3057
        %3059 = vdwg.mxu0
        %v3060 = vadd.f32 %v3028, %v3058
        %s3061 = scalar_lea.vmem %s7, 256
        %v3062 = vld [vmem:[%s3061] sm:$0xff]
        %v3063 = vld [vmem:[%s3061 + $0x8] sm:$0xff]
        %v3064 = vld [vmem:[%s3061 + $0x10] sm:$0xff]
        %v3065 = vld [vmem:[%s3061 + $0x18] sm:$0x1]
        %v3067 = vsel %vm2809, %v2799, 0
        %v3070 = vsel %vm1618, %v3065, 0
        %3072 = vmatpush.msra.mxu0 0.0
        %3073 = vmatpush.msra.mxu0 0.0
        %3074 = vmatpush.msra.mxu0 0.0
        %3075 = vmatpush.msra.mxu0 0.0
        %3076 = vmatpush.msra.mxu0 0.0
        %3077 = vmatpush.msra.mxu0 0.0
        %3078 = vmatpush.msra.mxu0 0.0
        %3079 = vmatpush.msra.mxu0 0.0
        %3080 = vmatpush.msra.mxu0 0.0
        %3081 = vmatpush.msra.mxu0 0.0
        %3082 = vmatpush.msra.mxu0 0.0
        %3083 = vmatpush.msra.mxu0 0.0
        %3084 = vmatpush.msra.mxu0 %v3070
        %3085 = vmatpush.msra.mxu0 %v3064
        %3086 = vmatpush.msra.mxu0 %v3063
        %3087 = vmatpush.msra.mxu0 %v3062
        %3088 = vmatmul.f32.gmra.mxu0 %v3067
        %v3089 = vpop.f32.mrf.mxu0
        %v3090 = vadd.f32 0.0, %v3089
        %3091 = vdwg.mxu0
        %v3092 = vadd.f32 %v3060, %v3090
        %s3093 = scalar_lea.vmem %s7, 288
        %v3094 = vld [vmem:[%s3093] sm:$0xff]
        %v3095 = vld [vmem:[%s3093 + $0x8] sm:$0xff]
        %v3096 = vld [vmem:[%s3093 + $0x10] sm:$0xff]
        %v3097 = vld [vmem:[%s3093 + $0x18] sm:$0x1]
        %v3098 = vrot.slane %v2799, 1
        %v3099 = vsel %vm2809, %v3098, 0
        %v3102 = vsel %vm1618, %v3097, 0
        %3104 = vmatpush.msra.mxu0 0.0
        %3105 = vmatpush.msra.mxu0 0.0
        %3106 = vmatpush.msra.mxu0 0.0
        %3107 = vmatpush.msra.mxu0 0.0
        %3108 = vmatpush.msra.mxu0 0.0
        %3109 = vmatpush.msra.mxu0 0.0
        %3110 = vmatpush.msra.mxu0 0.0
        %3111 = vmatpush.msra.mxu0 0.0
        %3112 = vmatpush.msra.mxu0 0.0
        %3113 = vmatpush.msra.mxu0 0.0
        %3114 = vmatpush.msra.mxu0 0.0
        %3115 = vmatpush.msra.mxu0 0.0
        %3116 = vmatpush.msra.mxu0 %v3102
        %3117 = vmatpush.msra.mxu0 %v3096
        %3118 = vmatpush.msra.mxu0 %v3095
        %3119 = vmatpush.msra.mxu0 %v3094
        %3120 = vmatmul.f32.gmra.mxu0 %v3099
        %v3121 = vpop.f32.mrf.mxu0
        %v3122 = vadd.f32 0.0, %v3121
        %3123 = vdwg.mxu0
        %v3124 = vadd.f32 %v3092, %v3122
        %s3125 = scalar_lea.vmem %s7, 320
        %v3126 = vld [vmem:[%s3125] sm:$0xff]
        %v3127 = vld [vmem:[%s3125 + $0x8] sm:$0xff]
        %v3128 = vld [vmem:[%s3125 + $0x10] sm:$0xff]
        %v3129 = vld [vmem:[%s3125 + $0x18] sm:$0x1]
        %v3130 = vrot.slane %v2799, 2
        %v3131 = vsel %vm2809, %v3130, 0
        %v3134 = vsel %vm1618, %v3129, 0
        %3136 = vmatpush.msra.mxu0 0.0
        %3137 = vmatpush.msra.mxu0 0.0
        %3138 = vmatpush.msra.mxu0 0.0
        %3139 = vmatpush.msra.mxu0 0.0
        %3140 = vmatpush.msra.mxu0 0.0
        %3141 = vmatpush.msra.mxu0 0.0
        %3142 = vmatpush.msra.mxu0 0.0
        %3143 = vmatpush.msra.mxu0 0.0
        %3144 = vmatpush.msra.mxu0 0.0
        %3145 = vmatpush.msra.mxu0 0.0
        %3146 = vmatpush.msra.mxu0 0.0
        %3147 = vmatpush.msra.mxu0 0.0
        %3148 = vmatpush.msra.mxu0 %v3134
        %3149 = vmatpush.msra.mxu0 %v3128
        %3150 = vmatpush.msra.mxu0 %v3127
        %3151 = vmatpush.msra.mxu0 %v3126
        %3152 = vmatmul.f32.gmra.mxu0 %v3131
        %v3153 = vpop.f32.mrf.mxu0
        %v3154 = vadd.f32 0.0, %v3153
        %3155 = vdwg.mxu0
        %v3156 = vadd.f32 %v3124, %v3154
        %s3157 = scalar_lea.vmem %s7, 352
        %v3158 = vld [vmem:[%s3157] sm:$0xff]
        %v3159 = vld [vmem:[%s3157 + $0x8] sm:$0xff]
        %v3160 = vld [vmem:[%s3157 + $0x10] sm:$0xff]
        %v3161 = vld [vmem:[%s3157 + $0x18] sm:$0x1]
        %v3162 = vrot.slane %v2799, 3
        %v3163 = vsel %vm2809, %v3162, 0
        %v3166 = vsel %vm1618, %v3161, 0
        %3168 = vmatpush.msra.mxu0 0.0
        %3169 = vmatpush.msra.mxu0 0.0
        %3170 = vmatpush.msra.mxu0 0.0
        %3171 = vmatpush.msra.mxu0 0.0
        %3172 = vmatpush.msra.mxu0 0.0
        %3173 = vmatpush.msra.mxu0 0.0
        %3174 = vmatpush.msra.mxu0 0.0
        %3175 = vmatpush.msra.mxu0 0.0
        %3176 = vmatpush.msra.mxu0 0.0
        %3177 = vmatpush.msra.mxu0 0.0
        %3178 = vmatpush.msra.mxu0 0.0
        %3179 = vmatpush.msra.mxu0 0.0
        %3180 = vmatpush.msra.mxu0 %v3166
        %3181 = vmatpush.msra.mxu0 %v3160
        %3182 = vmatpush.msra.mxu0 %v3159
        %3183 = vmatpush.msra.mxu0 %v3158
        %3184 = vmatmul.f32.gmra.mxu0 %v3163
        %v3185 = vpop.f32.mrf.mxu0
        %v3186 = vadd.f32 0.0, %v3185
        %3187 = vdwg.mxu0
        %v3188 = vadd.f32 %v3156, %v3186
        %s3189 = scalar_lea.vmem %s7, 384
        %v3190 = vld [vmem:[%s3189] sm:$0xff]
        %v3191 = vld [vmem:[%s3189 + $0x8] sm:$0xff]
        %v3192 = vld [vmem:[%s3189 + $0x10] sm:$0xff]
        %v3193 = vld [vmem:[%s3189 + $0x18] sm:$0x1]
        %v3194 = vrot.slane %v2799, 4
        %v3195 = vsel %vm2809, %v3194, 0
        %v3198 = vsel %vm1618, %v3193, 0
        %3200 = vmatpush.msra.mxu0 0.0
        %3201 = vmatpush.msra.mxu0 0.0
        %3202 = vmatpush.msra.mxu0 0.0
        %3203 = vmatpush.msra.mxu0 0.0
        %3204 = vmatpush.msra.mxu0 0.0
        %3205 = vmatpush.msra.mxu0 0.0
        %3206 = vmatpush.msra.mxu0 0.0
        %3207 = vmatpush.msra.mxu0 0.0
        %3208 = vmatpush.msra.mxu0 0.0
        %3209 = vmatpush.msra.mxu0 0.0
        %3210 = vmatpush.msra.mxu0 0.0
        %3211 = vmatpush.msra.mxu0 0.0
        %3212 = vmatpush.msra.mxu0 %v3198
        %3213 = vmatpush.msra.mxu0 %v3192
        %3214 = vmatpush.msra.mxu0 %v3191
        %3215 = vmatpush.msra.mxu0 %v3190
        %3216 = vmatmul.f32.gmra.mxu0 %v3195
        %v3217 = vpop.f32.mrf.mxu0
        %v3218 = vadd.f32 0.0, %v3217
        %3219 = vdwg.mxu0
        %v3220 = vadd.f32 %v3188, %v3218
        %s3221 = scalar_lea.vmem %s7, 416
        %v3222 = vld [vmem:[%s3221] sm:$0xff]
        %v3223 = vld [vmem:[%s3221 + $0x8] sm:$0xff]
        %v3224 = vld [vmem:[%s3221 + $0x10] sm:$0xff]
        %v3225 = vld [vmem:[%s3221 + $0x18] sm:$0x1]
        %v3226 = vrot.slane %v2799, 5
        %v3227 = vsel %vm2809, %v3226, 0
        %v3230 = vsel %vm1618, %v3225, 0
        %3232 = vmatpush.msra.mxu0 0.0
        %3233 = vmatpush.msra.mxu0 0.0
        %3234 = vmatpush.msra.mxu0 0.0
        %3235 = vmatpush.msra.mxu0 0.0
        %3236 = vmatpush.msra.mxu0 0.0
        %3237 = vmatpush.msra.mxu0 0.0
        %3238 = vmatpush.msra.mxu0 0.0
        %3239 = vmatpush.msra.mxu0 0.0
        %3240 = vmatpush.msra.mxu0 0.0
        %3241 = vmatpush.msra.mxu0 0.0
        %3242 = vmatpush.msra.mxu0 0.0
        %3243 = vmatpush.msra.mxu0 0.0
        %3244 = vmatpush.msra.mxu0 %v3230
        %3245 = vmatpush.msra.mxu0 %v3224
        %3246 = vmatpush.msra.mxu0 %v3223
        %3247 = vmatpush.msra.mxu0 %v3222
        %3248 = vmatmul.f32.gmra.mxu0 %v3227
        %v3249 = vpop.f32.mrf.mxu0
        %v3250 = vadd.f32 0.0, %v3249
        %3251 = vdwg.mxu0
        %v3252 = vadd.f32 %v3220, %v3250
        %s3253 = scalar_lea.vmem %s7, 448
        %v3254 = vld [vmem:[%s3253] sm:$0xff]
        %v3255 = vld [vmem:[%s3253 + $0x8] sm:$0xff]
        %v3256 = vld [vmem:[%s3253 + $0x10] sm:$0xff]
        %v3257 = vld [vmem:[%s3253 + $0x18] sm:$0x1]
        %v3258 = vrot.slane %v2799, 6
        %v3259 = vsel %vm2809, %v3258, 0
        %v3262 = vsel %vm1618, %v3257, 0
        %3264 = vmatpush.msra.mxu0 0.0
        %3265 = vmatpush.msra.mxu0 0.0
        %3266 = vmatpush.msra.mxu0 0.0
        %3267 = vmatpush.msra.mxu0 0.0
        %3268 = vmatpush.msra.mxu0 0.0
        %3269 = vmatpush.msra.mxu0 0.0
        %3270 = vmatpush.msra.mxu0 0.0
        %3271 = vmatpush.msra.mxu0 0.0
        %3272 = vmatpush.msra.mxu0 0.0
        %3273 = vmatpush.msra.mxu0 0.0
        %3274 = vmatpush.msra.mxu0 0.0
        %3275 = vmatpush.msra.mxu0 0.0
        %3276 = vmatpush.msra.mxu0 %v3262
        %3277 = vmatpush.msra.mxu0 %v3256
        %3278 = vmatpush.msra.mxu0 %v3255
        %3279 = vmatpush.msra.mxu0 %v3254
        %3280 = vmatmul.f32.gmra.mxu0 %v3259
        %v3281 = vpop.f32.mrf.mxu0
        %v3282 = vadd.f32 0.0, %v3281
        %3283 = vdwg.mxu0
        %v3284 = vadd.f32 %v3252, %v3282
        %s3285 = scalar_lea.vmem %s7, 480
        %v3286 = vld [vmem:[%s3285] sm:$0xff]
        %v3287 = vld [vmem:[%s3285 + $0x8] sm:$0xff]
        %v3288 = vld [vmem:[%s3285 + $0x10] sm:$0xff]
        %v3289 = vld [vmem:[%s3285 + $0x18] sm:$0x1]
        %v3290 = vrot.slane %v2799, 7
        %v3291 = vsel %vm2809, %v3290, 0
        %v3294 = vsel %vm1618, %v3289, 0
        %3296 = vmatpush.msra.mxu0 0.0
        %3297 = vmatpush.msra.mxu0 0.0
        %3298 = vmatpush.msra.mxu0 0.0
        %3299 = vmatpush.msra.mxu0 0.0
        %3300 = vmatpush.msra.mxu0 0.0
        %3301 = vmatpush.msra.mxu0 0.0
        %3302 = vmatpush.msra.mxu0 0.0
        %3303 = vmatpush.msra.mxu0 0.0
        %3304 = vmatpush.msra.mxu0 0.0
        %3305 = vmatpush.msra.mxu0 0.0
        %3306 = vmatpush.msra.mxu0 0.0
        %3307 = vmatpush.msra.mxu0 0.0
        %3308 = vmatpush.msra.mxu0 %v3294
        %3309 = vmatpush.msra.mxu0 %v3288
        %3310 = vmatpush.msra.mxu0 %v3287
        %3311 = vmatpush.msra.mxu0 %v3286
        %3312 = vmatmul.f32.gmra.mxu0 %v3291
        %v3313 = vpop.f32.mrf.mxu0
        %v3314 = vadd.f32 0.0, %v3313
        %3315 = vdwg.mxu0
        %v3316 = vadd.f32 %v3284, %v3314
        %s3317 = scalar_lea.vmem %s7, 512
        %v3318 = vld [vmem:[%s3317] sm:$0xff]
        %v3319 = vld [vmem:[%s3317 + $0x8] sm:$0xff]
        %v3320 = vld [vmem:[%s3317 + $0x10] sm:$0xff]
        %v3321 = vld [vmem:[%s3317 + $0x18] sm:$0x1]
        %v3323 = vsel %vm2809, %v2802, 0
        %v3326 = vsel %vm1618, %v3321, 0
        %3328 = vmatpush.msra.mxu0 0.0
        %3329 = vmatpush.msra.mxu0 0.0
        %3330 = vmatpush.msra.mxu0 0.0
        %3331 = vmatpush.msra.mxu0 0.0
        %3332 = vmatpush.msra.mxu0 0.0
        %3333 = vmatpush.msra.mxu0 0.0
        %3334 = vmatpush.msra.mxu0 0.0
        %3335 = vmatpush.msra.mxu0 0.0
        %3336 = vmatpush.msra.mxu0 0.0
        %3337 = vmatpush.msra.mxu0 0.0
        %3338 = vmatpush.msra.mxu0 0.0
        %3339 = vmatpush.msra.mxu0 0.0
        %3340 = vmatpush.msra.mxu0 %v3326
        %3341 = vmatpush.msra.mxu0 %v3320
        %3342 = vmatpush.msra.mxu0 %v3319
        %3343 = vmatpush.msra.mxu0 %v3318
        %3344 = vmatmul.f32.gmra.mxu0 %v3323
        %v3345 = vpop.f32.mrf.mxu0
        %v3346 = vadd.f32 0.0, %v3345
        %3347 = vdwg.mxu0
        %v3348 = vadd.f32 %v3316, %v3346
        %s3349 = scalar_lea.vmem %s7, 544
        %v3350 = vld [vmem:[%s3349] sm:$0xff]
        %v3351 = vld [vmem:[%s3349 + $0x8] sm:$0xff]
        %v3352 = vld [vmem:[%s3349 + $0x10] sm:$0xff]
        %v3353 = vld [vmem:[%s3349 + $0x18] sm:$0x1]
        %v3354 = vrot.slane %v2802, 1
        %v3355 = vsel %vm2809, %v3354, 0
        %v3358 = vsel %vm1618, %v3353, 0
        %3360 = vmatpush.msra.mxu0 0.0
        %3361 = vmatpush.msra.mxu0 0.0
        %3362 = vmatpush.msra.mxu0 0.0
        %3363 = vmatpush.msra.mxu0 0.0
        %3364 = vmatpush.msra.mxu0 0.0
        %3365 = vmatpush.msra.mxu0 0.0
        %3366 = vmatpush.msra.mxu0 0.0
        %3367 = vmatpush.msra.mxu0 0.0
        %3368 = vmatpush.msra.mxu0 0.0
        %3369 = vmatpush.msra.mxu0 0.0
        %3370 = vmatpush.msra.mxu0 0.0
        %3371 = vmatpush.msra.mxu0 0.0
        %3372 = vmatpush.msra.mxu0 %v3358
        %3373 = vmatpush.msra.mxu0 %v3352
        %3374 = vmatpush.msra.mxu0 %v3351
        %3375 = vmatpush.msra.mxu0 %v3350
        %3376 = vmatmul.f32.gmra.mxu0 %v3355
        %v3377 = vpop.f32.mrf.mxu0
        %v3378 = vadd.f32 0.0, %v3377
        %3379 = vdwg.mxu0
        %v3380 = vadd.f32 %v3348, %v3378
        %s3381 = scalar_lea.vmem %s7, 576
        %v3382 = vld [vmem:[%s3381] sm:$0xff]
        %v3383 = vld [vmem:[%s3381 + $0x8] sm:$0xff]
        %v3384 = vld [vmem:[%s3381 + $0x10] sm:$0xff]
        %v3385 = vld [vmem:[%s3381 + $0x18] sm:$0x1]
        %v3386 = vrot.slane %v2802, 2
        %v3387 = vsel %vm2809, %v3386, 0
        %v3390 = vsel %vm1618, %v3385, 0
        %3392 = vmatpush.msra.mxu0 0.0
        %3393 = vmatpush.msra.mxu0 0.0
        %3394 = vmatpush.msra.mxu0 0.0
        %3395 = vmatpush.msra.mxu0 0.0
        %3396 = vmatpush.msra.mxu0 0.0
        %3397 = vmatpush.msra.mxu0 0.0
        %3398 = vmatpush.msra.mxu0 0.0
        %3399 = vmatpush.msra.mxu0 0.0
        %3400 = vmatpush.msra.mxu0 0.0
        %3401 = vmatpush.msra.mxu0 0.0
        %3402 = vmatpush.msra.mxu0 0.0
        %3403 = vmatpush.msra.mxu0 0.0
        %3404 = vmatpush.msra.mxu0 %v3390
        %3405 = vmatpush.msra.mxu0 %v3384
        %3406 = vmatpush.msra.mxu0 %v3383
        %3407 = vmatpush.msra.mxu0 %v3382
        %3408 = vmatmul.f32.gmra.mxu0 %v3387
        %v3409 = vpop.f32.mrf.mxu0
        %v3410 = vadd.f32 0.0, %v3409
        %3411 = vdwg.mxu0
        %v3412 = vadd.f32 %v3380, %v3410
        %s3413 = scalar_lea.vmem %s7, 608
        %v3414 = vld [vmem:[%s3413] sm:$0xff]
        %v3415 = vld [vmem:[%s3413 + $0x8] sm:$0xff]
        %v3416 = vld [vmem:[%s3413 + $0x10] sm:$0xff]
        %v3417 = vld [vmem:[%s3413 + $0x18] sm:$0x1]
        %v3418 = vrot.slane %v2802, 3
        %v3419 = vsel %vm2809, %v3418, 0
        %v3422 = vsel %vm1618, %v3417, 0
        %3424 = vmatpush.msra.mxu0 0.0
        %3425 = vmatpush.msra.mxu0 0.0
        %3426 = vmatpush.msra.mxu0 0.0
        %3427 = vmatpush.msra.mxu0 0.0
        %3428 = vmatpush.msra.mxu0 0.0
        %3429 = vmatpush.msra.mxu0 0.0
        %3430 = vmatpush.msra.mxu0 0.0
        %3431 = vmatpush.msra.mxu0 0.0
        %3432 = vmatpush.msra.mxu0 0.0
        %3433 = vmatpush.msra.mxu0 0.0
        %3434 = vmatpush.msra.mxu0 0.0
        %3435 = vmatpush.msra.mxu0 0.0
        %3436 = vmatpush.msra.mxu0 %v3422
        %3437 = vmatpush.msra.mxu0 %v3416
        %3438 = vmatpush.msra.mxu0 %v3415
        %3439 = vmatpush.msra.mxu0 %v3414
        %3440 = vmatmul.f32.gmra.mxu0 %v3419
        %v3441 = vpop.f32.mrf.mxu0
        %v3442 = vadd.f32 0.0, %v3441
        %3443 = vdwg.mxu0
        %v3444 = vadd.f32 %v3412, %v3442
        %v3445 = vmax.f32 %v3444, 0.0
        %v3446 = vld [vmem:[%s9] sm:$0xff]
        %v3447 = vld [vmem:[%s9 + $0x8] sm:$0xff]
        %v3448 = vld [vmem:[%s9 + $0x10] sm:$0xff]
        %v3449 = vld [vmem:[%s9 + $0x18] sm:$0xff]
        %v3450 = vld [vmem:[%s9 + $0x20] sm:$0xff]
        %v3451 = vld [vmem:[%s9 + $0x28] sm:$0xff]
        %v3452 = vld [vmem:[%s9 + $0x30] sm:$0x3]
        %v3453 = vld [vmem:[%s10] sm:$0x1]
        %vm3454 = vcmask 408576
        %v3456 = vsel %vm3454, %v3445, 0
        %v3459 = vsel %vm1944, %v3452, 0
        %3461 = vmatpush.msra.mxu0 0.0
        %3462 = vmatpush.msra.mxu0 0.0
        %3463 = vmatpush.msra.mxu0 0.0
        %3464 = vmatpush.msra.mxu0 0.0
        %3465 = vmatpush.msra.mxu0 0.0
        %3466 = vmatpush.msra.mxu0 0.0
        %3467 = vmatpush.msra.mxu0 0.0
        %3468 = vmatpush.msra.mxu0 0.0
        %3469 = vmatpush.msra.mxu0 0.0
        %3470 = vmatpush.msra.mxu0 %v3459
        %3471 = vmatpush.msra.mxu0 %v3451
        %3472 = vmatpush.msra.mxu0 %v3450
        %3473 = vmatpush.msra.mxu0 %v3449
        %3474 = vmatpush.msra.mxu0 %v3448
        %3475 = vmatpush.msra.mxu0 %v3447
        %3476 = vmatpush.msra.mxu0 %v3446
        %3477 = vmatmul.f32.gmra.mxu0 %v3456
        %v3478 = vpop.f32.mrf.mxu0
        %v3479 = vadd.f32 %v3453, %v3478
        %3480 = vdwg.mxu0
        %vm3481 = vcmask 73728
        %3482 = vst.msk [vmem:[%s376] sm:$0x1] %vm3481, %v3479
        %s3483 = sand.u32 %s269, 1
        %s3484 = scalar_lea.sflag [#allocation6], %s3483
        %s3485 = sand.u32 %s269, 1
        %s3486 = scalar_lea.vmem [#allocation5], %s3485
        // Predicated region
        $region65: #{net_forward.1} parent=63 // pred_check
          %p3487 = pneg %p279
        $region66: #{net_forward.1} parent=63 // pred_check_branch
          %3489 = sbr.rel (%p3487) target = $region68
        $region67: #{net_forward.1} parent=63 // pred_region
          %3491 = vsyncadd %s3484, 0
          %s3492 = scalar_lea.hbm %s11, %s25
          %s3494 = sshll.u32 %s3486, 4
          %s3495 = int_to_ptr.vmem [resolvable:$true] %s3494
          %s3496 = sshll.u32 %s3492, 4
          %s3497 = int_to_ptr.hbm [resolvable:$true] %s3496
          %3499 = dma.vmem_to_hbm [thread:$0]  %s3495, 16, %s3497, %s3484
        $region68: #{net_forward.1} parent=63 // pred_fallthru
          _
      $region64: #{net_forward.1} parent=5 // pred_fallthru
        _
      %p3500 = scmp.le.s32.totalorder 2, %s20
      // Predicated region
      $region69: #{net_forward.1} parent=5 // pred_check
        %p3501 = pneg %p3500
      $region70: #{net_forward.1} parent=5 // pred_check_branch
        %3503 = sbr.rel (%p3501) target = $region72
      $region71: #{net_forward.1} parent=5 // pred_region
        %s3504 = ssub.s32 %s20, 2
        // Predicated region
        $region73: #{net_forward.1} parent=71 // pred_check
          %p3505 = pneg %p285
        $region74: #{net_forward.1} parent=71 // pred_check_branch
          %3507 = sbr.rel (%p3505) target = $region76
        $region75: #{net_forward.1} parent=71 // pred_region
          %s3508 = sand.u32 %s270, 1
          %s3509 = scalar_lea.sflag [#allocation6], %s3508
          %s3510 = sand.u32 %s270, 1
          %s3511 = scalar_lea.vmem [#allocation5], %s3510
          %3513 = dma.done %s3509, 16
        $region76: #{net_forward.1} parent=71 // pred_fallthru
          _
      $region72: #{net_forward.1} parent=5 // pred_fallthru
        _
    $region6: #{net_forward.1} parent=1 // loop_footer
      %s24 = sadd.s32 1, %s20
    $region7: #{net_forward.1} parent=1 // loop_footer_branch
      %19 = sbr.rel target = $region3
    $region8: #{net_forward.1} parent=1 // loop_exit
      _
    %3514 = vsyncpa [#allocation6], 1
    %s3515 = scalar_lea.sflag [#allocation6], 1
    %3516 = vsyncpa %s3515, 1

</llo_original>
